<compile_context>
chip_gen: v7x
topology: tpu7x:2x2x1
jax: 0.10.0
libtpu: 0.0.40
codegen_flags: <defaults>
</compile_context>

<pallas_src>
import functools
import math

import jax
import jax.numpy as jnp
from jax.experimental import pallas as pl
from jax.experimental.pallas import tpu as pltpu

KSIZE = 5
PAD = 2


def _fused_branch_kernel(H, W, C, x_ref, wv_ref, bv_ref, wdw_ref, bdw_ref,
                         wp_ref, bp_ref, o_ref):
    """One (branch, batch) element.

    x_ref   : (1, 1, Hp, Wp*C) f32   reflect-padded input, lane-dense
    wv_ref  : (1, Wp*C, Wp*C)  bf16  block-diag kron(I_Wp, W_V) per branch
    bv_ref  : (1, 1, Wp*C)     f32   V bias tiled over W
    wdw_ref : (1, 25, W*C)     f32   depthwise taps tiled over W
    bdw_ref : (1, 1, W*C)      f32
    wp_ref  : (W*C, W*C)       bf16  block-diag kron(I_W, W_proj) (shared)
    bp_ref  : (1, W*C)         f32
    o_ref   : (1, 1, H, W*C)   f32
    """
    WC = W * C

    x = x_ref[0, 0]                                   # (Hp, Wp*C) f32

    # 1x1 V conv in lane-dense form (MXU, bf16 operands, f32 accumulation).
    v = jnp.dot(x.astype(jnp.bfloat16), wv_ref[0],
                preferred_element_type=jnp.float32) + bv_ref[0]   # (Hp, Wp*C)

    # Depthwise 5x5 (reflect padding already in x; commutes with the 1x1).
    # Weights hoisted: one load of the full (25, W*C) table, value row slices
    # inside the unrolled tap loop.
    wdw = wdw_ref[0]                                  # (25, W*C)
    acc = v[0:H, 0:WC] * wdw[0:1, :]
    for i in range(KSIZE):
        for j in range(KSIZE):
            if i == 0 and j == 0:
                continue
            t = i * KSIZE + j
            acc = acc + v[i:i + H, j * C:j * C + WC] * wdw[t:t + 1, :]
    acc = acc + bdw_ref[0]                            # (H, W*C) f32

    # 1x1 proj conv, lane-dense output -> unmasked 512-lane stores.
    out = jnp.dot(acc.astype(jnp.bfloat16), wp_ref[...],
                  preferred_element_type=jnp.float32) + bp_ref[...]
    o_ref[0, 0] = out


def cross_attention_forward(X, Y, params):
    """Mirrors CrossAttention.forward with use_attn=False:
       main = [proj(convm(V_main(X)))], structure = [proj(convs(V_structure(Y)))].
       X, Y: (B, C, H, W) float32 (PyTorch layout)."""
    B, C, H, W = X.shape
    Hp, Wp = H + 2 * PAD, W + 2 * PAD
    WC, WpC = W * C, Wp * C

    # --- input prep: NCHW -> NHWC -> reflect pad -> lane-dense (Hp, Wp*C) ---
    def prep(x):
        x = jnp.transpose(x, (0, 2, 3, 1))
        x = jnp.pad(x, ((0, 0), (PAD, PAD), (PAD, PAD), (0, 0)), mode='reflect')
        return x.reshape(B, Hp, WpC)

    x_all = jnp.stack([prep(X), prep(Y)], axis=0)            # (2, B, Hp, Wp*C)

    # --- weight prep (tiny; done on weights, not activations) ---
    eye_wp = jnp.eye(Wp, dtype=jnp.float32)
    eye_w = jnp.eye(W, dtype=jnp.float32)
    wv_big = jnp.stack([jnp.kron(eye_wp, params['wv_m']),
                        jnp.kron(eye_wp, params['wv_s'])],
                       axis=0).astype(jnp.bfloat16)          # (2, Wp*C, Wp*C)
    wp_big = jnp.kron(eye_w, params['wproj']).astype(jnp.bfloat16)   # (W*C, W*C)

    bv_all = jnp.stack([jnp.tile(params['bv_m'], Wp),
                        jnp.tile(params['bv_s'], Wp)], axis=0).reshape(2, 1, WpC)
    wdw_all = jnp.stack([jnp.tile(params['wdw_m'], (1, W)),
                         jnp.tile(params['wdw_s'], (1, W))], axis=0)  # (2,25,W*C)
    bdw_all = jnp.stack([jnp.tile(params['bdw_m'], W),
                         jnp.tile(params['bdw_s'], W)], axis=0).reshape(2, 1, WC)
    bp_all = jnp.tile(params['bproj'], W).reshape(1, WC)

    kernel = functools.partial(_fused_branch_kernel, H, W, C)

    out = pl.pallas_call(
        kernel,
        out_shape=jax.ShapeDtypeStruct((2, B, H, WC), jnp.float32),
        grid=(2, B),
        in_specs=[
            pl.BlockSpec((1, 1, Hp, WpC), lambda g, b: (g, b, 0, 0)),
            pl.BlockSpec((1, WpC, WpC), lambda g, b: (g, 0, 0)),
            pl.BlockSpec((1, 1, WpC), lambda g, b: (g, 0, 0)),
            pl.BlockSpec((1, KSIZE * KSIZE, WC), lambda g, b: (g, 0, 0)),
            pl.BlockSpec((1, 1, WC), lambda g, b: (g, 0, 0)),
            pl.BlockSpec((WC, WC), lambda g, b: (0, 0)),
            pl.BlockSpec((1, WC), lambda g, b: (0, 0)),
        ],
        out_specs=pl.BlockSpec((1, 1, H, WC), lambda g, b: (g, b, 0, 0)),
        compiler_params=pltpu.CompilerParams(
            dimension_semantics=("parallel", "parallel"),
            vmem_limit_bytes=32 * 1024 * 1024),
    )(x_all, wv_big, bv_all, wdw_all, bdw_all, wp_big, bp_all)

    # (2, B, H, W*C) -> (2, B, C, H, W)  (NCHW interface of the module)
    out = out.reshape(2, B, H, W, C)
    out = jnp.transpose(out, (0, 1, 4, 2, 3))
    return [out[0]], [out[1]]


cross_attention_forward_jit = jax.jit(cross_attention_forward)


def init_params(key, dim, network_depth):
    """Deterministic synthetic init matching the module's _init_weights stds.

    Kernel-friendly storage:
      1x1 conv  -> (C_in, C_out)   [out = x @ W + b]
      dw 5x5    -> (25, C)         [tap-major, per-channel]
    (normal() in place of trunc_normal_; bias = 0.)
    """
    gain = (8 * network_depth) ** (-1 / 4)
    std_1x1 = gain * math.sqrt(2.0 / float(dim + dim))
    std_dw = gain * math.sqrt(2.0 / float(25 + 25 * dim))
    k = jax.random.split(key, 5)
    return {
        'wv_m': (jax.random.normal(k[0], (dim, dim)) * std_1x1).astype(jnp.float32),
        'bv_m': jnp.zeros((dim,), jnp.float32),
        'wv_s': (jax.random.normal(k[1], (dim, dim)) * std_1x1).astype(jnp.float32),
        'bv_s': jnp.zeros((dim,), jnp.float32),
        'wdw_m': (jax.random.normal(k[2], (KSIZE * KSIZE, dim)) * std_dw).astype(jnp.float32),
        'bdw_m': jnp.zeros((dim,), jnp.float32),
        'wdw_s': (jax.random.normal(k[3], (KSIZE * KSIZE, dim)) * std_dw).astype(jnp.float32),
        'bdw_s': jnp.zeros((dim,), jnp.float32),
        'wproj': (jax.random.normal(k[4], (dim, dim)) * std_1x1).astype(jnp.float32),
        'bproj': jnp.zeros((dim,), jnp.float32),
    }


def _ref_branch(x, wv, bv, wdw, bdw, wp, bp):
    """Pure-JAX f32 NCHW reference for correctness checking."""
    B, C, H, W = x.shape
    v = jnp.einsum('bchw,cd->bdhw', x, wv) + bv[None, :, None, None]
    vpad = jnp.pad(v, ((0, 0), (0, 0), (PAD, PAD), (PAD, PAD)), mode='reflect')
    w55 = wdw.reshape(KSIZE, KSIZE, C)
    acc = jnp.zeros_like(x)
    for i in range(KSIZE):
        for j in range(KSIZE):
            acc = acc + vpad[:, :, i:i + H, j:j + W] * w55[i, j][None, :, None, None]
    acc = acc + bdw[None, :, None, None]
    return jnp.einsum('bchw,cd->bdhw', acc, wp) + bp[None, :, None, None]


if __name__ == "__main__":
    B, dim, H, W = 2, 32, 16, 16
    network_depth = 4
    # module hyperparams for reference: num_heads=4, window_size=(8, 8), use_attn=False

    key = jax.random.PRNGKey(0)
    kx, ky, kp = jax.random.split(key, 3)
    X = jax.random.normal(kx, (B, dim, H, W), dtype=jnp.float32)
    Y = jax.random.normal(ky, (B, dim, H, W), dtype=jnp.float32)
    params = init_params(kp, dim, network_depth)

    main_list, structure_list = cross_attention_forward_jit(X, Y, params)
    main = jax.block_until_ready(main_list[0])
    structure = jax.block_until_ready(structure_list[0])

    ref_m = _ref_branch(X, params['wv_m'], params['bv_m'],
                        params['wdw_m'], params['bdw_m'],
                        params['wproj'], params['bproj'])
    ref_s = _ref_branch(Y, params['wv_s'], params['bv_s'],
                        params['wdw_s'], params['bdw_s'],
                        params['wproj'], params['bproj'])

    assert main.shape == (B, dim, H, W) and structure.shape == (B, dim, H, W)
    # bf16 MXU operands (f32 accumulation) -> relaxed tolerance vs f32 reference.
    assert jnp.allclose(main, ref_m, atol=5e-3, rtol=5e-2)
    assert jnp.allclose(structure, ref_s, atol=5e-3, rtol=5e-2)

    print("KERNEL_OK")
</pallas_src>

<mosaic_0001>
module attributes {stable_mosaic.version = 11 : i64} {
  func.func @_fused_branch_kernel(%arg0: i32, %arg1: i32, %arg2: memref<1x1x20x640xf32, #tpu.memory_space<vmem>>, %arg3: memref<1x640x640xbf16, #tpu.memory_space<vmem>>, %arg4: memref<1x1x640xf32, #tpu.memory_space<vmem>>, %arg5: memref<1x25x512xf32, #tpu.memory_space<vmem>>, %arg6: memref<1x1x512xf32, #tpu.memory_space<vmem>>, %arg7: memref<512x512xbf16, #tpu.memory_space<vmem>>, %arg8: memref<1x512xf32, #tpu.memory_space<vmem>>, %arg9: memref<1x1x16x512xf32, #tpu.memory_space<vmem>>) attributes {dimension_semantics = [#tpu.dimension_semantics<parallel>, #tpu.dimension_semantics<parallel>], iteration_bounds = array<i64: 2, 2>, scalar_prefetch = 0 : i64, scratch_operands = 0 : i64, tpu.core_type = #tpu.core_type<tc>, window_params = [{transform_indices = @transform_0, window_bounds = array<i64: 1, 1, 20, 640>}, {transform_indices = @transform_1, window_bounds = array<i64: 1, 640, 640>}, {transform_indices = @transform_2, window_bounds = array<i64: 1, 1, 640>}, {transform_indices = @transform_3, window_bounds = array<i64: 1, 25, 512>}, {transform_indices = @transform_4, window_bounds = array<i64: 1, 1, 512>}, {pipeline_mode = #tpu.pipeline_mode<synchronous>, transform_indices = @transform_5, window_bounds = array<i64: 512, 512>}, {pipeline_mode = #tpu.pipeline_mode<synchronous>, transform_indices = @transform_6, window_bounds = array<i64: 1, 512>}, {transform_indices = @transform_7, window_bounds = array<i64: 1, 1, 16, 512>}]} {
    %c0 = arith.constant 0 : index
    %c0_0 = arith.constant 0 : index
    %c0_1 = arith.constant 0 : index
    %c0_2 = arith.constant 0 : index
    %0 = vector.load %arg2[%c0, %c0_0, %c0_1, %c0_2] : memref<1x1x20x640xf32, #tpu.memory_space<vmem>>, vector<1x1x20x640xf32>
    %1 = vector.shape_cast %0 : vector<1x1x20x640xf32> to vector<20x640xf32>
    %2 = arith.truncf %1 : vector<20x640xf32> to vector<20x640xbf16>
    %c0_3 = arith.constant 0 : index
    %c0_4 = arith.constant 0 : index
    %c0_5 = arith.constant 0 : index
    %3 = vector.load %arg3[%c0_3, %c0_4, %c0_5] : memref<1x640x640xbf16, #tpu.memory_space<vmem>>, vector<1x640x640xbf16>
    %4 = vector.shape_cast %3 : vector<1x640x640xbf16> to vector<640x640xbf16>
    %cst = arith.constant dense<0.000000e+00> : vector<20x640xf32>
    %5 = tpu.matmul %2, %4, %cst {dimension_numbers = #tpu.dot_dimension_numbers<[1], [0], [0], [1], [0, 0, 1, 1], [], []>} : vector<20x640xbf16>, vector<640x640xbf16>, vector<20x640xf32> -> vector<20x640xf32>
    %c0_6 = arith.constant 0 : index
    %c0_7 = arith.constant 0 : index
    %c0_8 = arith.constant 0 : index
    %6 = vector.load %arg4[%c0_6, %c0_7, %c0_8] : memref<1x1x640xf32, #tpu.memory_space<vmem>>, vector<1x1x640xf32>
    %7 = vector.shape_cast %6 : vector<1x1x640xf32> to vector<1x640xf32>
    %8 = vector.broadcast %7 : vector<1x640xf32> to vector<20x640xf32>
    %9 = arith.addf %5, %8 : vector<20x640xf32>
    %c0_9 = arith.constant 0 : index
    %c0_10 = arith.constant 0 : index
    %c0_11 = arith.constant 0 : index
    %10 = vector.load %arg5[%c0_9, %c0_10, %c0_11] : memref<1x25x512xf32, #tpu.memory_space<vmem>>, vector<1x25x512xf32>
    %11 = vector.shape_cast %10 : vector<1x25x512xf32> to vector<25x512xf32>
    %12 = vector.extract_strided_slice %9 {offsets = [0, 0], sizes = [16, 512], strides = [1, 1]} : vector<20x640xf32> to vector<16x512xf32>
    %13 = vector.extract_strided_slice %11 {offsets = [0, 0], sizes = [1, 512], strides = [1, 1]} : vector<25x512xf32> to vector<1x512xf32>
    %14 = vector.broadcast %13 : vector<1x512xf32> to vector<16x512xf32>
    %15 = arith.mulf %12, %14 : vector<16x512xf32>
    %16 = vector.extract_strided_slice %9 {offsets = [0, 32], sizes = [16, 512], strides = [1, 1]} : vector<20x640xf32> to vector<16x512xf32>
    %17 = vector.extract_strided_slice %11 {offsets = [1, 0], sizes = [1, 512], strides = [1, 1]} : vector<25x512xf32> to vector<1x512xf32>
    %18 = vector.broadcast %17 : vector<1x512xf32> to vector<16x512xf32>
    %19 = arith.mulf %16, %18 : vector<16x512xf32>
    %20 = arith.addf %15, %19 : vector<16x512xf32>
    %21 = vector.extract_strided_slice %9 {offsets = [0, 64], sizes = [16, 512], strides = [1, 1]} : vector<20x640xf32> to vector<16x512xf32>
    %22 = vector.extract_strided_slice %11 {offsets = [2, 0], sizes = [1, 512], strides = [1, 1]} : vector<25x512xf32> to vector<1x512xf32>
    %23 = vector.broadcast %22 : vector<1x512xf32> to vector<16x512xf32>
    %24 = arith.mulf %21, %23 : vector<16x512xf32>
    %25 = arith.addf %20, %24 : vector<16x512xf32>
    %26 = vector.extract_strided_slice %9 {offsets = [0, 96], sizes = [16, 512], strides = [1, 1]} : vector<20x640xf32> to vector<16x512xf32>
    %27 = vector.extract_strided_slice %11 {offsets = [3, 0], sizes = [1, 512], strides = [1, 1]} : vector<25x512xf32> to vector<1x512xf32>
    %28 = vector.broadcast %27 : vector<1x512xf32> to vector<16x512xf32>
    %29 = arith.mulf %26, %28 : vector<16x512xf32>
    %30 = arith.addf %25, %29 : vector<16x512xf32>
    %31 = vector.extract_strided_slice %9 {offsets = [0, 128], sizes = [16, 512], strides = [1, 1]} : vector<20x640xf32> to vector<16x512xf32>
    %32 = vector.extract_strided_slice %11 {offsets = [4, 0], sizes = [1, 512], strides = [1, 1]} : vector<25x512xf32> to vector<1x512xf32>
    %33 = vector.broadcast %32 : vector<1x512xf32> to vector<16x512xf32>
    %34 = arith.mulf %31, %33 : vector<16x512xf32>
    %35 = arith.addf %30, %34 : vector<16x512xf32>
    %36 = vector.extract_strided_slice %9 {offsets = [1, 0], sizes = [16, 512], strides = [1, 1]} : vector<20x640xf32> to vector<16x512xf32>
    %37 = vector.extract_strided_slice %11 {offsets = [5, 0], sizes = [1, 512], strides = [1, 1]} : vector<25x512xf32> to vector<1x512xf32>
    %38 = vector.broadcast %37 : vector<1x512xf32> to vector<16x512xf32>
    %39 = arith.mulf %36, %38 : vector<16x512xf32>
    %40 = arith.addf %35, %39 : vector<16x512xf32>
    %41 = vector.extract_strided_slice %9 {offsets = [1, 32], sizes = [16, 512], strides = [1, 1]} : vector<20x640xf32> to vector<16x512xf32>
    %42 = vector.extract_strided_slice %11 {offsets = [6, 0], sizes = [1, 512], strides = [1, 1]} : vector<25x512xf32> to vector<1x512xf32>
    %43 = vector.broadcast %42 : vector<1x512xf32> to vector<16x512xf32>
    %44 = arith.mulf %41, %43 : vector<16x512xf32>
    %45 = arith.addf %40, %44 : vector<16x512xf32>
    %46 = vector.extract_strided_slice %9 {offsets = [1, 64], sizes = [16, 512], strides = [1, 1]} : vector<20x640xf32> to vector<16x512xf32>
    %47 = vector.extract_strided_slice %11 {offsets = [7, 0], sizes = [1, 512], strides = [1, 1]} : vector<25x512xf32> to vector<1x512xf32>
    %48 = vector.broadcast %47 : vector<1x512xf32> to vector<16x512xf32>
    %49 = arith.mulf %46, %48 : vector<16x512xf32>
    %50 = arith.addf %45, %49 : vector<16x512xf32>
    %51 = vector.extract_strided_slice %9 {offsets = [1, 96], sizes = [16, 512], strides = [1, 1]} : vector<20x640xf32> to vector<16x512xf32>
    %52 = vector.extract_strided_slice %11 {offsets = [8, 0], sizes = [1, 512], strides = [1, 1]} : vector<25x512xf32> to vector<1x512xf32>
    %53 = vector.broadcast %52 : vector<1x512xf32> to vector<16x512xf32>
    %54 = arith.mulf %51, %53 : vector<16x512xf32>
    %55 = arith.addf %50, %54 : vector<16x512xf32>
    %56 = vector.extract_strided_slice %9 {offsets = [1, 128], sizes = [16, 512], strides = [1, 1]} : vector<20x640xf32> to vector<16x512xf32>
    %57 = vector.extract_strided_slice %11 {offsets = [9, 0], sizes = [1, 512], strides = [1, 1]} : vector<25x512xf32> to vector<1x512xf32>
    %58 = vector.broadcast %57 : vector<1x512xf32> to vector<16x512xf32>
    %59 = arith.mulf %56, %58 : vector<16x512xf32>
    %60 = arith.addf %55, %59 : vector<16x512xf32>
    %61 = vector.extract_strided_slice %9 {offsets = [2, 0], sizes = [16, 512], strides = [1, 1]} : vector<20x640xf32> to vector<16x512xf32>
    %62 = vector.extract_strided_slice %11 {offsets = [10, 0], sizes = [1, 512], strides = [1, 1]} : vector<25x512xf32> to vector<1x512xf32>
    %63 = vector.broadcast %62 : vector<1x512xf32> to vector<16x512xf32>
    %64 = arith.mulf %61, %63 : vector<16x512xf32>
    %65 = arith.addf %60, %64 : vector<16x512xf32>
    %66 = vector.extract_strided_slice %9 {offsets = [2, 32], sizes = [16, 512], strides = [1, 1]} : vector<20x640xf32> to vector<16x512xf32>
    %67 = vector.extract_strided_slice %11 {offsets = [11, 0], sizes = [1, 512], strides = [1, 1]} : vector<25x512xf32> to vector<1x512xf32>
    %68 = vector.broadcast %67 : vector<1x512xf32> to vector<16x512xf32>
    %69 = arith.mulf %66, %68 : vector<16x512xf32>
    %70 = arith.addf %65, %69 : vector<16x512xf32>
    %71 = vector.extract_strided_slice %9 {offsets = [2, 64], sizes = [16, 512], strides = [1, 1]} : vector<20x640xf32> to vector<16x512xf32>
    %72 = vector.extract_strided_slice %11 {offsets = [12, 0], sizes = [1, 512], strides = [1, 1]} : vector<25x512xf32> to vector<1x512xf32>
    %73 = vector.broadcast %72 : vector<1x512xf32> to vector<16x512xf32>
    %74 = arith.mulf %71, %73 : vector<16x512xf32>
    %75 = arith.addf %70, %74 : vector<16x512xf32>
    %76 = vector.extract_strided_slice %9 {offsets = [2, 96], sizes = [16, 512], strides = [1, 1]} : vector<20x640xf32> to vector<16x512xf32>
    %77 = vector.extract_strided_slice %11 {offsets = [13, 0], sizes = [1, 512], strides = [1, 1]} : vector<25x512xf32> to vector<1x512xf32>
    %78 = vector.broadcast %77 : vector<1x512xf32> to vector<16x512xf32>
    %79 = arith.mulf %76, %78 : vector<16x512xf32>
    %80 = arith.addf %75, %79 : vector<16x512xf32>
    %81 = vector.extract_strided_slice %9 {offsets = [2, 128], sizes = [16, 512], strides = [1, 1]} : vector<20x640xf32> to vector<16x512xf32>
    %82 = vector.extract_strided_slice %11 {offsets = [14, 0], sizes = [1, 512], strides = [1, 1]} : vector<25x512xf32> to vector<1x512xf32>
    %83 = vector.broadcast %82 : vector<1x512xf32> to vector<16x512xf32>
    %84 = arith.mulf %81, %83 : vector<16x512xf32>
    %85 = arith.addf %80, %84 : vector<16x512xf32>
    %86 = vector.extract_strided_slice %9 {offsets = [3, 0], sizes = [16, 512], strides = [1, 1]} : vector<20x640xf32> to vector<16x512xf32>
    %87 = vector.extract_strided_slice %11 {offsets = [15, 0], sizes = [1, 512], strides = [1, 1]} : vector<25x512xf32> to vector<1x512xf32>
    %88 = vector.broadcast %87 : vector<1x512xf32> to vector<16x512xf32>
    %89 = arith.mulf %86, %88 : vector<16x512xf32>
    %90 = arith.addf %85, %89 : vector<16x512xf32>
    %91 = vector.extract_strided_slice %9 {offsets = [3, 32], sizes = [16, 512], strides = [1, 1]} : vector<20x640xf32> to vector<16x512xf32>
    %92 = vector.extract_strided_slice %11 {offsets = [16, 0], sizes = [1, 512], strides = [1, 1]} : vector<25x512xf32> to vector<1x512xf32>
    %93 = vector.broadcast %92 : vector<1x512xf32> to vector<16x512xf32>
    %94 = arith.mulf %91, %93 : vector<16x512xf32>
    %95 = arith.addf %90, %94 : vector<16x512xf32>
    %96 = vector.extract_strided_slice %9 {offsets = [3, 64], sizes = [16, 512], strides = [1, 1]} : vector<20x640xf32> to vector<16x512xf32>
    %97 = vector.extract_strided_slice %11 {offsets = [17, 0], sizes = [1, 512], strides = [1, 1]} : vector<25x512xf32> to vector<1x512xf32>
    %98 = vector.broadcast %97 : vector<1x512xf32> to vector<16x512xf32>
    %99 = arith.mulf %96, %98 : vector<16x512xf32>
    %100 = arith.addf %95, %99 : vector<16x512xf32>
    %101 = vector.extract_strided_slice %9 {offsets = [3, 96], sizes = [16, 512], strides = [1, 1]} : vector<20x640xf32> to vector<16x512xf32>
    %102 = vector.extract_strided_slice %11 {offsets = [18, 0], sizes = [1, 512], strides = [1, 1]} : vector<25x512xf32> to vector<1x512xf32>
    %103 = vector.broadcast %102 : vector<1x512xf32> to vector<16x512xf32>
    %104 = arith.mulf %101, %103 : vector<16x512xf32>
    %105 = arith.addf %100, %104 : vector<16x512xf32>
    %106 = vector.extract_strided_slice %9 {offsets = [3, 128], sizes = [16, 512], strides = [1, 1]} : vector<20x640xf32> to vector<16x512xf32>
    %107 = vector.extract_strided_slice %11 {offsets = [19, 0], sizes = [1, 512], strides = [1, 1]} : vector<25x512xf32> to vector<1x512xf32>
    %108 = vector.broadcast %107 : vector<1x512xf32> to vector<16x512xf32>
    %109 = arith.mulf %106, %108 : vector<16x512xf32>
    %110 = arith.addf %105, %109 : vector<16x512xf32>
    %111 = vector.extract_strided_slice %9 {offsets = [4, 0], sizes = [16, 512], strides = [1, 1]} : vector<20x640xf32> to vector<16x512xf32>
    %112 = vector.extract_strided_slice %11 {offsets = [20, 0], sizes = [1, 512], strides = [1, 1]} : vector<25x512xf32> to vector<1x512xf32>
    %113 = vector.broadcast %112 : vector<1x512xf32> to vector<16x512xf32>
    %114 = arith.mulf %111, %113 : vector<16x512xf32>
    %115 = arith.addf %110, %114 : vector<16x512xf32>
    %116 = vector.extract_strided_slice %9 {offsets = [4, 32], sizes = [16, 512], strides = [1, 1]} : vector<20x640xf32> to vector<16x512xf32>
    %117 = vector.extract_strided_slice %11 {offsets = [21, 0], sizes = [1, 512], strides = [1, 1]} : vector<25x512xf32> to vector<1x512xf32>
    %118 = vector.broadcast %117 : vector<1x512xf32> to vector<16x512xf32>
    %119 = arith.mulf %116, %118 : vector<16x512xf32>
    %120 = arith.addf %115, %119 : vector<16x512xf32>
    %121 = vector.extract_strided_slice %9 {offsets = [4, 64], sizes = [16, 512], strides = [1, 1]} : vector<20x640xf32> to vector<16x512xf32>
    %122 = vector.extract_strided_slice %11 {offsets = [22, 0], sizes = [1, 512], strides = [1, 1]} : vector<25x512xf32> to vector<1x512xf32>
    %123 = vector.broadcast %122 : vector<1x512xf32> to vector<16x512xf32>
    %124 = arith.mulf %121, %123 : vector<16x512xf32>
    %125 = arith.addf %120, %124 : vector<16x512xf32>
    %126 = vector.extract_strided_slice %9 {offsets = [4, 96], sizes = [16, 512], strides = [1, 1]} : vector<20x640xf32> to vector<16x512xf32>
    %127 = vector.extract_strided_slice %11 {offsets = [23, 0], sizes = [1, 512], strides = [1, 1]} : vector<25x512xf32> to vector<1x512xf32>
    %128 = vector.broadcast %127 : vector<1x512xf32> to vector<16x512xf32>
    %129 = arith.mulf %126, %128 : vector<16x512xf32>
    %130 = arith.addf %125, %129 : vector<16x512xf32>
    %131 = vector.extract_strided_slice %9 {offsets = [4, 128], sizes = [16, 512], strides = [1, 1]} : vector<20x640xf32> to vector<16x512xf32>
    %132 = vector.extract_strided_slice %11 {offsets = [24, 0], sizes = [1, 512], strides = [1, 1]} : vector<25x512xf32> to vector<1x512xf32>
    %133 = vector.broadcast %132 : vector<1x512xf32> to vector<16x512xf32>
    %134 = arith.mulf %131, %133 : vector<16x512xf32>
    %135 = arith.addf %130, %134 : vector<16x512xf32>
    %c0_12 = arith.constant 0 : index
    %c0_13 = arith.constant 0 : index
    %c0_14 = arith.constant 0 : index
    %136 = vector.load %arg6[%c0_12, %c0_13, %c0_14] : memref<1x1x512xf32, #tpu.memory_space<vmem>>, vector<1x1x512xf32>
    %137 = vector.shape_cast %136 : vector<1x1x512xf32> to vector<1x512xf32>
    %138 = vector.broadcast %137 : vector<1x512xf32> to vector<16x512xf32>
    %139 = arith.addf %135, %138 : vector<16x512xf32>
    %140 = arith.truncf %139 : vector<16x512xf32> to vector<16x512xbf16>
    %c0_15 = arith.constant 0 : index
    %c0_16 = arith.constant 0 : index
    %141 = vector.load %arg7[%c0_15, %c0_16] : memref<512x512xbf16, #tpu.memory_space<vmem>>, vector<512x512xbf16>
    %cst_17 = arith.constant dense<0.000000e+00> : vector<16x512xf32>
    %142 = tpu.matmul %140, %141, %cst_17 {dimension_numbers = #tpu.dot_dimension_numbers<[1], [0], [0], [1], [0, 0, 1, 1], [], []>} : vector<16x512xbf16>, vector<512x512xbf16>, vector<16x512xf32> -> vector<16x512xf32>
    %c0_18 = arith.constant 0 : index
    %c0_19 = arith.constant 0 : index
    %143 = vector.load %arg8[%c0_18, %c0_19] : memref<1x512xf32, #tpu.memory_space<vmem>>, vector<1x512xf32>
    %144 = vector.broadcast %143 : vector<1x512xf32> to vector<16x512xf32>
    %145 = arith.addf %142, %144 : vector<16x512xf32>
    %c0_20 = arith.constant 0 : index
    %c0_21 = arith.constant 0 : index
    %c0_22 = arith.constant 0 : index
    %c0_23 = arith.constant 0 : index
    %146 = vector.load %arg9[%c0_20, %c0_21, %c0_22, %c0_23] : memref<1x1x16x512xf32, #tpu.memory_space<vmem>>, vector<1x1x16x512xf32>
    %147 = vector.shape_cast %146 : vector<1x1x16x512xf32> to vector<16x512xf32>
    %148 = vector.shape_cast %145 : vector<16x512xf32> to vector<1x1x16x512xf32>
    tpu.vector_store %arg9[%c0_20, %c0_21, %c0_22, %c0_23], %148 {strides = array<i32>} : memref<1x1x16x512xf32, #tpu.memory_space<vmem>>, vector<1x1x16x512xf32>,
    return
  }
  func.func @transform_0(%arg0: i32, %arg1: i32) -> (i32, i32, i32, i32) {
    %c0_i32 = arith.constant 0 : i32
    %c0_i32_0 = arith.constant 0 : i32
    %c0_i32_1 = arith.constant 0 : i32
    return %arg0, %arg1, %c0_i32, %c0_i32_0 : i32, i32, i32, i32
  }
  func.func @transform_1(%arg0: i32, %arg1: i32) -> (i32, i32, i32) {
    %c0_i32 = arith.constant 0 : i32
    %c0_i32_0 = arith.constant 0 : i32
    %c0_i32_1 = arith.constant 0 : i32
    return %arg0, %c0_i32, %c0_i32_0 : i32, i32, i32
  }
  func.func @transform_2(%arg0: i32, %arg1: i32) -> (i32, i32, i32) {
    %c0_i32 = arith.constant 0 : i32
    %c0_i32_0 = arith.constant 0 : i32
    %c0_i32_1 = arith.constant 0 : i32
    return %arg0, %c0_i32, %c0_i32_0 : i32, i32, i32
  }
  func.func @transform_3(%arg0: i32, %arg1: i32) -> (i32, i32, i32) {
    %c0_i32 = arith.constant 0 : i32
    %c0_i32_0 = arith.constant 0 : i32
    %c0_i32_1 = arith.constant 0 : i32
    return %arg0, %c0_i32, %c0_i32_0 : i32, i32, i32
  }
  func.func @transform_4(%arg0: i32, %arg1: i32) -> (i32, i32, i32) {
    %c0_i32 = arith.constant 0 : i32
    %c0_i32_0 = arith.constant 0 : i32
    %c0_i32_1 = arith.constant 0 : i32
    return %arg0, %c0_i32, %c0_i32_0 : i32, i32, i32
  }
  func.func @transform_5(%arg0: i32, %arg1: i32) -> (i32, i32) {
    %c0_i32 = arith.constant 0 : i32
    %c0_i32_0 = arith.constant 0 : i32
    %c0_i32_1 = arith.constant 0 : i32
    return %c0_i32, %c0_i32_0 : i32, i32
  }
  func.func @transform_6(%arg0: i32, %arg1: i32) -> (i32, i32) {
    %c0_i32 = arith.constant 0 : i32
    %c0_i32_0 = arith.constant 0 : i32
    %c0_i32_1 = arith.constant 0 : i32
    return %c0_i32, %c0_i32_0 : i32, i32
  }
  func.func @transform_7(%arg0: i32, %arg1: i32) -> (i32, i32, i32, i32) {
    %c0_i32 = arith.constant 0 : i32
    %c0_i32_0 = arith.constant 0 : i32
    %c0_i32_1 = arith.constant 0 : i32
    return %arg0, %arg1, %c0_i32, %c0_i32_0 : i32, i32, i32, i32
  }
}

</mosaic_0001>

<llo_original>
// kernel: tile.38
$region0: #{tile.38}
  #allocation0 [shape = 's32[1]{0}', space=sflag, size = 0x4, scoped, tag = 'scoped memory for tile.38']
  %s0 = inlined_call_operand.vmem [shape: f32[32], index: 0, kind: input, shape index: {}]
  %s1 = inlined_call_operand.vmem [shape: f32[20,32], index: 1, kind: output, shape index: {}]
  // Predicated region
  $region2: #{tile.38} parent=0 // pred_check
    _
  $region3: #{tile.38} parent=0 // pred_check_branch
    %3 = sbr.rel (0) target = $region5
  $region4: #{tile.38} parent=0 // pred_region
    _
  $region5: #{tile.38} parent=0 // pred_fallthru
    _
  %v4 = vld [vmem:[%s0] ss:$0 sm:$0xff]
  %5 = vst [vmem:[%s1] sm:$0xff] %v4
  %s6 = scalar_lea.vmem %s1, 8
  %7 = vst [vmem:[%s6] sm:$0xff] %v4
  %s8 = scalar_lea.vmem %s1, 16
  %9 = vst [vmem:[%s8] sm:$0xff] %v4

// kernel: tile.43
$region0: #{tile.43}
  %s0 = inlined_call_operand.vmem [shape: f32[20,32], index: 0, kind: input, shape index: {}]
  %s1 = inlined_call_operand.vmem [shape: f32[1,640], index: 1, kind: output, shape index: {}]
  $region1: #{tile.43} parent=0
    #allocation0 [shape = 'u8[20480]{0}', space=vmem, size = 0x5000, scoped, tag = 'scoped mem for output reshape']
    %v2 = vld [vmem:[%s0] ss:$4 sm:$0x1f]
    %vm3 = vcmask 261120
    %4 = vst.msk [vmem:[#allocation0] ss:$8 sm:$0xf] %vm3, %v2
    %s5 = scalar_lea.vmem [#allocation0], 28
    %6 = vst.msk [vmem:[%s5] sm:$0x10] %vm3, %v2
    %s7 = scalar_lea.vmem %s0, 3
    %v8 = vld [vmem:[%s7] ss:$4 sm:$0x1f]
    %9 = vrot.lane.b32.xlu0 %v8, 96
    %v10 = vpop.permute.xlu0 %9
    %vm11 = vcmask 1048320
    %12 = vst.msk [vmem:[#allocation0] ss:$8 sm:$0xf] %vm11, %v10
    %s13 = scalar_lea.vmem [#allocation0], 28
    %14 = vst.msk [vmem:[%s13] sm:$0x10] %vm11, %v10
    %s15 = scalar_lea.vmem %s0, 2
    %v16 = vld [vmem:[%s15] ss:$4 sm:$0x1f]
    %17 = vrot.lane.b32.xlu0 %v16, 64
    %v18 = vpop.permute.xlu0 %17
    %vm19 = vcmask 785920
    %20 = vst.msk [vmem:[#allocation0] ss:$8 sm:$0xf] %vm19, %v18
    %s21 = scalar_lea.vmem [#allocation0], 28
    %22 = vst.msk [vmem:[%s21] sm:$0x10] %vm19, %v18
    %s23 = scalar_lea.vmem %s0, 1
    %v24 = vld [vmem:[%s23] ss:$4 sm:$0x1f]
    %25 = vrot.lane.b32.xlu0 %v24, 32
    %v26 = vpop.permute.xlu0 %25
    %vm27 = vcmask 523520
    %28 = vst.msk [vmem:[#allocation0] ss:$8 sm:$0xf] %vm27, %v26
    %s29 = scalar_lea.vmem [#allocation0], 28
    %30 = vst.msk [vmem:[%s29] sm:$0x10] %vm27, %v26
    %s32 = sshllo.u32 0, 1
    %v34 = vld [vmem:[#allocation0] sm:%s32]
    %s35 = sshllo.u32 0, 1
    %36 = vst [vmem:[%s1] sm:%s35] %v34
    %s37 = scalar_lea.vmem [#allocation0], 8
    %v38 = vld [vmem:[%s37] sm:%s32]
    %s39 = sshllo.u32 0, 1
    %s40 = scalar_lea.vmem %s1, 1
    %41 = vst [vmem:[%s40] sm:%s39] %v38
    %s42 = scalar_lea.vmem [#allocation0], 16
    %v43 = vld [vmem:[%s42] sm:%s32]
    %s44 = sshllo.u32 0, 1
    %s45 = smul.addr 1, 2
    %s46 = scalar_lea.vmem %s1, %s45
    %47 = vst [vmem:[%s46] sm:%s44] %v43
    %s48 = scalar_lea.vmem [#allocation0], 24
    %v49 = vld [vmem:[%s48] sm:%s32]
    %s50 = sshllo.u32 0, 1
    %s51 = smul.addr 1, 3
    %s52 = scalar_lea.vmem %s1, %s51
    %53 = vst [vmem:[%s52] sm:%s50] %v49
    %s54 = scalar_lea.vmem [#allocation0], 32
    %v55 = vld [vmem:[%s54] sm:%s32]
    %s56 = sshllo.u32 0, 1
    %s57 = smul.addr 1, 4
    %s58 = scalar_lea.vmem %s1, %s57
    %59 = vst [vmem:[%s58] sm:%s56] %v55

// kernel: tile.58
$region0: #{tile.58}
  #allocation0 [shape = 's32[1]{0}', space=sflag, size = 0x4, scoped, tag = 'scoped memory for tile.58']
  %s0 = inlined_call_operand.vmem [shape: f32[32], index: 0, kind: input, shape index: {}]
  %s1 = inlined_call_operand.vmem [shape: f32[16,32], index: 1, kind: output, shape index: {}]
  // Predicated region
  $region2: #{tile.58} parent=0 // pred_check
    _
  $region3: #{tile.58} parent=0 // pred_check_branch
    %3 = sbr.rel (0) target = $region5
  $region4: #{tile.58} parent=0 // pred_region
    _
  $region5: #{tile.58} parent=0 // pred_fallthru
    _
  %v4 = vld [vmem:[%s0] ss:$0 sm:$0xff]
  %5 = vst [vmem:[%s1] sm:$0xff] %v4
  %s6 = scalar_lea.vmem %s1, 8
  %7 = vst [vmem:[%s6] sm:$0xff] %v4

// kernel: tile.63
$region0: #{tile.63}
  %s0 = inlined_call_operand.vmem [shape: f32[16,32], index: 0, kind: input, shape index: {}]
  %s1 = inlined_call_operand.vmem [shape: f32[1,512], index: 1, kind: output, shape index: {}]
  $region1: #{tile.63} parent=0
    #allocation0 [shape = 'u8[16384]{0}', space=vmem, size = 0x4000, scoped, tag = 'scoped mem for output reshape']
    %v2 = vld [vmem:[%s0] ss:$4 sm:$0xf]
    %vm3 = vcmask 261120
    %4 = vst.msk [vmem:[#allocation0] ss:$8 sm:$0xf] %vm3, %v2
    %s5 = scalar_lea.vmem %s0, 3
    %v6 = vld [vmem:[%s5] ss:$4 sm:$0xf]
    %7 = vrot.lane.b32.xlu0 %v6, 96
    %v8 = vpop.permute.xlu0 %7
    %vm9 = vcmask 1048320
    %10 = vst.msk [vmem:[#allocation0] ss:$8 sm:$0xf] %vm9, %v8
    %s11 = scalar_lea.vmem %s0, 2
    %v12 = vld [vmem:[%s11] ss:$4 sm:$0xf]
    %13 = vrot.lane.b32.xlu0 %v12, 64
    %v14 = vpop.permute.xlu0 %13
    %vm15 = vcmask 785920
    %16 = vst.msk [vmem:[#allocation0] ss:$8 sm:$0xf] %vm15, %v14
    %s17 = scalar_lea.vmem %s0, 1
    %v18 = vld [vmem:[%s17] ss:$4 sm:$0xf]
    %19 = vrot.lane.b32.xlu0 %v18, 32
    %v20 = vpop.permute.xlu0 %19
    %vm21 = vcmask 523520
    %22 = vst.msk [vmem:[#allocation0] ss:$8 sm:$0xf] %vm21, %v20
    %s24 = sshllo.u32 0, 1
    %v26 = vld [vmem:[#allocation0] sm:%s24]
    %s27 = sshllo.u32 0, 1
    %28 = vst [vmem:[%s1] sm:%s27] %v26
    %s29 = scalar_lea.vmem [#allocation0], 8
    %v30 = vld [vmem:[%s29] sm:%s24]
    %s31 = sshllo.u32 0, 1
    %s32 = scalar_lea.vmem %s1, 1
    %33 = vst [vmem:[%s32] sm:%s31] %v30
    %s34 = scalar_lea.vmem [#allocation0], 16
    %v35 = vld [vmem:[%s34] sm:%s24]
    %s36 = sshllo.u32 0, 1
    %s37 = smul.addr 1, 2
    %s38 = scalar_lea.vmem %s1, %s37
    %39 = vst [vmem:[%s38] sm:%s36] %v35
    %s40 = scalar_lea.vmem [#allocation0], 24
    %v41 = vld [vmem:[%s40] sm:%s24]
    %s42 = sshllo.u32 0, 1
    %s43 = smul.addr 1, 3
    %s44 = scalar_lea.vmem %s1, %s43
    %45 = vst [vmem:[%s44] sm:%s42] %v41

// kernel: cross_attention_forward.1
$region0: #{cross_attention_forward.1}
  #allocation0 [shape = 'u32[]', space=smem, size = 0x4, offset = 0x4, fixed_abs, tag = 'smem constant byte address 0x4 - core index']
  #allocation1 [shape = 'u32[144,128]{1,0:T(1,128)}', space=vmem, size = 0x12000, scoped, tag = 'internal scratch']
  %s0 = inlined_call_operand.vmem [shape: f32[2,2,20,640], index: 0, kind: input, shape index: {}]
  %s1 = inlined_call_operand.vmem [shape: bf16[2,640,640], index: 1, kind: input, shape index: {}]
  %s2 = inlined_call_operand.vmem [shape: f32[2,1,640], index: 2, kind: input, shape index: {}]
  %s3 = inlined_call_operand.vmem [shape: f32[2,25,512], index: 3, kind: input, shape index: {}]
  %s4 = inlined_call_operand.vmem [shape: f32[2,1,512], index: 4, kind: input, shape index: {}]
  %s5 = inlined_call_operand.vmem [shape: bf16[512,512], index: 5, kind: input, shape index: {}]
  %s6 = inlined_call_operand.vmem [shape: f32[1,512], index: 6, kind: input, shape index: {}]
  %s7 = inlined_call_operand.vmem [shape: f32[2,2,16,512], index: 7, kind: output, shape index: {}]
  %s8 = sld [smem:[#allocation0]]
  $region61: #{cross_attention_forward.1} parent=0
    _
  %s10 = ssub.s32 1, %s8
  %s11 = scalar_select 0, %s10, %s8
  loop: start=0, step=1, limit=6
  $region2: #{cross_attention_forward.1} parent=0 // loop_pre_header
    _
  $region3: #{cross_attention_forward.1} parent=0 // loop_header
    %s13 = sphi 0, %s17
    %p14 = scmp.ge.s32.totalorder %s13, 6
    %s20 = sphi 0, %s32
    %s21 = sphi 0, %s28
    %s22 = sphi 0, %s20
    %s23 = sphi 0, %s21
    %s24 = sphi 0, %s22
    %s25 = sphi 0, %s23
    %s37 = sphi 0, %s39
    %s40 = sphi 0, %s37
    %s41 = sphi 0, %s40
    %s57 = sphi 0, %s41
    %s63 = sphi 0, %s65
    %s66 = sphi 0, %s63
    %s67 = sphi 0, %s66
    %s83 = sphi 0, %s67
    %s89 = sphi 0, %s91
    %s92 = sphi 0, %s89
    %s93 = sphi 0, %s92
    %s109 = sphi 0, %s93
    %s115 = sphi 0, %s117
    %s118 = sphi 0, %s115
    %s119 = sphi 0, %s118
    %s135 = sphi 0, %s119
    %s141 = sphi 0, %s143
    %s144 = sphi 0, %s141
    %s145 = sphi 0, %s144
    %s161 = sphi 0, %s145
    %s165 = sphi 0, %s165
    %s167 = sphi 0, %s165
    %s168 = sphi 0, %s167
    %s182 = sphi 0, %s168
    %s186 = sphi 0, %s186
    %s188 = sphi 0, %s186
    %s189 = sphi 0, %s188
    %s203 = sphi 0, %s189
    %s211 = sphi 0, %s213
    %s214 = sphi 0, %s211
    %s215 = sphi 0, %s214
    %s231 = sphi 0, %s215
  $region4: #{cross_attention_forward.1} parent=0 // loop_header_branch
    %16 = sbr.rel (%p14) target = $region8
  $region5: #{cross_attention_forward.1} parent=0 // loop_body
    %s18 = ssub.s32 %s13, 1
    %s19 = ssub.s32 %s13, 2
    %s26 = sadd.s32 1, %s21
    %p27 = scmp.ge.s32.totalorder %s26, 2
    %s28 = scalar_select %p27, 0, %s26
    %s29 = sadd.s32 1, %s20
    %s30 = scalar_select %p27, %s29, %s20
    %p31 = scmp.ge.s32.totalorder %s30, 2
    %s32 = scalar_select %p31, 0, %s30
    %s33 = ssub.s32 %s20, %s32
    %s34 = ssub.s32 %s21, %s28
    %s35 = sor.u32 %s33, %s34
    %p36 = scmp.eq.s32.totalorder %s35, 0
    %s38 = sadd.s32 %s37, 1
    %s39 = scalar_select %p36, %s37, %s38
    %p42 = pneg %p36
    %p43 = scmp.eq.s32.totalorder %s13, 3
    %p44 = por %p42, %p43
    %p45 = scmp.ne.s32.totalorder %s37, %s40
    %p46 = scmp.eq.s32.totalorder %s13, 0
    %p47 = por %p45, %p46
    %p48 = scmp.ne.s32.totalorder %s37, %s40
    %p49 = scmp.eq.s32.totalorder %s18, 3
    %p50 = por %p48, %p49
    %p51 = scmp.ne.s32.totalorder %s40, %s41
    %p52 = scmp.eq.s32.totalorder %s18, 0
    %p53 = por %p51, %p52
    %p54 = scmp.ne.s32.totalorder %s40, %s41
    %p55 = scmp.eq.s32.totalorder %s19, 3
    %p56 = por %p54, %p55
    %p58 = scmp.ne.s32.totalorder %s41, %s57
    %p59 = scmp.eq.s32.totalorder %s19, 0
    %p60 = por %p58, %p59
    %s61 = ssub.s32 %s20, %s32
    %p62 = scmp.eq.s32.totalorder %s61, 0
    %s64 = sadd.s32 %s63, 1
    %s65 = scalar_select %p62, %s63, %s64
    %p68 = pneg %p62
    %p69 = scmp.eq.s32.totalorder %s13, 3
    %p70 = por %p68, %p69
    %p71 = scmp.ne.s32.totalorder %s63, %s66
    %p72 = scmp.eq.s32.totalorder %s13, 0
    %p73 = por %p71, %p72
    %p74 = scmp.ne.s32.totalorder %s63, %s66
    %p75 = scmp.eq.s32.totalorder %s18, 3
    %p76 = por %p74, %p75
    %p77 = scmp.ne.s32.totalorder %s66, %s67
    %p78 = scmp.eq.s32.totalorder %s18, 0
    %p79 = por %p77, %p78
    %p80 = scmp.ne.s32.totalorder %s66, %s67
    %p81 = scmp.eq.s32.totalorder %s19, 3
    %p82 = por %p80, %p81
    %p84 = scmp.ne.s32.totalorder %s67, %s83
    %p85 = scmp.eq.s32.totalorder %s19, 0
    %p86 = por %p84, %p85
    %s87 = ssub.s32 %s20, %s32
    %p88 = scmp.eq.s32.totalorder %s87, 0
    %s90 = sadd.s32 %s89, 1
    %s91 = scalar_select %p88, %s89, %s90
    %p94 = pneg %p88
    %p95 = scmp.eq.s32.totalorder %s13, 3
    %p96 = por %p94, %p95
    %p97 = scmp.ne.s32.totalorder %s89, %s92
    %p98 = scmp.eq.s32.totalorder %s13, 0
    %p99 = por %p97, %p98
    %p100 = scmp.ne.s32.totalorder %s89, %s92
    %p101 = scmp.eq.s32.totalorder %s18, 3
    %p102 = por %p100, %p101
    %p103 = scmp.ne.s32.totalorder %s92, %s93
    %p104 = scmp.eq.s32.totalorder %s18, 0
    %p105 = por %p103, %p104
    %p106 = scmp.ne.s32.totalorder %s92, %s93
    %p107 = scmp.eq.s32.totalorder %s19, 3
    %p108 = por %p106, %p107
    %p110 = scmp.ne.s32.totalorder %s93, %s109
    %p111 = scmp.eq.s32.totalorder %s19, 0
    %p112 = por %p110, %p111
    %s113 = ssub.s32 %s20, %s32
    %p114 = scmp.eq.s32.totalorder %s113, 0
    %s116 = sadd.s32 %s115, 1
    %s117 = scalar_select %p114, %s115, %s116
    %p120 = pneg %p114
    %p121 = scmp.eq.s32.totalorder %s13, 3
    %p122 = por %p120, %p121
    %p123 = scmp.ne.s32.totalorder %s115, %s118
    %p124 = scmp.eq.s32.totalorder %s13, 0
    %p125 = por %p123, %p124
    %p126 = scmp.ne.s32.totalorder %s115, %s118
    %p127 = scmp.eq.s32.totalorder %s18, 3
    %p128 = por %p126, %p127
    %p129 = scmp.ne.s32.totalorder %s118, %s119
    %p130 = scmp.eq.s32.totalorder %s18, 0
    %p131 = por %p129, %p130
    %p132 = scmp.ne.s32.totalorder %s118, %s119
    %p133 = scmp.eq.s32.totalorder %s19, 3
    %p134 = por %p132, %p133
    %p136 = scmp.ne.s32.totalorder %s119, %s135
    %p137 = scmp.eq.s32.totalorder %s19, 0
    %p138 = por %p136, %p137
    %s139 = ssub.s32 %s20, %s32
    %p140 = scmp.eq.s32.totalorder %s139, 0
    %s142 = sadd.s32 %s141, 1
    %s143 = scalar_select %p140, %s141, %s142
    %p146 = pneg %p140
    %p147 = scmp.eq.s32.totalorder %s13, 3
    %p148 = por %p146, %p147
    %p149 = scmp.ne.s32.totalorder %s141, %s144
    %p150 = scmp.eq.s32.totalorder %s13, 0
    %p151 = por %p149, %p150
    %p152 = scmp.ne.s32.totalorder %s141, %s144
    %p153 = scmp.eq.s32.totalorder %s18, 3
    %p154 = por %p152, %p153
    %p155 = scmp.ne.s32.totalorder %s144, %s145
    %p156 = scmp.eq.s32.totalorder %s18, 0
    %p157 = por %p155, %p156
    %p158 = scmp.ne.s32.totalorder %s144, %s145
    %p159 = scmp.eq.s32.totalorder %s19, 3
    %p160 = por %p158, %p159
    %p162 = scmp.ne.s32.totalorder %s145, %s161
    %p163 = scmp.eq.s32.totalorder %s19, 0
    %p164 = por %p162, %p163
    %s166 = sadd.s32 %s165, 1
    %p169 = scmp.eq.s32.totalorder %s13, 3
    %p170 = scmp.ne.s32.totalorder %s165, %s167
    %p171 = scmp.eq.s32.totalorder %s13, 0
    %p172 = por %p170, %p171
    %p173 = scmp.ne.s32.totalorder %s165, %s167
    %p174 = scmp.eq.s32.totalorder %s18, 3
    %p175 = por %p173, %p174
    %p176 = scmp.ne.s32.totalorder %s167, %s168
    %p177 = scmp.eq.s32.totalorder %s18, 0
    %p178 = por %p176, %p177
    %p179 = scmp.ne.s32.totalorder %s167, %s168
    %p180 = scmp.eq.s32.totalorder %s19, 3
    %p181 = por %p179, %p180
    %p183 = scmp.ne.s32.totalorder %s168, %s182
    %p184 = scmp.eq.s32.totalorder %s19, 0
    %p185 = por %p183, %p184
    %s187 = sadd.s32 %s186, 1
    %p190 = scmp.eq.s32.totalorder %s13, 3
    %p191 = scmp.ne.s32.totalorder %s186, %s188
    %p192 = scmp.eq.s32.totalorder %s13, 0
    %p193 = por %p191, %p192
    %p194 = scmp.ne.s32.totalorder %s186, %s188
    %p195 = scmp.eq.s32.totalorder %s18, 3
    %p196 = por %p194, %p195
    %p197 = scmp.ne.s32.totalorder %s188, %s189
    %p198 = scmp.eq.s32.totalorder %s18, 0
    %p199 = por %p197, %p198
    %p200 = scmp.ne.s32.totalorder %s188, %s189
    %p201 = scmp.eq.s32.totalorder %s19, 3
    %p202 = por %p200, %p201
    %p204 = scmp.ne.s32.totalorder %s189, %s203
    %p205 = scmp.eq.s32.totalorder %s19, 0
    %p206 = por %p204, %p205
    %s207 = ssub.s32 %s20, %s32
    %s208 = ssub.s32 %s21, %s28
    %s209 = sor.u32 %s207, %s208
    %p210 = scmp.eq.s32.totalorder %s209, 0
    %s212 = sadd.s32 %s211, 1
    %s213 = scalar_select %p210, %s211, %s212
    %p216 = pneg %p210
    %p217 = scmp.eq.s32.totalorder %s13, 3
    %p218 = por %p216, %p217
    %p219 = scmp.ne.s32.totalorder %s211, %s214
    %p220 = scmp.eq.s32.totalorder %s13, 0
    %p221 = por %p219, %p220
    %p222 = scmp.ne.s32.totalorder %s211, %s214
    %p223 = scmp.eq.s32.totalorder %s18, 3
    %p224 = por %p222, %p223
    %p225 = scmp.ne.s32.totalorder %s214, %s215
    %p226 = scmp.eq.s32.totalorder %s18, 0
    %p227 = por %p225, %p226
    %p228 = scmp.ne.s32.totalorder %s214, %s215
    %p229 = scmp.eq.s32.totalorder %s19, 3
    %p230 = por %p228, %p229
    %p232 = scmp.ne.s32.totalorder %s215, %s231
    %p233 = scmp.eq.s32.totalorder %s19, 0
    %p234 = por %p232, %p233
    %p235 = scmp.le.s32.totalorder 1, %s13
    %p236 = scmp.lt.s32.totalorder %s13, 5
    %p237 = pnand %p235, %p236
    %p238 = pneg %p237
    // Predicated region
    $region9: #{cross_attention_forward.1} parent=5 // pred_check
      _
    $region10: #{cross_attention_forward.1} parent=5 // pred_check_branch
      %240 = sbr.rel (%p237) target = $region12
    $region11: #{cross_attention_forward.1} parent=5 // pred_region
      %s241 = ssub.s32 %s13, 1
      // Predicated region
      $region13: #{cross_attention_forward.1} parent=11 // pred_check
        %p242 = pneg %p178
      $region14: #{cross_attention_forward.1} parent=11 // pred_check_branch
        %244 = sbr.rel (%p242) target = $region16
      $region15: #{cross_attention_forward.1} parent=11 // pred_region
        _
      $region16: #{cross_attention_forward.1} parent=11 // pred_fallthru
        _
      // Predicated region
      $region17: #{cross_attention_forward.1} parent=11 // pred_check
        %p245 = pneg %p199
      $region18: #{cross_attention_forward.1} parent=11 // pred_check_branch
        %247 = sbr.rel (%p245) target = $region20
      $region19: #{cross_attention_forward.1} parent=11 // pred_region
        _
      $region20: #{cross_attention_forward.1} parent=11 // pred_fallthru
        _
    $region12: #{cross_attention_forward.1} parent=5 // pred_fallthru
      _
    %p248 = scmp.lt.s32.totalorder %s13, 4
    // Predicated region
    $region21: #{cross_attention_forward.1} parent=5 // pred_check
      %p249 = pneg %p248
    $region22: #{cross_attention_forward.1} parent=5 // pred_check_branch
      %251 = sbr.rel (%p249) target = $region24
    $region23: #{cross_attention_forward.1} parent=5 // pred_region
      // Predicated region
      $region25: #{cross_attention_forward.1} parent=23 // pred_check
        %p252 = pneg %p47
      $region26: #{cross_attention_forward.1} parent=23 // pred_check_branch
        %254 = sbr.rel (%p252) target = $region28
      $region27: #{cross_attention_forward.1} parent=23 // pred_region
        %p255 = scmp.lt.s32.totalorder %s20, 1
        %s256 = scalar_select %p255, %s20, 1
        %p257 = scmp.lt.s32.totalorder %s21, 1
        %s258 = scalar_select %p257, %s21, 1
        %s259 = smul.addr %s258, 15
        %s260 = smul.addr %s256, 30
        %s261 = sadd.s32 %s259, %s260
        %s262 = smul.addr %s261, 8
        %s263 = scalar_lea.vmem %s0, %s262
      $region28: #{cross_attention_forward.1} parent=23 // pred_fallthru
        _
      // Predicated region
      $region29: #{cross_attention_forward.1} parent=23 // pred_check
        %p264 = pneg %p73
      $region30: #{cross_attention_forward.1} parent=23 // pred_check_branch
        %266 = sbr.rel (%p264) target = $region32
      $region31: #{cross_attention_forward.1} parent=23 // pred_region
        %p267 = scmp.lt.s32.totalorder %s20, 1
        %s268 = scalar_select %p267, %s20, 1
        %s269 = smul.addr %s268, 400
        %s270 = smul.addr %s269, 4
        %s271 = scalar_lea.vmem %s1, %s270
      $region32: #{cross_attention_forward.1} parent=23 // pred_fallthru
        _
      // Predicated region
      $region33: #{cross_attention_forward.1} parent=23 // pred_check
        %p272 = pneg %p99
      $region34: #{cross_attention_forward.1} parent=23 // pred_check_branch
        %274 = sbr.rel (%p272) target = $region36
      $region35: #{cross_attention_forward.1} parent=23 // pred_region
        %p275 = scmp.lt.s32.totalorder %s20, 1
        %s276 = scalar_select %p275, %s20, 1
        %s277 = smul.addr %s276, 5
        %s278 = scalar_lea.vmem %s2, %s277
      $region36: #{cross_attention_forward.1} parent=23 // pred_fallthru
        _
      // Predicated region
      $region37: #{cross_attention_forward.1} parent=23 // pred_check
        %p279 = pneg %p125
      $region38: #{cross_attention_forward.1} parent=23 // pred_check_branch
        %281 = sbr.rel (%p279) target = $region40
      $region39: #{cross_attention_forward.1} parent=23 // pred_region
        %p282 = scmp.lt.s32.totalorder %s20, 1
        %s283 = scalar_select %p282, %s20, 1
        %s284 = smul.addr %s283, 16
        %s285 = smul.addr %s284, 8
        %s286 = scalar_lea.vmem %s3, %s285
      $region40: #{cross_attention_forward.1} parent=23 // pred_fallthru
        _
      // Predicated region
      $region41: #{cross_attention_forward.1} parent=23 // pred_check
        %p287 = pneg %p151
      $region42: #{cross_attention_forward.1} parent=23 // pred_check_branch
        %289 = sbr.rel (%p287) target = $region44
      $region43: #{cross_attention_forward.1} parent=23 // pred_region
        %p290 = scmp.lt.s32.totalorder %s20, 1
        %s291 = scalar_select %p290, %s20, 1
        %s292 = smul.addr %s291, 4
        %s293 = scalar_lea.vmem %s4, %s292
      $region44: #{cross_attention_forward.1} parent=23 // pred_fallthru
        _
    $region24: #{cross_attention_forward.1} parent=5 // pred_fallthru
      _
    %p294 = scmp.le.s32.totalorder 1, %s13
    %p295 = scmp.lt.s32.totalorder %s13, 5
    %p296 = pnand %p294, %p295
    %p297 = pneg %p296
    // Predicated region
    $region45: #{cross_attention_forward.1} parent=5 // pred_check
      _
    $region46: #{cross_attention_forward.1} parent=5 // pred_check_branch
      %299 = sbr.rel (%p296) target = $region48
    $region47: #{cross_attention_forward.1} parent=5 // pred_region
      %s300 = ssub.s32 %s13, 1
      %p301 = scmp.lt.s32.totalorder %s22, 1
      %s302 = scalar_select %p301, %s22, 1
      %p303 = scmp.lt.s32.totalorder %s23, 1
      %s304 = scalar_select %p303, %s23, 1
      %s305 = smul.addr %s304, 15
      %s306 = smul.addr %s302, 30
      %s307 = sadd.s32 %s305, %s306
      %s308 = smul.addr %s307, 8
      %s309 = scalar_lea.vmem %s0, %s308
      %p310 = pneg %p53
      %p311 = pneg %p50
      %p312 = scmp.lt.s32.totalorder %s22, 1
      %s313 = scalar_select %p312, %s22, 1
      %s314 = smul.addr %s313, 400
      %s315 = smul.addr %s314, 4
      %s316 = scalar_lea.vmem %s1, %s315
      %p317 = pneg %p79
      %p318 = pneg %p76
      %p319 = scmp.lt.s32.totalorder %s22, 1
      %s320 = scalar_select %p319, %s22, 1
      %s321 = smul.addr %s320, 5
      %s322 = scalar_lea.vmem %s2, %s321
      %p323 = pneg %p105
      %p324 = pneg %p102
      %p325 = scmp.lt.s32.totalorder %s22, 1
      %s326 = scalar_select %p325, %s22, 1
      %s327 = smul.addr %s326, 16
      %s328 = smul.addr %s327, 8
      %s329 = scalar_lea.vmem %s3, %s328
      %p330 = pneg %p131
      %p331 = pneg %p128
      %p332 = scmp.lt.s32.totalorder %s22, 1
      %s333 = scalar_select %p332, %s22, 1
      %s334 = smul.addr %s333, 4
      %s335 = scalar_lea.vmem %s4, %s334
      %p336 = pneg %p157
      %p337 = pneg %p154
      %p338 = pneg %p178
      %p339 = pneg %p175
      %p340 = pneg %p199
      %p341 = pneg %p196
      %p342 = pneg %p227
      %p343 = pneg %p224
      %p344 = scmp.lt.s32.totalorder %s22, 1
      %s345 = scalar_select %p344, %s22, 1
      %p346 = scmp.lt.s32.totalorder %s23, 1
      %s347 = scalar_select %p346, %s23, 1
      %s348 = smul.addr %s347, 8
      %s349 = smul.addr %s345, 16
      %s350 = sadd.s32 %s348, %s349
      %s351 = smul.addr %s350, 8
      %s352 = scalar_lea.vmem %s7, %s351
      %p353 = scmp.lt.s32.totalorder %s22, 1
      %s354 = scalar_select %p353, %s22, 1
      %p355 = scmp.lt.s32.totalorder %s23, 1
      %s356 = scalar_select %p355, %s23, 1
      %s357 = smul.addr %s356, 15
      %s358 = smul.addr %s354, 30
      %s359 = sadd.s32 %s357, %s358
      %s360 = smul.addr %s359, 8
      %s361 = scalar_lea.vmem %s0, %s360
      %p362 = scmp.lt.s32.totalorder %s22, 1
      %s363 = scalar_select %p362, %s22, 1
      %s364 = smul.addr %s363, 400
      %s365 = smul.addr %s364, 4
      %s366 = scalar_lea.vmem %s1, %s365
      %p367 = scmp.lt.s32.totalorder %s22, 1
      %s368 = scalar_select %p367, %s22, 1
      %s369 = smul.addr %s368, 5
      %s370 = scalar_lea.vmem %s2, %s369
      %p371 = scmp.lt.s32.totalorder %s22, 1
      %s372 = scalar_select %p371, %s22, 1
      %s373 = smul.addr %s372, 16
      %s374 = smul.addr %s373, 8
      %s375 = scalar_lea.vmem %s3, %s374
      %p376 = scmp.lt.s32.totalorder %s22, 1
      %s377 = scalar_select %p376, %s22, 1
      %s378 = smul.addr %s377, 4
      %s379 = scalar_lea.vmem %s4, %s378
      %p380 = scmp.lt.s32.totalorder %s22, 1
      %s381 = scalar_select %p380, %s22, 1
      %p382 = scmp.lt.s32.totalorder %s23, 1
      %s383 = scalar_select %p382, %s23, 1
      %s384 = smul.addr %s383, 8
      %s385 = smul.addr %s381, 16
      %s386 = sadd.s32 %s384, %s385
      %s387 = smul.addr %s386, 8
      %s388 = scalar_lea.vmem %s7, %s387
      %v390 = vld [vmem:[%s361] sm:$0xff]
      %v391 = vld [vmem:[%s361 + $0x8] sm:$0xff]
      %v392 = vld [vmem:[%s361 + $0x10] sm:$0xff]
      %v393 = vld [vmem:[%s361 + $0x18] sm:$0xff]
      %v394 = vld [vmem:[%s361 + $0x20] sm:$0xff]
      %v395 = vld [vmem:[%s361 + $0x28] sm:$0xff]
      %v396 = vld [vmem:[%s361 + $0x30] sm:$0xff]
      %v397 = vld [vmem:[%s361 + $0x38] sm:$0xff]
      %v398 = vld [vmem:[%s361 + $0x40] sm:$0xff]
      %v399 = vld [vmem:[%s361 + $0x48] sm:$0xff]
      %v400 = vld [vmem:[%s361 + $0x50] sm:$0xf]
      %v401 = vld [vmem:[%s361 + $0x58] sm:$0xf]
      %v402 = vld [vmem:[%s361 + $0x60] sm:$0xf]
      %v403 = vld [vmem:[%s361 + $0x68] sm:$0xf]
      %v404 = vld [vmem:[%s361 + $0x70] sm:$0xf]
      %v405 = vpack.c.bf16 %v395, %v390
      %v406 = vpack.c.bf16 %v396, %v391
      %v407 = vpack.c.bf16 %v397, %v392
      %v408 = vpack.c.bf16 %v398, %v393
      %v409 = vpack.c.bf16 %v399, %v394
      %v410 = vpack.c.bf16 %v400, %v400
      %v411 = vpack.c.bf16 %v401, %v401
      %v412 = vpack.c.bf16 %v402, %v402
      %v413 = vpack.c.bf16 %v403, %v403
      %v414 = vpack.c.bf16 %v404, %v404
      %v415 = vld [vmem:[%s366] sm:$0xff]
      %v416 = vld [vmem:[%s366 + $0x8] sm:$0xff]
      %v417 = vld [vmem:[%s366 + $0x10] sm:$0xf]
      %v418 = vld [vmem:[%s366 + $0x14] sm:$0xff]
      %v419 = vld [vmem:[%s366 + $0x1c] sm:$0xff]
      %v420 = vld [vmem:[%s366 + $0x24] sm:$0xf]
      %v421 = vld [vmem:[%s366 + $0x28] sm:$0xff]
      %v422 = vld [vmem:[%s366 + $0x30] sm:$0xff]
      %v423 = vld [vmem:[%s366 + $0x38] sm:$0xf]
      %v424 = vld [vmem:[%s366 + $0x3c] sm:$0xff]
      %v425 = vld [vmem:[%s366 + $0x44] sm:$0xff]
      %v426 = vld [vmem:[%s366 + $0x4c] sm:$0xf]
      %v427 = vld [vmem:[%s366 + $0x50] sm:$0xff]
      %v428 = vld [vmem:[%s366 + $0x58] sm:$0xff]
      %v429 = vld [vmem:[%s366 + $0x60] sm:$0xf]
      %v430 = vld [vmem:[%s366 + $0x64] sm:$0xff]
      %v431 = vld [vmem:[%s366 + $0x6c] sm:$0xff]
      %v432 = vld [vmem:[%s366 + $0x74] sm:$0xf]
      %v433 = vld [vmem:[%s366 + $0x78] sm:$0xff]
      %v434 = vld [vmem:[%s366 + $0x80] sm:$0xff]
      %v435 = vld [vmem:[%s366 + $0x88] sm:$0xf]
      %v436 = vld [vmem:[%s366 + $0x8c] sm:$0xff]
      %v437 = vld [vmem:[%s366 + $0x94] sm:$0xff]
      %v438 = vld [vmem:[%s366 + $0x9c] sm:$0xf]
      %v439 = vld [vmem:[%s366 + $0xa0] sm:$0xff]
      %v440 = vld [vmem:[%s366 + $0xa8] sm:$0xff]
      %v441 = vld [vmem:[%s366 + $0xb0] sm:$0xf]
      %v442 = vld [vmem:[%s366 + $0xb4] sm:$0xff]
      %v443 = vld [vmem:[%s366 + $0xbc] sm:$0xff]
      %v444 = vld [vmem:[%s366 + $0xc4] sm:$0xf]
      %v445 = vld [vmem:[%s366 + $0xc8] sm:$0xff]
      %v446 = vld [vmem:[%s366 + $0xd0] sm:$0xff]
      %v447 = vld [vmem:[%s366 + $0xd8] sm:$0xf]
      %v448 = vld [vmem:[%s366 + $0xdc] sm:$0xff]
      %v449 = vld [vmem:[%s366 + $0xe4] sm:$0xff]
      %v450 = vld [vmem:[%s366 + $0xec] sm:$0xf]
      %v451 = vld [vmem:[%s366 + $0xf0] sm:$0xff]
      %v452 = vld [vmem:[%s366 + $0xf8] sm:$0xff]
      %v453 = vld [vmem:[%s366 + $0x100] sm:$0xf]
      %v454 = vld [vmem:[%s366 + $0x104] sm:$0xff]
      %v455 = vld [vmem:[%s366 + $0x10c] sm:$0xff]
      %v456 = vld [vmem:[%s366 + $0x114] sm:$0xf]
      %v457 = vld [vmem:[%s366 + $0x118] sm:$0xff]
      %v458 = vld [vmem:[%s366 + $0x120] sm:$0xff]
      %v459 = vld [vmem:[%s366 + $0x128] sm:$0xf]
      %v460 = vld [vmem:[%s366 + $0x12c] sm:$0xff]
      %v461 = vld [vmem:[%s366 + $0x134] sm:$0xff]
      %v462 = vld [vmem:[%s366 + $0x13c] sm:$0xf]
      %v463 = vld [vmem:[%s366 + $0x140] sm:$0xff]
      %v464 = vld [vmem:[%s366 + $0x148] sm:$0xff]
      %v465 = vld [vmem:[%s366 + $0x150] sm:$0xf]
      %v466 = vld [vmem:[%s366 + $0x154] sm:$0xff]
      %v467 = vld [vmem:[%s366 + $0x15c] sm:$0xff]
      %v468 = vld [vmem:[%s366 + $0x164] sm:$0xf]
      %v469 = vld [vmem:[%s366 + $0x168] sm:$0xff]
      %v470 = vld [vmem:[%s366 + $0x170] sm:$0xff]
      %v471 = vld [vmem:[%s366 + $0x178] sm:$0xf]
      %v472 = vld [vmem:[%s366 + $0x17c] sm:$0xff]
      %v473 = vld [vmem:[%s366 + $0x184] sm:$0xff]
      %v474 = vld [vmem:[%s366 + $0x18c] sm:$0xf]
      %v475 = vld [vmem:[%s366 + $0x190] sm:$0xff]
      %v476 = vld [vmem:[%s366 + $0x198] sm:$0xff]
      %v477 = vld [vmem:[%s366 + $0x1a0] sm:$0xf]
      %v478 = vld [vmem:[%s366 + $0x1a4] sm:$0xff]
      %v479 = vld [vmem:[%s366 + $0x1ac] sm:$0xff]
      %v480 = vld [vmem:[%s366 + $0x1b4] sm:$0xf]
      %v481 = vld [vmem:[%s366 + $0x1b8] sm:$0xff]
      %v482 = vld [vmem:[%s366 + $0x1c0] sm:$0xff]
      %v483 = vld [vmem:[%s366 + $0x1c8] sm:$0xf]
      %v484 = vld [vmem:[%s366 + $0x1cc] sm:$0xff]
      %v485 = vld [vmem:[%s366 + $0x1d4] sm:$0xff]
      %v486 = vld [vmem:[%s366 + $0x1dc] sm:$0xf]
      %v487 = vld [vmem:[%s366 + $0x1e0] sm:$0xff]
      %v488 = vld [vmem:[%s366 + $0x1e8] sm:$0xff]
      %v489 = vld [vmem:[%s366 + $0x1f0] sm:$0xf]
      %v490 = vld [vmem:[%s366 + $0x1f4] sm:$0xff]
      %v491 = vld [vmem:[%s366 + $0x1fc] sm:$0xff]
      %v492 = vld [vmem:[%s366 + $0x204] sm:$0xf]
      %v493 = vld [vmem:[%s366 + $0x208] sm:$0xff]
      %v494 = vld [vmem:[%s366 + $0x210] sm:$0xff]
      %v495 = vld [vmem:[%s366 + $0x218] sm:$0xf]
      %v496 = vld [vmem:[%s366 + $0x21c] sm:$0xff]
      %v497 = vld [vmem:[%s366 + $0x224] sm:$0xff]
      %v498 = vld [vmem:[%s366 + $0x22c] sm:$0xf]
      %v499 = vld [vmem:[%s366 + $0x230] sm:$0xff]
      %v500 = vld [vmem:[%s366 + $0x238] sm:$0xff]
      %v501 = vld [vmem:[%s366 + $0x240] sm:$0xf]
      %v502 = vld [vmem:[%s366 + $0x244] sm:$0xff]
      %v503 = vld [vmem:[%s366 + $0x24c] sm:$0xff]
      %v504 = vld [vmem:[%s366 + $0x254] sm:$0xf]
      %v505 = vld [vmem:[%s366 + $0x258] sm:$0xff]
      %v506 = vld [vmem:[%s366 + $0x260] sm:$0xff]
      %v507 = vld [vmem:[%s366 + $0x268] sm:$0xf]
      %v508 = vld [vmem:[%s366 + $0x26c] sm:$0xff]
      %v509 = vld [vmem:[%s366 + $0x274] sm:$0xff]
      %v510 = vld [vmem:[%s366 + $0x27c] sm:$0xf]
      %v511 = vld [vmem:[%s366 + $0x280] sm:$0xff]
      %v512 = vld [vmem:[%s366 + $0x288] sm:$0xff]
      %v513 = vld [vmem:[%s366 + $0x290] sm:$0xf]
      %v514 = vld [vmem:[%s366 + $0x294] sm:$0xff]
      %v515 = vld [vmem:[%s366 + $0x29c] sm:$0xff]
      %v516 = vld [vmem:[%s366 + $0x2a4] sm:$0xf]
      %v517 = vld [vmem:[%s366 + $0x2a8] sm:$0xff]
      %v518 = vld [vmem:[%s366 + $0x2b0] sm:$0xff]
      %v519 = vld [vmem:[%s366 + $0x2b8] sm:$0xf]
      %v520 = vld [vmem:[%s366 + $0x2bc] sm:$0xff]
      %v521 = vld [vmem:[%s366 + $0x2c4] sm:$0xff]
      %v522 = vld [vmem:[%s366 + $0x2cc] sm:$0xf]
      %v523 = vld [vmem:[%s366 + $0x2d0] sm:$0xff]
      %v524 = vld [vmem:[%s366 + $0x2d8] sm:$0xff]
      %v525 = vld [vmem:[%s366 + $0x2e0] sm:$0xf]
      %v526 = vld [vmem:[%s366 + $0x2e4] sm:$0xff]
      %v527 = vld [vmem:[%s366 + $0x2ec] sm:$0xff]
      %v528 = vld [vmem:[%s366 + $0x2f4] sm:$0xf]
      %v529 = vld [vmem:[%s366 + $0x2f8] sm:$0xff]
      %v530 = vld [vmem:[%s366 + $0x300] sm:$0xff]
      %v531 = vld [vmem:[%s366 + $0x308] sm:$0xf]
      %v532 = vld [vmem:[%s366 + $0x30c] sm:$0xff]
      %v533 = vld [vmem:[%s366 + $0x314] sm:$0xff]
      %v534 = vld [vmem:[%s366 + $0x31c] sm:$0xf]
      %v535 = vld [vmem:[%s366 + $0x320] sm:$0xff]
      %v536 = vld [vmem:[%s366 + $0x328] sm:$0xff]
      %v537 = vld [vmem:[%s366 + $0x330] sm:$0xf]
      %v538 = vld [vmem:[%s366 + $0x334] sm:$0xff]
      %v539 = vld [vmem:[%s366 + $0x33c] sm:$0xff]
      %v540 = vld [vmem:[%s366 + $0x344] sm:$0xf]
      %v541 = vld [vmem:[%s366 + $0x348] sm:$0xff]
      %v542 = vld [vmem:[%s366 + $0x350] sm:$0xff]
      %v543 = vld [vmem:[%s366 + $0x358] sm:$0xf]
      %v544 = vld [vmem:[%s366 + $0x35c] sm:$0xff]
      %v545 = vld [vmem:[%s366 + $0x364] sm:$0xff]
      %v546 = vld [vmem:[%s366 + $0x36c] sm:$0xf]
      %v547 = vld [vmem:[%s366 + $0x370] sm:$0xff]
      %v548 = vld [vmem:[%s366 + $0x378] sm:$0xff]
      %v549 = vld [vmem:[%s366 + $0x380] sm:$0xf]
      %v550 = vld [vmem:[%s366 + $0x384] sm:$0xff]
      %v551 = vld [vmem:[%s366 + $0x38c] sm:$0xff]
      %v552 = vld [vmem:[%s366 + $0x394] sm:$0xf]
      %v553 = vld [vmem:[%s366 + $0x398] sm:$0xff]
      %v554 = vld [vmem:[%s366 + $0x3a0] sm:$0xff]
      %v555 = vld [vmem:[%s366 + $0x3a8] sm:$0xf]
      %v556 = vld [vmem:[%s366 + $0x3ac] sm:$0xff]
      %v557 = vld [vmem:[%s366 + $0x3b4] sm:$0xff]
      %v558 = vld [vmem:[%s366 + $0x3bc] sm:$0xf]
      %v559 = vld [vmem:[%s366 + $0x3c0] sm:$0xff]
      %v560 = vld [vmem:[%s366 + $0x3c8] sm:$0xff]
      %v561 = vld [vmem:[%s366 + $0x3d0] sm:$0xf]
      %v562 = vld [vmem:[%s366 + $0x3d4] sm:$0xff]
      %v563 = vld [vmem:[%s366 + $0x3dc] sm:$0xff]
      %v564 = vld [vmem:[%s366 + $0x3e4] sm:$0xf]
      %v565 = vld [vmem:[%s366 + $0x3e8] sm:$0xff]
      %v566 = vld [vmem:[%s366 + $0x3f0] sm:$0xff]
      %v567 = vld [vmem:[%s366 + $0x3f8] sm:$0xf]
      %v568 = vld [vmem:[%s366 + $0x3fc] sm:$0xff]
      %v569 = vld [vmem:[%s366 + $0x404] sm:$0xff]
      %v570 = vld [vmem:[%s366 + $0x40c] sm:$0xf]
      %v571 = vld [vmem:[%s366 + $0x410] sm:$0xff]
      %v572 = vld [vmem:[%s366 + $0x418] sm:$0xff]
      %v573 = vld [vmem:[%s366 + $0x420] sm:$0xf]
      %v574 = vld [vmem:[%s366 + $0x424] sm:$0xff]
      %v575 = vld [vmem:[%s366 + $0x42c] sm:$0xff]
      %v576 = vld [vmem:[%s366 + $0x434] sm:$0xf]
      %v577 = vld [vmem:[%s366 + $0x438] sm:$0xff]
      %v578 = vld [vmem:[%s366 + $0x440] sm:$0xff]
      %v579 = vld [vmem:[%s366 + $0x448] sm:$0xf]
      %v580 = vld [vmem:[%s366 + $0x44c] sm:$0xff]
      %v581 = vld [vmem:[%s366 + $0x454] sm:$0xff]
      %v582 = vld [vmem:[%s366 + $0x45c] sm:$0xf]
      %v583 = vld [vmem:[%s366 + $0x460] sm:$0xff]
      %v584 = vld [vmem:[%s366 + $0x468] sm:$0xff]
      %v585 = vld [vmem:[%s366 + $0x470] sm:$0xf]
      %v586 = vld [vmem:[%s366 + $0x474] sm:$0xff]
      %v587 = vld [vmem:[%s366 + $0x47c] sm:$0xff]
      %v588 = vld [vmem:[%s366 + $0x484] sm:$0xf]
      %v589 = vld [vmem:[%s366 + $0x488] sm:$0xff]
      %v590 = vld [vmem:[%s366 + $0x490] sm:$0xff]
      %v591 = vld [vmem:[%s366 + $0x498] sm:$0xf]
      %v592 = vld [vmem:[%s366 + $0x49c] sm:$0xff]
      %v593 = vld [vmem:[%s366 + $0x4a4] sm:$0xff]
      %v594 = vld [vmem:[%s366 + $0x4ac] sm:$0xf]
      %v595 = vld [vmem:[%s366 + $0x4b0] sm:$0xff]
      %v596 = vld [vmem:[%s366 + $0x4b8] sm:$0xff]
      %v597 = vld [vmem:[%s366 + $0x4c0] sm:$0xf]
      %v598 = vld [vmem:[%s366 + $0x4c4] sm:$0xff]
      %v599 = vld [vmem:[%s366 + $0x4cc] sm:$0xff]
      %v600 = vld [vmem:[%s366 + $0x4d4] sm:$0xf]
      %v601 = vld [vmem:[%s366 + $0x4d8] sm:$0xff]
      %v602 = vld [vmem:[%s366 + $0x4e0] sm:$0xff]
      %v603 = vld [vmem:[%s366 + $0x4e8] sm:$0xf]
      %v604 = vld [vmem:[%s366 + $0x4ec] sm:$0xff]
      %v605 = vld [vmem:[%s366 + $0x4f4] sm:$0xff]
      %v606 = vld [vmem:[%s366 + $0x4fc] sm:$0xf]
      %v607 = vld [vmem:[%s366 + $0x500] sm:$0xff]
      %v608 = vld [vmem:[%s366 + $0x508] sm:$0xff]
      %v609 = vld [vmem:[%s366 + $0x510] sm:$0xf]
      %v610 = vld [vmem:[%s366 + $0x514] sm:$0xff]
      %v611 = vld [vmem:[%s366 + $0x51c] sm:$0xff]
      %v612 = vld [vmem:[%s366 + $0x524] sm:$0xf]
      %v613 = vld [vmem:[%s366 + $0x528] sm:$0xff]
      %v614 = vld [vmem:[%s366 + $0x530] sm:$0xff]
      %v615 = vld [vmem:[%s366 + $0x538] sm:$0xf]
      %v616 = vld [vmem:[%s366 + $0x53c] sm:$0xff]
      %v617 = vld [vmem:[%s366 + $0x544] sm:$0xff]
      %v618 = vld [vmem:[%s366 + $0x54c] sm:$0xf]
      %v619 = vld [vmem:[%s366 + $0x550] sm:$0xff]
      %v620 = vld [vmem:[%s366 + $0x558] sm:$0xff]
      %v621 = vld [vmem:[%s366 + $0x560] sm:$0xf]
      %v622 = vld [vmem:[%s366 + $0x564] sm:$0xff]
      %v623 = vld [vmem:[%s366 + $0x56c] sm:$0xff]
      %v624 = vld [vmem:[%s366 + $0x574] sm:$0xf]
      %v625 = vld [vmem:[%s366 + $0x578] sm:$0xff]
      %v626 = vld [vmem:[%s366 + $0x580] sm:$0xff]
      %v627 = vld [vmem:[%s366 + $0x588] sm:$0xf]
      %v628 = vld [vmem:[%s366 + $0x58c] sm:$0xff]
      %v629 = vld [vmem:[%s366 + $0x594] sm:$0xff]
      %v630 = vld [vmem:[%s366 + $0x59c] sm:$0xf]
      %v631 = vld [vmem:[%s366 + $0x5a0] sm:$0xff]
      %v632 = vld [vmem:[%s366 + $0x5a8] sm:$0xff]
      %v633 = vld [vmem:[%s366 + $0x5b0] sm:$0xf]
      %v634 = vld [vmem:[%s366 + $0x5b4] sm:$0xff]
      %v635 = vld [vmem:[%s366 + $0x5bc] sm:$0xff]
      %v636 = vld [vmem:[%s366 + $0x5c4] sm:$0xf]
      %v637 = vld [vmem:[%s366 + $0x5c8] sm:$0xff]
      %v638 = vld [vmem:[%s366 + $0x5d0] sm:$0xff]
      %v639 = vld [vmem:[%s366 + $0x5d8] sm:$0xf]
      %v640 = vld [vmem:[%s366 + $0x5dc] sm:$0xff]
      %v641 = vld [vmem:[%s366 + $0x5e4] sm:$0xff]
      %v642 = vld [vmem:[%s366 + $0x5ec] sm:$0xf]
      %v643 = vld [vmem:[%s366 + $0x5f0] sm:$0xff]
      %v644 = vld [vmem:[%s366 + $0x5f8] sm:$0xff]
      %v645 = vld [vmem:[%s366 + $0x600] sm:$0xf]
      %v646 = vld [vmem:[%s366 + $0x604] sm:$0xff]
      %v647 = vld [vmem:[%s366 + $0x60c] sm:$0xff]
      %v648 = vld [vmem:[%s366 + $0x614] sm:$0xf]
      %v649 = vld [vmem:[%s366 + $0x618] sm:$0xff]
      %v650 = vld [vmem:[%s366 + $0x620] sm:$0xff]
      %v651 = vld [vmem:[%s366 + $0x628] sm:$0xf]
      %v652 = vld [vmem:[%s366 + $0x62c] sm:$0xff]
      %v653 = vld [vmem:[%s366 + $0x634] sm:$0xff]
      %v654 = vld [vmem:[%s366 + $0x63c] sm:$0xf]
      %v655 = vld [vmem:[%s370] sm:$0x1f]
      %v657 = vlaneseq
      %v658 = vshrl.u32 %v657, 7
      %v659 = vsub.s32 0, %v658
      %v660 = vrot.slane %v655, %v659
      %v661 = vlaneseq
      %v662 = vshrl.u32 %v661, 7
      %v663 = vsub.s32 1, %v662
      %v664 = vrot.slane %v655, %v663
      %v665 = vlaneseq
      %v666 = vshrl.u32 %v665, 7
      %v667 = vsub.s32 2, %v666
      %v668 = vrot.slane %v655, %v667
      %v669 = vlaneseq
      %v670 = vshrl.u32 %v669, 7
      %v671 = vsub.s32 3, %v670
      %v672 = vrot.slane %v655, %v671
      %v673 = vlaneseq
      %v674 = vshrl.u32 %v673, 7
      %v675 = vsub.s32 4, %v674
      %v676 = vrot.slane %v655, %v675
      %v922 = vunpack.c.l.b16 %v415
      %v923 = vunpack.c.h.b16 %v415
      %v924 = vunpack.c.l.b16 %v416
      %v925 = vunpack.c.h.b16 %v416
      %v926 = vunpack.c.l.b16 %v417
      %v927 = vunpack.c.l.b16 %v418
      %v928 = vunpack.c.h.b16 %v418
      %v929 = vunpack.c.l.b16 %v419
      %v930 = vunpack.c.h.b16 %v419
      %v931 = vunpack.c.l.b16 %v420
      %v932 = vunpack.c.l.b16 %v421
      %v933 = vunpack.c.h.b16 %v421
      %v934 = vunpack.c.l.b16 %v422
      %v935 = vunpack.c.h.b16 %v422
      %v936 = vunpack.c.l.b16 %v423
      %v937 = vunpack.c.l.b16 %v424
      %v938 = vunpack.c.h.b16 %v424
      %v939 = vunpack.c.l.b16 %v425
      %v940 = vunpack.c.h.b16 %v425
      %v941 = vunpack.c.l.b16 %v426
      %v942 = vunpack.c.l.b16 %v427
      %v943 = vunpack.c.h.b16 %v427
      %v944 = vunpack.c.l.b16 %v428
      %v945 = vunpack.c.h.b16 %v428
      %v946 = vunpack.c.l.b16 %v429
      %v947 = vunpack.c.l.b16 %v430
      %v948 = vunpack.c.h.b16 %v430
      %v949 = vunpack.c.l.b16 %v431
      %v950 = vunpack.c.h.b16 %v431
      %v951 = vunpack.c.l.b16 %v432
      %v952 = vunpack.c.l.b16 %v433
      %v953 = vunpack.c.h.b16 %v433
      %v954 = vunpack.c.l.b16 %v434
      %v955 = vunpack.c.h.b16 %v434
      %v956 = vunpack.c.l.b16 %v435
      %v957 = vunpack.c.l.b16 %v436
      %v958 = vunpack.c.h.b16 %v436
      %v959 = vunpack.c.l.b16 %v437
      %v960 = vunpack.c.h.b16 %v437
      %v961 = vunpack.c.l.b16 %v438
      %v962 = vunpack.c.l.b16 %v439
      %v963 = vunpack.c.h.b16 %v439
      %v964 = vunpack.c.l.b16 %v440
      %v965 = vunpack.c.h.b16 %v440
      %v966 = vunpack.c.l.b16 %v441
      %v967 = vunpack.c.l.b16 %v442
      %v968 = vunpack.c.h.b16 %v442
      %v969 = vunpack.c.l.b16 %v443
      %v970 = vunpack.c.h.b16 %v443
      %v971 = vunpack.c.l.b16 %v444
      %v972 = vunpack.c.l.b16 %v445
      %v973 = vunpack.c.h.b16 %v445
      %v974 = vunpack.c.l.b16 %v446
      %v975 = vunpack.c.h.b16 %v446
      %v976 = vunpack.c.l.b16 %v447
      %v977 = vunpack.c.l.b16 %v448
      %v978 = vunpack.c.h.b16 %v448
      %v979 = vunpack.c.l.b16 %v449
      %v980 = vunpack.c.h.b16 %v449
      %v981 = vunpack.c.l.b16 %v450
      %v982 = vunpack.c.l.b16 %v451
      %v983 = vunpack.c.h.b16 %v451
      %v984 = vunpack.c.l.b16 %v452
      %v985 = vunpack.c.h.b16 %v452
      %v986 = vunpack.c.l.b16 %v453
      %v987 = vunpack.c.l.b16 %v454
      %v988 = vunpack.c.h.b16 %v454
      %v989 = vunpack.c.l.b16 %v455
      %v990 = vunpack.c.h.b16 %v455
      %v991 = vunpack.c.l.b16 %v456
      %v992 = vunpack.c.l.b16 %v457
      %v993 = vunpack.c.h.b16 %v457
      %v994 = vunpack.c.l.b16 %v458
      %v995 = vunpack.c.h.b16 %v458
      %v996 = vunpack.c.l.b16 %v459
      %v997 = vunpack.c.l.b16 %v460
      %v998 = vunpack.c.h.b16 %v460
      %v999 = vunpack.c.l.b16 %v461
      %v1000 = vunpack.c.h.b16 %v461
      %v1001 = vunpack.c.l.b16 %v462
      %v1002 = vunpack.c.l.b16 %v463
      %v1003 = vunpack.c.h.b16 %v463
      %v1004 = vunpack.c.l.b16 %v464
      %v1005 = vunpack.c.h.b16 %v464
      %v1006 = vunpack.c.l.b16 %v465
      %v1007 = vunpack.c.l.b16 %v466
      %v1008 = vunpack.c.h.b16 %v466
      %v1009 = vunpack.c.l.b16 %v467
      %v1010 = vunpack.c.h.b16 %v467
      %v1011 = vunpack.c.l.b16 %v468
      %v1012 = vunpack.c.l.b16 %v469
      %v1013 = vunpack.c.h.b16 %v469
      %v1014 = vunpack.c.l.b16 %v470
      %v1015 = vunpack.c.h.b16 %v470
      %v1016 = vunpack.c.l.b16 %v471
      %v1017 = vunpack.c.l.b16 %v472
      %v1018 = vunpack.c.h.b16 %v472
      %v1019 = vunpack.c.l.b16 %v473
      %v1020 = vunpack.c.h.b16 %v473
      %v1021 = vunpack.c.l.b16 %v474
      %v1022 = vunpack.c.l.b16 %v475
      %v1023 = vunpack.c.h.b16 %v475
      %v1024 = vunpack.c.l.b16 %v476
      %v1025 = vunpack.c.h.b16 %v476
      %v1026 = vunpack.c.l.b16 %v477
      %v1027 = vunpack.c.l.b16 %v478
      %v1028 = vunpack.c.h.b16 %v478
      %v1029 = vunpack.c.l.b16 %v479
      %v1030 = vunpack.c.h.b16 %v479
      %v1031 = vunpack.c.l.b16 %v480
      %v1032 = vunpack.c.l.b16 %v481
      %v1033 = vunpack.c.h.b16 %v481
      %v1034 = vunpack.c.l.b16 %v482
      %v1035 = vunpack.c.h.b16 %v482
      %v1036 = vunpack.c.l.b16 %v483
      %v1037 = vunpack.c.l.b16 %v484
      %v1038 = vunpack.c.h.b16 %v484
      %v1039 = vunpack.c.l.b16 %v485
      %v1040 = vunpack.c.h.b16 %v485
      %v1041 = vunpack.c.l.b16 %v486
      %v1042 = vunpack.c.l.b16 %v487
      %v1043 = vunpack.c.h.b16 %v487
      %v1044 = vunpack.c.l.b16 %v488
      %v1045 = vunpack.c.h.b16 %v488
      %v1046 = vunpack.c.l.b16 %v489
      %v1047 = vunpack.c.l.b16 %v490
      %v1048 = vunpack.c.h.b16 %v490
      %v1049 = vunpack.c.l.b16 %v491
      %v1050 = vunpack.c.h.b16 %v491
      %v1051 = vunpack.c.l.b16 %v492
      %v1052 = vunpack.c.l.b16 %v493
      %v1053 = vunpack.c.h.b16 %v493
      %v1054 = vunpack.c.l.b16 %v494
      %v1055 = vunpack.c.h.b16 %v494
      %v1056 = vunpack.c.l.b16 %v495
      %v1057 = vunpack.c.l.b16 %v496
      %v1058 = vunpack.c.h.b16 %v496
      %v1059 = vunpack.c.l.b16 %v497
      %v1060 = vunpack.c.h.b16 %v497
      %v1061 = vunpack.c.l.b16 %v498
      %v1062 = vunpack.c.l.b16 %v499
      %v1063 = vunpack.c.h.b16 %v499
      %v1064 = vunpack.c.l.b16 %v500
      %v1065 = vunpack.c.h.b16 %v500
      %v1066 = vunpack.c.l.b16 %v501
      %v1067 = vunpack.c.l.b16 %v502
      %v1068 = vunpack.c.h.b16 %v502
      %v1069 = vunpack.c.l.b16 %v503
      %v1070 = vunpack.c.h.b16 %v503
      %v1071 = vunpack.c.l.b16 %v504
      %v1072 = vunpack.c.l.b16 %v505
      %v1073 = vunpack.c.h.b16 %v505
      %v1074 = vunpack.c.l.b16 %v506
      %v1075 = vunpack.c.h.b16 %v506
      %v1076 = vunpack.c.l.b16 %v507
      %v1077 = vunpack.c.l.b16 %v508
      %v1078 = vunpack.c.h.b16 %v508
      %v1079 = vunpack.c.l.b16 %v509
      %v1080 = vunpack.c.h.b16 %v509
      %v1081 = vunpack.c.l.b16 %v510
      %v1082 = vunpack.c.l.b16 %v511
      %v1083 = vunpack.c.h.b16 %v511
      %v1084 = vunpack.c.l.b16 %v512
      %v1085 = vunpack.c.h.b16 %v512
      %v1086 = vunpack.c.l.b16 %v513
      %v1087 = vunpack.c.l.b16 %v514
      %v1088 = vunpack.c.h.b16 %v514
      %v1089 = vunpack.c.l.b16 %v515
      %v1090 = vunpack.c.h.b16 %v515
      %v1091 = vunpack.c.l.b16 %v516
      %v1092 = vunpack.c.l.b16 %v517
      %v1093 = vunpack.c.h.b16 %v517
      %v1094 = vunpack.c.l.b16 %v518
      %v1095 = vunpack.c.h.b16 %v518
      %v1096 = vunpack.c.l.b16 %v519
      %v1097 = vunpack.c.l.b16 %v520
      %v1098 = vunpack.c.h.b16 %v520
      %v1099 = vunpack.c.l.b16 %v521
      %v1100 = vunpack.c.h.b16 %v521
      %v1101 = vunpack.c.l.b16 %v522
      %v1102 = vunpack.c.l.b16 %v523
      %v1103 = vunpack.c.h.b16 %v523
      %v1104 = vunpack.c.l.b16 %v524
      %v1105 = vunpack.c.h.b16 %v524
      %v1106 = vunpack.c.l.b16 %v525
      %v1107 = vunpack.c.l.b16 %v526
      %v1108 = vunpack.c.h.b16 %v526
      %v1109 = vunpack.c.l.b16 %v527
      %v1110 = vunpack.c.h.b16 %v527
      %v1111 = vunpack.c.l.b16 %v528
      %v1112 = vunpack.c.l.b16 %v529
      %v1113 = vunpack.c.h.b16 %v529
      %v1114 = vunpack.c.l.b16 %v530
      %v1115 = vunpack.c.h.b16 %v530
      %v1116 = vunpack.c.l.b16 %v531
      %v1117 = vunpack.c.l.b16 %v532
      %v1118 = vunpack.c.h.b16 %v532
      %v1119 = vunpack.c.l.b16 %v533
      %v1120 = vunpack.c.h.b16 %v533
      %v1121 = vunpack.c.l.b16 %v534
      %v1122 = vunpack.c.l.b16 %v535
      %v1123 = vunpack.c.h.b16 %v535
      %v1124 = vunpack.c.l.b16 %v536
      %v1125 = vunpack.c.h.b16 %v536
      %v1126 = vunpack.c.l.b16 %v537
      %v1127 = vunpack.c.l.b16 %v538
      %v1128 = vunpack.c.h.b16 %v538
      %v1129 = vunpack.c.l.b16 %v539
      %v1130 = vunpack.c.h.b16 %v539
      %v1131 = vunpack.c.l.b16 %v540
      %v1132 = vunpack.c.l.b16 %v541
      %v1133 = vunpack.c.h.b16 %v541
      %v1134 = vunpack.c.l.b16 %v542
      %v1135 = vunpack.c.h.b16 %v542
      %v1136 = vunpack.c.l.b16 %v543
      %v1137 = vunpack.c.l.b16 %v544
      %v1138 = vunpack.c.h.b16 %v544
      %v1139 = vunpack.c.l.b16 %v545
      %v1140 = vunpack.c.h.b16 %v545
      %v1141 = vunpack.c.l.b16 %v546
      %v1142 = vunpack.c.l.b16 %v547
      %v1143 = vunpack.c.h.b16 %v547
      %v1144 = vunpack.c.l.b16 %v548
      %v1145 = vunpack.c.h.b16 %v548
      %v1146 = vunpack.c.l.b16 %v549
      %v1147 = vunpack.c.l.b16 %v550
      %v1148 = vunpack.c.h.b16 %v550
      %v1149 = vunpack.c.l.b16 %v551
      %v1150 = vunpack.c.h.b16 %v551
      %v1151 = vunpack.c.l.b16 %v552
      %v1152 = vunpack.c.l.b16 %v553
      %v1153 = vunpack.c.h.b16 %v553
      %v1154 = vunpack.c.l.b16 %v554
      %v1155 = vunpack.c.h.b16 %v554
      %v1156 = vunpack.c.l.b16 %v555
      %v1157 = vunpack.c.l.b16 %v556
      %v1158 = vunpack.c.h.b16 %v556
      %v1159 = vunpack.c.l.b16 %v557
      %v1160 = vunpack.c.h.b16 %v557
      %v1161 = vunpack.c.l.b16 %v558
      %v1162 = vunpack.c.l.b16 %v559
      %v1163 = vunpack.c.h.b16 %v559
      %v1164 = vunpack.c.l.b16 %v560
      %v1165 = vunpack.c.h.b16 %v560
      %v1166 = vunpack.c.l.b16 %v561
      %v1167 = vunpack.c.l.b16 %v562
      %v1168 = vunpack.c.h.b16 %v562
      %v1169 = vunpack.c.l.b16 %v563
      %v1170 = vunpack.c.h.b16 %v563
      %v1171 = vunpack.c.l.b16 %v564
      %v1172 = vunpack.c.l.b16 %v565
      %v1173 = vunpack.c.h.b16 %v565
      %v1174 = vunpack.c.l.b16 %v566
      %v1175 = vunpack.c.h.b16 %v566
      %v1176 = vunpack.c.l.b16 %v567
      %v1177 = vunpack.c.l.b16 %v568
      %v1178 = vunpack.c.h.b16 %v568
      %v1179 = vunpack.c.l.b16 %v569
      %v1180 = vunpack.c.h.b16 %v569
      %v1181 = vunpack.c.l.b16 %v570
      %v1182 = vunpack.c.l.b16 %v571
      %v1183 = vunpack.c.h.b16 %v571
      %v1184 = vunpack.c.l.b16 %v572
      %v1185 = vunpack.c.h.b16 %v572
      %v1186 = vunpack.c.l.b16 %v573
      %v1187 = vunpack.c.l.b16 %v574
      %v1188 = vunpack.c.h.b16 %v574
      %v1189 = vunpack.c.l.b16 %v575
      %v1190 = vunpack.c.h.b16 %v575
      %v1191 = vunpack.c.l.b16 %v576
      %v1192 = vunpack.c.l.b16 %v577
      %v1193 = vunpack.c.h.b16 %v577
      %v1194 = vunpack.c.l.b16 %v578
      %v1195 = vunpack.c.h.b16 %v578
      %v1196 = vunpack.c.l.b16 %v579
      %v1197 = vunpack.c.l.b16 %v580
      %v1198 = vunpack.c.h.b16 %v580
      %v1199 = vunpack.c.l.b16 %v581
      %v1200 = vunpack.c.h.b16 %v581
      %v1201 = vunpack.c.l.b16 %v582
      %v1202 = vunpack.c.l.b16 %v583
      %v1203 = vunpack.c.h.b16 %v583
      %v1204 = vunpack.c.l.b16 %v584
      %v1205 = vunpack.c.h.b16 %v584
      %v1206 = vunpack.c.l.b16 %v585
      %v1207 = vunpack.c.l.b16 %v586
      %v1208 = vunpack.c.h.b16 %v586
      %v1209 = vunpack.c.l.b16 %v587
      %v1210 = vunpack.c.h.b16 %v587
      %v1211 = vunpack.c.l.b16 %v588
      %v1212 = vunpack.c.l.b16 %v589
      %v1213 = vunpack.c.h.b16 %v589
      %v1214 = vunpack.c.l.b16 %v590
      %v1215 = vunpack.c.h.b16 %v590
      %v1216 = vunpack.c.l.b16 %v591
      %v1217 = vunpack.c.l.b16 %v592
      %v1218 = vunpack.c.h.b16 %v592
      %v1219 = vunpack.c.l.b16 %v593
      %v1220 = vunpack.c.h.b16 %v593
      %v1221 = vunpack.c.l.b16 %v594
      %v1222 = vunpack.c.l.b16 %v595
      %v1223 = vunpack.c.h.b16 %v595
      %v1224 = vunpack.c.l.b16 %v596
      %v1225 = vunpack.c.h.b16 %v596
      %v1226 = vunpack.c.l.b16 %v597
      %v1227 = vunpack.c.l.b16 %v598
      %v1228 = vunpack.c.h.b16 %v598
      %v1229 = vunpack.c.l.b16 %v599
      %v1230 = vunpack.c.h.b16 %v599
      %v1231 = vunpack.c.l.b16 %v600
      %v1232 = vunpack.c.l.b16 %v601
      %v1233 = vunpack.c.h.b16 %v601
      %v1234 = vunpack.c.l.b16 %v602
      %v1235 = vunpack.c.h.b16 %v602
      %v1236 = vunpack.c.l.b16 %v603
      %v1237 = vunpack.c.l.b16 %v604
      %v1238 = vunpack.c.h.b16 %v604
      %v1239 = vunpack.c.l.b16 %v605
      %v1240 = vunpack.c.h.b16 %v605
      %v1241 = vunpack.c.l.b16 %v606
      %v1242 = vunpack.c.l.b16 %v607
      %v1243 = vunpack.c.h.b16 %v607
      %v1244 = vunpack.c.l.b16 %v608
      %v1245 = vunpack.c.h.b16 %v608
      %v1246 = vunpack.c.l.b16 %v609
      %v1247 = vunpack.c.l.b16 %v610
      %v1248 = vunpack.c.h.b16 %v610
      %v1249 = vunpack.c.l.b16 %v611
      %v1250 = vunpack.c.h.b16 %v611
      %v1251 = vunpack.c.l.b16 %v612
      %v1252 = vunpack.c.l.b16 %v613
      %v1253 = vunpack.c.h.b16 %v613
      %v1254 = vunpack.c.l.b16 %v614
      %v1255 = vunpack.c.h.b16 %v614
      %v1256 = vunpack.c.l.b16 %v615
      %v1257 = vunpack.c.l.b16 %v616
      %v1258 = vunpack.c.h.b16 %v616
      %v1259 = vunpack.c.l.b16 %v617
      %v1260 = vunpack.c.h.b16 %v617
      %v1261 = vunpack.c.l.b16 %v618
      %v1262 = vunpack.c.l.b16 %v619
      %v1263 = vunpack.c.h.b16 %v619
      %v1264 = vunpack.c.l.b16 %v620
      %v1265 = vunpack.c.h.b16 %v620
      %v1266 = vunpack.c.l.b16 %v621
      %v1267 = vunpack.c.l.b16 %v622
      %v1268 = vunpack.c.h.b16 %v622
      %v1269 = vunpack.c.l.b16 %v623
      %v1270 = vunpack.c.h.b16 %v623
      %v1271 = vunpack.c.l.b16 %v624
      %v1272 = vunpack.c.l.b16 %v625
      %v1273 = vunpack.c.h.b16 %v625
      %v1274 = vunpack.c.l.b16 %v626
      %v1275 = vunpack.c.h.b16 %v626
      %v1276 = vunpack.c.l.b16 %v627
      %v1277 = vunpack.c.l.b16 %v628
      %v1278 = vunpack.c.h.b16 %v628
      %v1279 = vunpack.c.l.b16 %v629
      %v1280 = vunpack.c.h.b16 %v629
      %v1281 = vunpack.c.l.b16 %v630
      %v1282 = vunpack.c.l.b16 %v631
      %v1283 = vunpack.c.h.b16 %v631
      %v1284 = vunpack.c.l.b16 %v632
      %v1285 = vunpack.c.h.b16 %v632
      %v1286 = vunpack.c.l.b16 %v633
      %v1287 = vunpack.c.l.b16 %v634
      %v1288 = vunpack.c.h.b16 %v634
      %v1289 = vunpack.c.l.b16 %v635
      %v1290 = vunpack.c.h.b16 %v635
      %v1291 = vunpack.c.l.b16 %v636
      %v1292 = vunpack.c.l.b16 %v637
      %v1293 = vunpack.c.h.b16 %v637
      %v1294 = vunpack.c.l.b16 %v638
      %v1295 = vunpack.c.h.b16 %v638
      %v1296 = vunpack.c.l.b16 %v639
      %v1297 = vunpack.c.l.b16 %v640
      %v1298 = vunpack.c.h.b16 %v640
      %v1299 = vunpack.c.l.b16 %v641
      %v1300 = vunpack.c.h.b16 %v641
      %v1301 = vunpack.c.l.b16 %v642
      %v1302 = vunpack.c.l.b16 %v643
      %v1303 = vunpack.c.h.b16 %v643
      %v1304 = vunpack.c.l.b16 %v644
      %v1305 = vunpack.c.h.b16 %v644
      %v1306 = vunpack.c.l.b16 %v645
      %v1307 = vunpack.c.l.b16 %v646
      %v1308 = vunpack.c.h.b16 %v646
      %v1309 = vunpack.c.l.b16 %v647
      %v1310 = vunpack.c.h.b16 %v647
      %v1311 = vunpack.c.l.b16 %v648
      %v1312 = vunpack.c.l.b16 %v649
      %v1313 = vunpack.c.h.b16 %v649
      %v1314 = vunpack.c.l.b16 %v650
      %v1315 = vunpack.c.h.b16 %v650
      %v1316 = vunpack.c.l.b16 %v651
      %v1317 = vunpack.c.l.b16 %v652
      %v1318 = vunpack.c.h.b16 %v652
      %v1319 = vunpack.c.l.b16 %v653
      %v1320 = vunpack.c.h.b16 %v653
      %v1321 = vunpack.c.l.b16 %v654
      %v1322 = vpack.c.b16 %v927, %v922
      %v1323 = vpack.c.b16 %v928, %v923
      %v1324 = vpack.c.b16 %v929, %v924
      %v1325 = vpack.c.b16 %v930, %v925
      %v1326 = vpack.c.b16 %v931, %v926
      %v1327 = vpack.c.b16 %v937, %v932
      %v1328 = vpack.c.b16 %v938, %v933
      %v1329 = vpack.c.b16 %v939, %v934
      %v1330 = vpack.c.b16 %v940, %v935
      %v1331 = vpack.c.b16 %v941, %v936
      %v1332 = vpack.c.b16 %v947, %v942
      %v1333 = vpack.c.b16 %v948, %v943
      %v1334 = vpack.c.b16 %v949, %v944
      %v1335 = vpack.c.b16 %v950, %v945
      %v1336 = vpack.c.b16 %v951, %v946
      %v1337 = vpack.c.b16 %v957, %v952
      %v1338 = vpack.c.b16 %v958, %v953
      %v1339 = vpack.c.b16 %v959, %v954
      %v1340 = vpack.c.b16 %v960, %v955
      %v1341 = vpack.c.b16 %v961, %v956
      %v1342 = vpack.c.b16 %v967, %v962
      %v1343 = vpack.c.b16 %v968, %v963
      %v1344 = vpack.c.b16 %v969, %v964
      %v1345 = vpack.c.b16 %v970, %v965
      %v1346 = vpack.c.b16 %v971, %v966
      %v1347 = vpack.c.b16 %v977, %v972
      %v1348 = vpack.c.b16 %v978, %v973
      %v1349 = vpack.c.b16 %v979, %v974
      %v1350 = vpack.c.b16 %v980, %v975
      %v1351 = vpack.c.b16 %v981, %v976
      %v1352 = vpack.c.b16 %v987, %v982
      %v1353 = vpack.c.b16 %v988, %v983
      %v1354 = vpack.c.b16 %v989, %v984
      %v1355 = vpack.c.b16 %v990, %v985
      %v1356 = vpack.c.b16 %v991, %v986
      %v1357 = vpack.c.b16 %v997, %v992
      %v1358 = vpack.c.b16 %v998, %v993
      %v1359 = vpack.c.b16 %v999, %v994
      %v1360 = vpack.c.b16 %v1000, %v995
      %v1361 = vpack.c.b16 %v1001, %v996
      %v1362 = vpack.c.b16 %v1007, %v1002
      %v1363 = vpack.c.b16 %v1008, %v1003
      %v1364 = vpack.c.b16 %v1009, %v1004
      %v1365 = vpack.c.b16 %v1010, %v1005
      %v1366 = vpack.c.b16 %v1011, %v1006
      %v1367 = vpack.c.b16 %v1017, %v1012
      %v1368 = vpack.c.b16 %v1018, %v1013
      %v1369 = vpack.c.b16 %v1019, %v1014
      %v1370 = vpack.c.b16 %v1020, %v1015
      %v1371 = vpack.c.b16 %v1021, %v1016
      %v1372 = vpack.c.b16 %v1027, %v1022
      %v1373 = vpack.c.b16 %v1028, %v1023
      %v1374 = vpack.c.b16 %v1029, %v1024
      %v1375 = vpack.c.b16 %v1030, %v1025
      %v1376 = vpack.c.b16 %v1031, %v1026
      %v1377 = vpack.c.b16 %v1037, %v1032
      %v1378 = vpack.c.b16 %v1038, %v1033
      %v1379 = vpack.c.b16 %v1039, %v1034
      %v1380 = vpack.c.b16 %v1040, %v1035
      %v1381 = vpack.c.b16 %v1041, %v1036
      %v1382 = vpack.c.b16 %v1047, %v1042
      %v1383 = vpack.c.b16 %v1048, %v1043
      %v1384 = vpack.c.b16 %v1049, %v1044
      %v1385 = vpack.c.b16 %v1050, %v1045
      %v1386 = vpack.c.b16 %v1051, %v1046
      %v1387 = vpack.c.b16 %v1057, %v1052
      %v1388 = vpack.c.b16 %v1058, %v1053
      %v1389 = vpack.c.b16 %v1059, %v1054
      %v1390 = vpack.c.b16 %v1060, %v1055
      %v1391 = vpack.c.b16 %v1061, %v1056
      %v1392 = vpack.c.b16 %v1067, %v1062
      %v1393 = vpack.c.b16 %v1068, %v1063
      %v1394 = vpack.c.b16 %v1069, %v1064
      %v1395 = vpack.c.b16 %v1070, %v1065
      %v1396 = vpack.c.b16 %v1071, %v1066
      %v1397 = vpack.c.b16 %v1077, %v1072
      %v1398 = vpack.c.b16 %v1078, %v1073
      %v1399 = vpack.c.b16 %v1079, %v1074
      %v1400 = vpack.c.b16 %v1080, %v1075
      %v1401 = vpack.c.b16 %v1081, %v1076
      %v1402 = vpack.c.b16 %v1087, %v1082
      %v1403 = vpack.c.b16 %v1088, %v1083
      %v1404 = vpack.c.b16 %v1089, %v1084
      %v1405 = vpack.c.b16 %v1090, %v1085
      %v1406 = vpack.c.b16 %v1091, %v1086
      %v1407 = vpack.c.b16 %v1097, %v1092
      %v1408 = vpack.c.b16 %v1098, %v1093
      %v1409 = vpack.c.b16 %v1099, %v1094
      %v1410 = vpack.c.b16 %v1100, %v1095
      %v1411 = vpack.c.b16 %v1101, %v1096
      %v1412 = vpack.c.b16 %v1107, %v1102
      %v1413 = vpack.c.b16 %v1108, %v1103
      %v1414 = vpack.c.b16 %v1109, %v1104
      %v1415 = vpack.c.b16 %v1110, %v1105
      %v1416 = vpack.c.b16 %v1111, %v1106
      %v1417 = vpack.c.b16 %v1117, %v1112
      %v1418 = vpack.c.b16 %v1118, %v1113
      %v1419 = vpack.c.b16 %v1119, %v1114
      %v1420 = vpack.c.b16 %v1120, %v1115
      %v1421 = vpack.c.b16 %v1121, %v1116
      %v1422 = vpack.c.b16 %v1127, %v1122
      %v1423 = vpack.c.b16 %v1128, %v1123
      %v1424 = vpack.c.b16 %v1129, %v1124
      %v1425 = vpack.c.b16 %v1130, %v1125
      %v1426 = vpack.c.b16 %v1131, %v1126
      %v1427 = vpack.c.b16 %v1137, %v1132
      %v1428 = vpack.c.b16 %v1138, %v1133
      %v1429 = vpack.c.b16 %v1139, %v1134
      %v1430 = vpack.c.b16 %v1140, %v1135
      %v1431 = vpack.c.b16 %v1141, %v1136
      %v1432 = vpack.c.b16 %v1147, %v1142
      %v1433 = vpack.c.b16 %v1148, %v1143
      %v1434 = vpack.c.b16 %v1149, %v1144
      %v1435 = vpack.c.b16 %v1150, %v1145
      %v1436 = vpack.c.b16 %v1151, %v1146
      %v1437 = vpack.c.b16 %v1157, %v1152
      %v1438 = vpack.c.b16 %v1158, %v1153
      %v1439 = vpack.c.b16 %v1159, %v1154
      %v1440 = vpack.c.b16 %v1160, %v1155
      %v1441 = vpack.c.b16 %v1161, %v1156
      %v1442 = vpack.c.b16 %v1167, %v1162
      %v1443 = vpack.c.b16 %v1168, %v1163
      %v1444 = vpack.c.b16 %v1169, %v1164
      %v1445 = vpack.c.b16 %v1170, %v1165
      %v1446 = vpack.c.b16 %v1171, %v1166
      %v1447 = vpack.c.b16 %v1177, %v1172
      %v1448 = vpack.c.b16 %v1178, %v1173
      %v1449 = vpack.c.b16 %v1179, %v1174
      %v1450 = vpack.c.b16 %v1180, %v1175
      %v1451 = vpack.c.b16 %v1181, %v1176
      %v1452 = vpack.c.b16 %v1187, %v1182
      %v1453 = vpack.c.b16 %v1188, %v1183
      %v1454 = vpack.c.b16 %v1189, %v1184
      %v1455 = vpack.c.b16 %v1190, %v1185
      %v1456 = vpack.c.b16 %v1191, %v1186
      %v1457 = vpack.c.b16 %v1197, %v1192
      %v1458 = vpack.c.b16 %v1198, %v1193
      %v1459 = vpack.c.b16 %v1199, %v1194
      %v1460 = vpack.c.b16 %v1200, %v1195
      %v1461 = vpack.c.b16 %v1201, %v1196
      %v1462 = vpack.c.b16 %v1207, %v1202
      %v1463 = vpack.c.b16 %v1208, %v1203
      %v1464 = vpack.c.b16 %v1209, %v1204
      %v1465 = vpack.c.b16 %v1210, %v1205
      %v1466 = vpack.c.b16 %v1211, %v1206
      %v1467 = vpack.c.b16 %v1217, %v1212
      %v1468 = vpack.c.b16 %v1218, %v1213
      %v1469 = vpack.c.b16 %v1219, %v1214
      %v1470 = vpack.c.b16 %v1220, %v1215
      %v1471 = vpack.c.b16 %v1221, %v1216
      %v1472 = vpack.c.b16 %v1227, %v1222
      %v1473 = vpack.c.b16 %v1228, %v1223
      %v1474 = vpack.c.b16 %v1229, %v1224
      %v1475 = vpack.c.b16 %v1230, %v1225
      %v1476 = vpack.c.b16 %v1231, %v1226
      %v1477 = vpack.c.b16 %v1237, %v1232
      %v1478 = vpack.c.b16 %v1238, %v1233
      %v1479 = vpack.c.b16 %v1239, %v1234
      %v1480 = vpack.c.b16 %v1240, %v1235
      %v1481 = vpack.c.b16 %v1241, %v1236
      %v1482 = vpack.c.b16 %v1247, %v1242
      %v1483 = vpack.c.b16 %v1248, %v1243
      %v1484 = vpack.c.b16 %v1249, %v1244
      %v1485 = vpack.c.b16 %v1250, %v1245
      %v1486 = vpack.c.b16 %v1251, %v1246
      %v1487 = vpack.c.b16 %v1257, %v1252
      %v1488 = vpack.c.b16 %v1258, %v1253
      %v1489 = vpack.c.b16 %v1259, %v1254
      %v1490 = vpack.c.b16 %v1260, %v1255
      %v1491 = vpack.c.b16 %v1261, %v1256
      %v1492 = vpack.c.b16 %v1267, %v1262
      %v1493 = vpack.c.b16 %v1268, %v1263
      %v1494 = vpack.c.b16 %v1269, %v1264
      %v1495 = vpack.c.b16 %v1270, %v1265
      %v1496 = vpack.c.b16 %v1271, %v1266
      %v1497 = vpack.c.b16 %v1277, %v1272
      %v1498 = vpack.c.b16 %v1278, %v1273
      %v1499 = vpack.c.b16 %v1279, %v1274
      %v1500 = vpack.c.b16 %v1280, %v1275
      %v1501 = vpack.c.b16 %v1281, %v1276
      %v1502 = vpack.c.b16 %v1287, %v1282
      %v1503 = vpack.c.b16 %v1288, %v1283
      %v1504 = vpack.c.b16 %v1289, %v1284
      %v1505 = vpack.c.b16 %v1290, %v1285
      %v1506 = vpack.c.b16 %v1291, %v1286
      %v1507 = vpack.c.b16 %v1297, %v1292
      %v1508 = vpack.c.b16 %v1298, %v1293
      %v1509 = vpack.c.b16 %v1299, %v1294
      %v1510 = vpack.c.b16 %v1300, %v1295
      %v1511 = vpack.c.b16 %v1301, %v1296
      %v1512 = vpack.c.b16 %v1307, %v1302
      %v1513 = vpack.c.b16 %v1308, %v1303
      %v1514 = vpack.c.b16 %v1309, %v1304
      %v1515 = vpack.c.b16 %v1310, %v1305
      %v1516 = vpack.c.b16 %v1311, %v1306
      %v1517 = vpack.c.b16 %v1317, %v1312
      %v1518 = vpack.c.b16 %v1318, %v1313
      %v1519 = vpack.c.b16 %v1319, %v1314
      %v1520 = vpack.c.b16 %v1320, %v1315
      %v1521 = vpack.c.b16 %v1321, %v1316
      %1722 = vmatprep.subr.bf16.mxu0 %v1323
      %1723 = vmatpush1.bf16.msra.mxu0 %v1322
      %1724 = vmatprep.subr.bf16.mxu0 %v1328
      %1725 = vmatpush1.bf16.msra.mxu0 %v1327
      %1726 = vmatprep.subr.bf16.mxu0 %v1333
      %1727 = vmatpush1.bf16.msra.mxu0 %v1332
      %1728 = vmatprep.subr.bf16.mxu0 %v1338
      %1729 = vmatpush1.bf16.msra.mxu0 %v1337
      %1730 = vmatprep.subr.bf16.mxu0 %v1343
      %1731 = vmatpush1.bf16.msra.mxu0 %v1342
      %1732 = vmatprep.subr.bf16.mxu0 %v1348
      %1733 = vmatpush1.bf16.msra.mxu0 %v1347
      %1734 = vmatprep.subr.bf16.mxu0 %v1353
      %1735 = vmatpush1.bf16.msra.mxu0 %v1352
      %1736 = vmatprep.subr.bf16.mxu0 %v1358
      %1737 = vmatpush1.bf16.msra.mxu0 %v1357
      %1738 = vmatprep.subr.bf16.mxu0 %v1363
      %1739 = vmatpush1.bf16.msra.mxu0 %v1362
      %1740 = vmatprep.subr.bf16.mxu0 %v1368
      %1741 = vmatpush1.bf16.msra.mxu0 %v1367
      %1742 = vmatprep.subr.bf16.mxu0 %v1373
      %1743 = vmatpush1.bf16.msra.mxu0 %v1372
      %1744 = vmatprep.subr.bf16.mxu0 %v1378
      %1745 = vmatpush1.bf16.msra.mxu0 %v1377
      %1746 = vmatprep.subr.bf16.mxu0 %v1383
      %1747 = vmatpush1.bf16.msra.mxu0 %v1382
      %1748 = vmatprep.subr.bf16.mxu0 %v1388
      %1749 = vmatpush1.bf16.msra.mxu0 %v1387
      %1750 = vmatprep.subr.bf16.mxu0 %v1393
      %1751 = vmatpush1.bf16.msra.mxu0 %v1392
      %1752 = vmatprep.subr.bf16.mxu0 %v1398
      %1753 = vmatpush1.bf16.msra.mxu0 %v1397
      %1754 = vmatprep.mubr.bf16.mxu0 %v406
      %1755 = vmatmul.mubr.bf16.gmra.mrb[0].mxu0 %v405
      %v1756 = vpop.f32.mrb[0].mxu0
      %v1757 = vadd.f32 %v660, %v1756
      %v1758 = vpop.f32.mrb[0].mxu0
      %v1759 = vadd.f32 %v664, %v1758
      %v1760 = vpop.f32.mrb[0].mxu0
      %v1761 = vadd.f32 %v660, %v1760
      %v1762 = vpop.f32.mrb[0].mxu0
      %v1763 = vadd.f32 %v664, %v1762
      %1764 = vmatprep.mubr.bf16.mxu0 %v411
      %1765 = vmatmul.mubr.bf16.gmra.mrb[0].mxu0 %v410
      %v1766 = vpop.f32.mrb[0].mxu0
      %v1767 = vadd.f32 %v660, %v1766
      %v1768 = vpop.f32.mrb[0].mxu0
      %v1769 = vadd.f32 %v664, %v1768
      %v1770 = vpop.f32.mrb[0].mxu0
      %v1771 = vpop.f32.mrb[0].mxu0
      %1772 = vdwg.mxu0
      %1773 = vmatprep.subr.bf16.mxu0 %v1403
      %1774 = vmatpush1.bf16.msra.mxu0 %v1402
      %1775 = vmatprep.subr.bf16.mxu0 %v1408
      %1776 = vmatpush1.bf16.msra.mxu0 %v1407
      %1777 = vmatprep.subr.bf16.mxu0 %v1413
      %1778 = vmatpush1.bf16.msra.mxu0 %v1412
      %1779 = vmatprep.subr.bf16.mxu0 %v1418
      %1780 = vmatpush1.bf16.msra.mxu0 %v1417
      %1781 = vmatprep.subr.bf16.mxu0 %v1423
      %1782 = vmatpush1.bf16.msra.mxu0 %v1422
      %1783 = vmatprep.subr.bf16.mxu0 %v1428
      %1784 = vmatpush1.bf16.msra.mxu0 %v1427
      %1785 = vmatprep.subr.bf16.mxu0 %v1433
      %1786 = vmatpush1.bf16.msra.mxu0 %v1432
      %1787 = vmatprep.subr.bf16.mxu0 %v1438
      %1788 = vmatpush1.bf16.msra.mxu0 %v1437
      %1789 = vmatprep.subr.bf16.mxu0 %v1443
      %1790 = vmatpush1.bf16.msra.mxu0 %v1442
      %1791 = vmatprep.subr.bf16.mxu0 %v1448
      %1792 = vmatpush1.bf16.msra.mxu0 %v1447
      %1793 = vmatprep.subr.bf16.mxu0 %v1453
      %1794 = vmatpush1.bf16.msra.mxu0 %v1452
      %1795 = vmatprep.subr.bf16.mxu0 %v1458
      %1796 = vmatpush1.bf16.msra.mxu0 %v1457
      %1797 = vmatprep.subr.bf16.mxu0 %v1463
      %1798 = vmatpush1.bf16.msra.mxu0 %v1462
      %1799 = vmatprep.subr.bf16.mxu0 %v1468
      %1800 = vmatpush1.bf16.msra.mxu0 %v1467
      %1801 = vmatprep.subr.bf16.mxu0 %v1473
      %1802 = vmatpush1.bf16.msra.mxu0 %v1472
      %1803 = vmatprep.subr.bf16.mxu0 %v1478
      %1804 = vmatpush1.bf16.msra.mxu0 %v1477
      %1805 = vmatprep.mubr.bf16.mxu0 %v408
      %1806 = vmatmul.mubr.bf16.gmra.mrb[0].mxu0 %v407
      %v1807 = vpop.f32.mrb[0].mxu0
      %v1808 = vadd.f32 %v1757, %v1807
      %v1809 = vpop.f32.mrb[0].mxu0
      %v1810 = vadd.f32 %v1759, %v1809
      %v1811 = vpop.f32.mrb[0].mxu0
      %v1812 = vadd.f32 %v1761, %v1811
      %v1813 = vpop.f32.mrb[0].mxu0
      %v1814 = vadd.f32 %v1763, %v1813
      %1815 = vmatprep.mubr.bf16.mxu0 %v413
      %1816 = vmatmul.mubr.bf16.gmra.mrb[0].mxu0 %v412
      %v1817 = vpop.f32.mrb[0].mxu0
      %v1818 = vadd.f32 %v1767, %v1817
      %v1819 = vpop.f32.mrb[0].mxu0
      %v1820 = vadd.f32 %v1769, %v1819
      %v1821 = vpop.f32.mrb[0].mxu0
      %v1822 = vpop.f32.mrb[0].mxu0
      %1823 = vdwg.mxu0
      %1824 = vmatprep.subr.bf16.mxu0 %v1483
      %1825 = vmatpush1.bf16.msra.mxu0 %v1482
      %1826 = vmatprep.subr.bf16.mxu0 %v1488
      %1827 = vmatpush1.bf16.msra.mxu0 %v1487
      %1828 = vmatprep.subr.bf16.mxu0 %v1493
      %1829 = vmatpush1.bf16.msra.mxu0 %v1492
      %1830 = vmatprep.subr.bf16.mxu0 %v1498
      %1831 = vmatpush1.bf16.msra.mxu0 %v1497
      %1832 = vmatprep.subr.bf16.mxu0 %v1503
      %1833 = vmatpush1.bf16.msra.mxu0 %v1502
      %1834 = vmatprep.subr.bf16.mxu0 %v1508
      %1835 = vmatpush1.bf16.msra.mxu0 %v1507
      %1836 = vmatprep.subr.bf16.mxu0 %v1513
      %1837 = vmatpush1.bf16.msra.mxu0 %v1512
      %1838 = vmatprep.subr.bf16.mxu0 %v1518
      %1839 = vmatpush1.bf16.msra.mxu0 %v1517
      %1840 = vmatprep.subr.bf16.mxu0 0
      %1841 = vmatpush1.bf16.msra.mxu0 0
      %1842 = vmatprep.subr.bf16.mxu0 0
      %1843 = vmatpush1.bf16.msra.mxu0 0
      %1844 = vmatprep.subr.bf16.mxu0 0
      %1845 = vmatpush1.bf16.msra.mxu0 0
      %1846 = vmatprep.subr.bf16.mxu0 0
      %1847 = vmatpush1.bf16.msra.mxu0 0
      %1848 = vmatprep.subr.bf16.mxu0 0
      %1849 = vmatpush1.bf16.msra.mxu0 0
      %1850 = vmatprep.subr.bf16.mxu0 0
      %1851 = vmatpush1.bf16.msra.mxu0 0
      %1852 = vmatprep.subr.bf16.mxu0 0
      %1853 = vmatpush1.bf16.msra.mxu0 0
      %1854 = vmatprep.subr.bf16.mxu0 0
      %1855 = vmatpush1.bf16.msra.mxu0 0
      %1856 = vmatprep.mubr.bf16.mxu0 0
      %1857 = vmatmul.mubr.bf16.gmra.mrb[0].mxu0 %v409
      %v1858 = vpop.f32.mrb[0].mxu0
      %v1859 = vadd.f32 %v1808, %v1858
      %v1860 = vpop.f32.mrb[0].mxu0
      %v1861 = vadd.f32 %v1810, %v1860
      %v1862 = vpop.f32.mrb[0].mxu0
      %v1863 = vadd.f32 %v1812, %v1862
      %v1864 = vpop.f32.mrb[0].mxu0
      %v1865 = vadd.f32 %v1814, %v1864
      %1866 = vmatprep.mubr.bf16.mxu0 0
      %1867 = vmatmul.mubr.bf16.gmra.mrb[0].mxu0 %v414
      %v1868 = vpop.f32.mrb[0].mxu0
      %v1869 = vadd.f32 %v1818, %v1868
      %v1870 = vpop.f32.mrb[0].mxu0
      %v1871 = vadd.f32 %v1820, %v1870
      %v1872 = vpop.f32.mrb[0].mxu0
      %v1873 = vpop.f32.mrb[0].mxu0
      %1874 = vdwg.mxu0
      %1875 = vmatprep.subr.bf16.mxu0 %v1325
      %1876 = vmatpush1.bf16.msra.mxu0 %v1324
      %1877 = vmatprep.subr.bf16.mxu0 %v1330
      %1878 = vmatpush1.bf16.msra.mxu0 %v1329
      %1879 = vmatprep.subr.bf16.mxu0 %v1335
      %1880 = vmatpush1.bf16.msra.mxu0 %v1334
      %1881 = vmatprep.subr.bf16.mxu0 %v1340
      %1882 = vmatpush1.bf16.msra.mxu0 %v1339
      %1883 = vmatprep.subr.bf16.mxu0 %v1345
      %1884 = vmatpush1.bf16.msra.mxu0 %v1344
      %1885 = vmatprep.subr.bf16.mxu0 %v1350
      %1886 = vmatpush1.bf16.msra.mxu0 %v1349
      %1887 = vmatprep.subr.bf16.mxu0 %v1355
      %1888 = vmatpush1.bf16.msra.mxu0 %v1354
      %1889 = vmatprep.subr.bf16.mxu0 %v1360
      %1890 = vmatpush1.bf16.msra.mxu0 %v1359
      %1891 = vmatprep.subr.bf16.mxu0 %v1365
      %1892 = vmatpush1.bf16.msra.mxu0 %v1364
      %1893 = vmatprep.subr.bf16.mxu0 %v1370
      %1894 = vmatpush1.bf16.msra.mxu0 %v1369
      %1895 = vmatprep.subr.bf16.mxu0 %v1375
      %1896 = vmatpush1.bf16.msra.mxu0 %v1374
      %1897 = vmatprep.subr.bf16.mxu0 %v1380
      %1898 = vmatpush1.bf16.msra.mxu0 %v1379
      %1899 = vmatprep.subr.bf16.mxu0 %v1385
      %1900 = vmatpush1.bf16.msra.mxu0 %v1384
      %1901 = vmatprep.subr.bf16.mxu0 %v1390
      %1902 = vmatpush1.bf16.msra.mxu0 %v1389
      %1903 = vmatprep.subr.bf16.mxu0 %v1395
      %1904 = vmatpush1.bf16.msra.mxu0 %v1394
      %1905 = vmatprep.subr.bf16.mxu0 %v1400
      %1906 = vmatpush1.bf16.msra.mxu0 %v1399
      %1907 = vmatprep.mubr.bf16.mxu0 %v406
      %1908 = vmatmul.mubr.bf16.gmra.mrb[0].mxu0 %v405
      %v1909 = vpop.f32.mrb[0].mxu0
      %v1910 = vadd.f32 %v668, %v1909
      %v1911 = vpop.f32.mrb[0].mxu0
      %v1912 = vadd.f32 %v672, %v1911
      %v1913 = vpop.f32.mrb[0].mxu0
      %v1914 = vadd.f32 %v668, %v1913
      %v1915 = vpop.f32.mrb[0].mxu0
      %v1916 = vadd.f32 %v672, %v1915
      %1917 = vmatprep.mubr.bf16.mxu0 %v411
      %1918 = vmatmul.mubr.bf16.gmra.mrb[0].mxu0 %v410
      %v1919 = vpop.f32.mrb[0].mxu0
      %v1920 = vadd.f32 %v668, %v1919
      %v1921 = vpop.f32.mrb[0].mxu0
      %v1922 = vadd.f32 %v672, %v1921
      %v1923 = vpop.f32.mrb[0].mxu0
      %v1924 = vpop.f32.mrb[0].mxu0
      %1925 = vdwg.mxu0
      %1926 = vmatprep.subr.bf16.mxu0 %v1405
      %1927 = vmatpush1.bf16.msra.mxu0 %v1404
      %1928 = vmatprep.subr.bf16.mxu0 %v1410
      %1929 = vmatpush1.bf16.msra.mxu0 %v1409
      %1930 = vmatprep.subr.bf16.mxu0 %v1415
      %1931 = vmatpush1.bf16.msra.mxu0 %v1414
      %1932 = vmatprep.subr.bf16.mxu0 %v1420
      %1933 = vmatpush1.bf16.msra.mxu0 %v1419
      %1934 = vmatprep.subr.bf16.mxu0 %v1425
      %1935 = vmatpush1.bf16.msra.mxu0 %v1424
      %1936 = vmatprep.subr.bf16.mxu0 %v1430
      %1937 = vmatpush1.bf16.msra.mxu0 %v1429
      %1938 = vmatprep.subr.bf16.mxu0 %v1435
      %1939 = vmatpush1.bf16.msra.mxu0 %v1434
      %1940 = vmatprep.subr.bf16.mxu0 %v1440
      %1941 = vmatpush1.bf16.msra.mxu0 %v1439
      %1942 = vmatprep.subr.bf16.mxu0 %v1445
      %1943 = vmatpush1.bf16.msra.mxu0 %v1444
      %1944 = vmatprep.subr.bf16.mxu0 %v1450
      %1945 = vmatpush1.bf16.msra.mxu0 %v1449
      %1946 = vmatprep.subr.bf16.mxu0 %v1455
      %1947 = vmatpush1.bf16.msra.mxu0 %v1454
      %1948 = vmatprep.subr.bf16.mxu0 %v1460
      %1949 = vmatpush1.bf16.msra.mxu0 %v1459
      %1950 = vmatprep.subr.bf16.mxu0 %v1465
      %1951 = vmatpush1.bf16.msra.mxu0 %v1464
      %1952 = vmatprep.subr.bf16.mxu0 %v1470
      %1953 = vmatpush1.bf16.msra.mxu0 %v1469
      %1954 = vmatprep.subr.bf16.mxu0 %v1475
      %1955 = vmatpush1.bf16.msra.mxu0 %v1474
      %1956 = vmatprep.subr.bf16.mxu0 %v1480
      %1957 = vmatpush1.bf16.msra.mxu0 %v1479
      %1958 = vmatprep.mubr.bf16.mxu0 %v408
      %1959 = vmatmul.mubr.bf16.gmra.mrb[0].mxu0 %v407
      %v1960 = vpop.f32.mrb[0].mxu0
      %v1961 = vadd.f32 %v1910, %v1960
      %v1962 = vpop.f32.mrb[0].mxu0
      %v1963 = vadd.f32 %v1912, %v1962
      %v1964 = vpop.f32.mrb[0].mxu0
      %v1965 = vadd.f32 %v1914, %v1964
      %v1966 = vpop.f32.mrb[0].mxu0
      %v1967 = vadd.f32 %v1916, %v1966
      %1968 = vmatprep.mubr.bf16.mxu0 %v413
      %1969 = vmatmul.mubr.bf16.gmra.mrb[0].mxu0 %v412
      %v1970 = vpop.f32.mrb[0].mxu0
      %v1971 = vadd.f32 %v1920, %v1970
      %v1972 = vpop.f32.mrb[0].mxu0
      %v1973 = vadd.f32 %v1922, %v1972
      %v1974 = vpop.f32.mrb[0].mxu0
      %v1975 = vpop.f32.mrb[0].mxu0
      %1976 = vdwg.mxu0
      %1977 = vmatprep.subr.bf16.mxu0 %v1485
      %1978 = vmatpush1.bf16.msra.mxu0 %v1484
      %1979 = vmatprep.subr.bf16.mxu0 %v1490
      %1980 = vmatpush1.bf16.msra.mxu0 %v1489
      %1981 = vmatprep.subr.bf16.mxu0 %v1495
      %1982 = vmatpush1.bf16.msra.mxu0 %v1494
      %1983 = vmatprep.subr.bf16.mxu0 %v1500
      %1984 = vmatpush1.bf16.msra.mxu0 %v1499
      %1985 = vmatprep.subr.bf16.mxu0 %v1505
      %1986 = vmatpush1.bf16.msra.mxu0 %v1504
      %1987 = vmatprep.subr.bf16.mxu0 %v1510
      %1988 = vmatpush1.bf16.msra.mxu0 %v1509
      %1989 = vmatprep.subr.bf16.mxu0 %v1515
      %1990 = vmatpush1.bf16.msra.mxu0 %v1514
      %1991 = vmatprep.subr.bf16.mxu0 %v1520
      %1992 = vmatpush1.bf16.msra.mxu0 %v1519
      %1993 = vmatprep.subr.bf16.mxu0 0
      %1994 = vmatpush1.bf16.msra.mxu0 0
      %1995 = vmatprep.subr.bf16.mxu0 0
      %1996 = vmatpush1.bf16.msra.mxu0 0
      %1997 = vmatprep.subr.bf16.mxu0 0
      %1998 = vmatpush1.bf16.msra.mxu0 0
      %1999 = vmatprep.subr.bf16.mxu0 0
      %2000 = vmatpush1.bf16.msra.mxu0 0
      %2001 = vmatprep.subr.bf16.mxu0 0
      %2002 = vmatpush1.bf16.msra.mxu0 0
      %2003 = vmatprep.subr.bf16.mxu0 0
      %2004 = vmatpush1.bf16.msra.mxu0 0
      %2005 = vmatprep.subr.bf16.mxu0 0
      %2006 = vmatpush1.bf16.msra.mxu0 0
      %2007 = vmatprep.subr.bf16.mxu0 0
      %2008 = vmatpush1.bf16.msra.mxu0 0
      %2009 = vmatprep.mubr.bf16.mxu0 0
      %2010 = vmatmul.mubr.bf16.gmra.mrb[0].mxu0 %v409
      %v2011 = vpop.f32.mrb[0].mxu0
      %v2012 = vadd.f32 %v1961, %v2011
      %v2013 = vpop.f32.mrb[0].mxu0
      %v2014 = vadd.f32 %v1963, %v2013
      %v2015 = vpop.f32.mrb[0].mxu0
      %v2016 = vadd.f32 %v1965, %v2015
      %v2017 = vpop.f32.mrb[0].mxu0
      %v2018 = vadd.f32 %v1967, %v2017
      %2019 = vmatprep.mubr.bf16.mxu0 0
      %2020 = vmatmul.mubr.bf16.gmra.mrb[0].mxu0 %v414
      %v2021 = vpop.f32.mrb[0].mxu0
      %v2022 = vadd.f32 %v1971, %v2021
      %v2023 = vpop.f32.mrb[0].mxu0
      %v2024 = vadd.f32 %v1973, %v2023
      %v2025 = vpop.f32.mrb[0].mxu0
      %v2026 = vpop.f32.mrb[0].mxu0
      %2027 = vdwg.mxu0
      %2028 = vmatprep.subr.bf16.mxu0 0
      %2029 = vmatpush1.bf16.msra.mxu0 %v1326
      %2030 = vmatprep.subr.bf16.mxu0 0
      %2031 = vmatpush1.bf16.msra.mxu0 %v1331
      %2032 = vmatprep.subr.bf16.mxu0 0
      %2033 = vmatpush1.bf16.msra.mxu0 %v1336
      %2034 = vmatprep.subr.bf16.mxu0 0
      %2035 = vmatpush1.bf16.msra.mxu0 %v1341
      %2036 = vmatprep.subr.bf16.mxu0 0
      %2037 = vmatpush1.bf16.msra.mxu0 %v1346
      %2038 = vmatprep.subr.bf16.mxu0 0
      %2039 = vmatpush1.bf16.msra.mxu0 %v1351
      %2040 = vmatprep.subr.bf16.mxu0 0
      %2041 = vmatpush1.bf16.msra.mxu0 %v1356
      %2042 = vmatprep.subr.bf16.mxu0 0
      %2043 = vmatpush1.bf16.msra.mxu0 %v1361
      %2044 = vmatprep.subr.bf16.mxu0 0
      %2045 = vmatpush1.bf16.msra.mxu0 %v1366
      %2046 = vmatprep.subr.bf16.mxu0 0
      %2047 = vmatpush1.bf16.msra.mxu0 %v1371
      %2048 = vmatprep.subr.bf16.mxu0 0
      %2049 = vmatpush1.bf16.msra.mxu0 %v1376
      %2050 = vmatprep.subr.bf16.mxu0 0
      %2051 = vmatpush1.bf16.msra.mxu0 %v1381
      %2052 = vmatprep.subr.bf16.mxu0 0
      %2053 = vmatpush1.bf16.msra.mxu0 %v1386
      %2054 = vmatprep.subr.bf16.mxu0 0
      %2055 = vmatpush1.bf16.msra.mxu0 %v1391
      %2056 = vmatprep.subr.bf16.mxu0 0
      %2057 = vmatpush1.bf16.msra.mxu0 %v1396
      %2058 = vmatprep.subr.bf16.mxu0 0
      %2059 = vmatpush1.bf16.msra.mxu0 %v1401
      %2060 = vmatprep.mubr.bf16.mxu0 %v406
      %2061 = vmatmul.mubr.bf16.gmra.mrb[0].mxu0 %v405
      %v2062 = vpop.f32.mrb[0].mxu0
      %v2063 = vadd.f32 %v676, %v2062
      %v2064 = vpop.f32.mrb[0].mxu0
      %v2065 = vpop.f32.mrb[0].mxu0
      %v2066 = vadd.f32 %v676, %v2065
      %v2067 = vpop.f32.mrb[0].mxu0
      %2068 = vmatprep.mubr.bf16.mxu0 %v411
      %2069 = vmatmul.mubr.bf16.gmra.mrb[0].mxu0 %v410
      %v2070 = vpop.f32.mrb[0].mxu0
      %v2071 = vadd.f32 %v676, %v2070
      %v2072 = vpop.f32.mrb[0].mxu0
      %v2073 = vpop.f32.mrb[0].mxu0
      %v2074 = vpop.f32.mrb[0].mxu0
      %2075 = vdwg.mxu0
      %2076 = vmatprep.subr.bf16.mxu0 0
      %2077 = vmatpush1.bf16.msra.mxu0 %v1406
      %2078 = vmatprep.subr.bf16.mxu0 0
      %2079 = vmatpush1.bf16.msra.mxu0 %v1411
      %2080 = vmatprep.subr.bf16.mxu0 0
      %2081 = vmatpush1.bf16.msra.mxu0 %v1416
      %2082 = vmatprep.subr.bf16.mxu0 0
      %2083 = vmatpush1.bf16.msra.mxu0 %v1421
      %2084 = vmatprep.subr.bf16.mxu0 0
      %2085 = vmatpush1.bf16.msra.mxu0 %v1426
      %2086 = vmatprep.subr.bf16.mxu0 0
      %2087 = vmatpush1.bf16.msra.mxu0 %v1431
      %2088 = vmatprep.subr.bf16.mxu0 0
      %2089 = vmatpush1.bf16.msra.mxu0 %v1436
      %2090 = vmatprep.subr.bf16.mxu0 0
      %2091 = vmatpush1.bf16.msra.mxu0 %v1441
      %2092 = vmatprep.subr.bf16.mxu0 0
      %2093 = vmatpush1.bf16.msra.mxu0 %v1446
      %2094 = vmatprep.subr.bf16.mxu0 0
      %2095 = vmatpush1.bf16.msra.mxu0 %v1451
      %2096 = vmatprep.subr.bf16.mxu0 0
      %2097 = vmatpush1.bf16.msra.mxu0 %v1456
      %2098 = vmatprep.subr.bf16.mxu0 0
      %2099 = vmatpush1.bf16.msra.mxu0 %v1461
      %2100 = vmatprep.subr.bf16.mxu0 0
      %2101 = vmatpush1.bf16.msra.mxu0 %v1466
      %2102 = vmatprep.subr.bf16.mxu0 0
      %2103 = vmatpush1.bf16.msra.mxu0 %v1471
      %2104 = vmatprep.subr.bf16.mxu0 0
      %2105 = vmatpush1.bf16.msra.mxu0 %v1476
      %2106 = vmatprep.subr.bf16.mxu0 0
      %2107 = vmatpush1.bf16.msra.mxu0 %v1481
      %2108 = vmatprep.mubr.bf16.mxu0 %v408
      %2109 = vmatmul.mubr.bf16.gmra.mrb[0].mxu0 %v407
      %v2110 = vpop.f32.mrb[0].mxu0
      %v2111 = vadd.f32 %v2063, %v2110
      %v2112 = vpop.f32.mrb[0].mxu0
      %v2113 = vpop.f32.mrb[0].mxu0
      %v2114 = vadd.f32 %v2066, %v2113
      %v2115 = vpop.f32.mrb[0].mxu0
      %2116 = vmatprep.mubr.bf16.mxu0 %v413
      %2117 = vmatmul.mubr.bf16.gmra.mrb[0].mxu0 %v412
      %v2118 = vpop.f32.mrb[0].mxu0
      %v2119 = vadd.f32 %v2071, %v2118
      %v2120 = vpop.f32.mrb[0].mxu0
      %v2121 = vpop.f32.mrb[0].mxu0
      %v2122 = vpop.f32.mrb[0].mxu0
      %2123 = vdwg.mxu0
      %2124 = vmatprep.subr.bf16.mxu0 0
      %2125 = vmatpush1.bf16.msra.mxu0 %v1486
      %2126 = vmatprep.subr.bf16.mxu0 0
      %2127 = vmatpush1.bf16.msra.mxu0 %v1491
      %2128 = vmatprep.subr.bf16.mxu0 0
      %2129 = vmatpush1.bf16.msra.mxu0 %v1496
      %2130 = vmatprep.subr.bf16.mxu0 0
      %2131 = vmatpush1.bf16.msra.mxu0 %v1501
      %2132 = vmatprep.subr.bf16.mxu0 0
      %2133 = vmatpush1.bf16.msra.mxu0 %v1506
      %2134 = vmatprep.subr.bf16.mxu0 0
      %2135 = vmatpush1.bf16.msra.mxu0 %v1511
      %2136 = vmatprep.subr.bf16.mxu0 0
      %2137 = vmatpush1.bf16.msra.mxu0 %v1516
      %2138 = vmatprep.subr.bf16.mxu0 0
      %2139 = vmatpush1.bf16.msra.mxu0 %v1521
      %2140 = vmatprep.subr.bf16.mxu0 0
      %2141 = vmatpush1.bf16.msra.mxu0 0
      %2142 = vmatprep.subr.bf16.mxu0 0
      %2143 = vmatpush1.bf16.msra.mxu0 0
      %2144 = vmatprep.subr.bf16.mxu0 0
      %2145 = vmatpush1.bf16.msra.mxu0 0
      %2146 = vmatprep.subr.bf16.mxu0 0
      %2147 = vmatpush1.bf16.msra.mxu0 0
      %2148 = vmatprep.subr.bf16.mxu0 0
      %2149 = vmatpush1.bf16.msra.mxu0 0
      %2150 = vmatprep.subr.bf16.mxu0 0
      %2151 = vmatpush1.bf16.msra.mxu0 0
      %2152 = vmatprep.subr.bf16.mxu0 0
      %2153 = vmatpush1.bf16.msra.mxu0 0
      %2154 = vmatprep.subr.bf16.mxu0 0
      %2155 = vmatpush1.bf16.msra.mxu0 0
      %2156 = vmatprep.mubr.bf16.mxu0 0
      %2157 = vmatmul.mubr.bf16.gmra.mrb[0].mxu0 %v409
      %v2158 = vpop.f32.mrb[0].mxu0
      %v2159 = vadd.f32 %v2111, %v2158
      %v2160 = vpop.f32.mrb[0].mxu0
      %v2161 = vpop.f32.mrb[0].mxu0
      %v2162 = vadd.f32 %v2114, %v2161
      %v2163 = vpop.f32.mrb[0].mxu0
      %2164 = vmatprep.mubr.bf16.mxu0 0
      %2165 = vmatmul.mubr.bf16.gmra.mrb[0].mxu0 %v414
      %v2166 = vpop.f32.mrb[0].mxu0
      %v2167 = vadd.f32 %v2119, %v2166
      %v2168 = vpop.f32.mrb[0].mxu0
      %v2169 = vpop.f32.mrb[0].mxu0
      %v2170 = vpop.f32.mrb[0].mxu0
      %2171 = vdwg.mxu0
      %v2172 = vld [vmem:[%s375] sm:$0xff]
      %v2173 = vld [vmem:[%s375 + $0x8] sm:$0xff]
      %v2174 = vld [vmem:[%s375 + $0x10] sm:$0xff]
      %v2175 = vld [vmem:[%s375 + $0x18] sm:$0xff]
      %v2176 = vld [vmem:[%s375 + $0x20] sm:$0xff]
      %v2177 = vld [vmem:[%s375 + $0x28] sm:$0xff]
      %v2178 = vld [vmem:[%s375 + $0x30] sm:$0xff]
      %v2179 = vld [vmem:[%s375 + $0x38] sm:$0xff]
      %v2180 = vld [vmem:[%s375 + $0x40] sm:$0xff]
      %v2181 = vld [vmem:[%s375 + $0x48] sm:$0xff]
      %v2182 = vld [vmem:[%s375 + $0x50] sm:$0xff]
      %v2183 = vld [vmem:[%s375 + $0x58] sm:$0xff]
      %v2184 = vld [vmem:[%s375 + $0x60] sm:$0x1]
      %v2185 = vld [vmem:[%s375 + $0x68] sm:$0x1]
      %v2186 = vld [vmem:[%s375 + $0x70] sm:$0x1]
      %v2187 = vld [vmem:[%s375 + $0x78] sm:$0x1]
      %v2188 = vlaneseq
      %v2189 = vshrl.u32 %v2188, 7
      %v2190 = vsub.s32 0, %v2189
      %v2191 = vrot.slane %v2172, %v2190
      %v2192 = vlaneseq
      %v2193 = vshrl.u32 %v2192, 7
      %v2194 = vsub.s32 0, %v2193
      %v2195 = vrot.slane %v2173, %v2194
      %v2196 = vlaneseq
      %v2197 = vshrl.u32 %v2196, 7
      %v2198 = vsub.s32 0, %v2197
      %v2199 = vrot.slane %v2174, %v2198
      %v2200 = vlaneseq
      %v2201 = vshrl.u32 %v2200, 7
      %v2202 = vsub.s32 0, %v2201
      %v2203 = vrot.slane %v2175, %v2202
      %v2204 = vmul.f32 %v1859, %v2191
      %v2205 = vmul.f32 %v1861, %v2195
      %v2206 = vmul.f32 %v2012, %v2199
      %v2207 = vmul.f32 %v2014, %v2203
      %v2208 = vmul.f32 %v1863, %v2191
      %v2209 = vmul.f32 %v1865, %v2195
      %v2210 = vmul.f32 %v2016, %v2199
      %v2211 = vmul.f32 %v2018, %v2203
      %v2212 = vlaneseq
      %v2213 = vshrl.u32 %v2212, 7
      %v2214 = vsub.s32 1, %v2213
      %v2215 = vrot.slane %v2172, %v2214
      %v2216 = vlaneseq
      %v2217 = vshrl.u32 %v2216, 7
      %v2218 = vsub.s32 1, %v2217
      %v2219 = vrot.slane %v2173, %v2218
      %v2220 = vlaneseq
      %v2221 = vshrl.u32 %v2220, 7
      %v2222 = vsub.s32 1, %v2221
      %v2223 = vrot.slane %v2174, %v2222
      %v2224 = vlaneseq
      %v2225 = vshrl.u32 %v2224, 7
      %v2226 = vsub.s32 1, %v2225
      %v2227 = vrot.slane %v2175, %v2226
      %2232 = vrot.lane.b32.xlu0 %v2215, 32
      %v2233 = vpop.permute.xlu0 %2232
      %2234 = vrot.lane.b32.xlu0 %v2219, 32
      %v2235 = vpop.permute.xlu0 %2234
      %2236 = vrot.lane.b32.xlu0 %v2223, 32
      %v2237 = vpop.permute.xlu0 %2236
      %2238 = vrot.lane.b32.xlu0 %v2227, 32
      %v2239 = vpop.permute.xlu0 %2238
      %vm2240 = vcmask 261120
      %v2241 = vsel %vm2240, %v2233, %v2235
      %v2242 = vsel %vm2240, %v2235, %v2237
      %v2243 = vsel %vm2240, %v2237, %v2239
      %v2249 = vmul.f32 %v1859, %v2233
      %v2250 = vmul.f32 %v1861, %v2241
      %v2251 = vmul.f32 %v2012, %v2242
      %v2252 = vmul.f32 %v2014, %v2243
      %v2253 = vmul.f32 %v2159, %v2239
      %v2254 = vmul.f32 %v1863, %v2233
      %v2255 = vmul.f32 %v1865, %v2241
      %v2256 = vmul.f32 %v2016, %v2242
      %v2257 = vmul.f32 %v2018, %v2243
      %v2258 = vmul.f32 %v2162, %v2239
      %2269 = vrot.lane.b32.xlu0 %v2249, 96
      %v2270 = vpop.permute.xlu0 %2269
      %2271 = vrot.lane.b32.xlu0 %v2250, 96
      %v2272 = vpop.permute.xlu0 %2271
      %2273 = vrot.lane.b32.xlu0 %v2251, 96
      %v2274 = vpop.permute.xlu0 %2273
      %2275 = vrot.lane.b32.xlu0 %v2252, 96
      %v2276 = vpop.permute.xlu0 %2275
      %2277 = vrot.lane.b32.xlu0 %v2253, 96
      %v2278 = vpop.permute.xlu0 %2277
      %2279 = vrot.lane.b32.xlu0 %v2254, 96
      %v2280 = vpop.permute.xlu0 %2279
      %2281 = vrot.lane.b32.xlu0 %v2255, 96
      %v2282 = vpop.permute.xlu0 %2281
      %2283 = vrot.lane.b32.xlu0 %v2256, 96
      %v2284 = vpop.permute.xlu0 %2283
      %2285 = vrot.lane.b32.xlu0 %v2257, 96
      %v2286 = vpop.permute.xlu0 %2285
      %2287 = vrot.lane.b32.xlu0 %v2258, 96
      %v2288 = vpop.permute.xlu0 %2287
      %vm2289 = vcmask 785408
      %v2290 = vsel %vm2289, %v2270, %v2272
      %v2291 = vsel %vm2289, %v2272, %v2274
      %v2292 = vsel %vm2289, %v2274, %v2276
      %v2293 = vsel %vm2289, %v2276, %v2278
      %v2294 = vsel %vm2289, %v2280, %v2282
      %v2295 = vsel %vm2289, %v2282, %v2284
      %v2296 = vsel %vm2289, %v2284, %v2286
      %v2297 = vsel %vm2289, %v2286, %v2288
      %v2306 = vadd.f32 %v2204, %v2290
      %v2307 = vadd.f32 %v2205, %v2291
      %v2308 = vadd.f32 %v2206, %v2292
      %v2309 = vadd.f32 %v2207, %v2293
      %v2310 = vadd.f32 %v2208, %v2294
      %v2311 = vadd.f32 %v2209, %v2295
      %v2312 = vadd.f32 %v2210, %v2296
      %v2313 = vadd.f32 %v2211, %v2297
      %v2314 = vlaneseq
      %v2315 = vshrl.u32 %v2314, 7
      %v2316 = vsub.s32 2, %v2315
      %v2317 = vrot.slane %v2172, %v2316
      %v2318 = vlaneseq
      %v2319 = vshrl.u32 %v2318, 7
      %v2320 = vsub.s32 2, %v2319
      %v2321 = vrot.slane %v2173, %v2320
      %v2322 = vlaneseq
      %v2323 = vshrl.u32 %v2322, 7
      %v2324 = vsub.s32 2, %v2323
      %v2325 = vrot.slane %v2174, %v2324
      %v2326 = vlaneseq
      %v2327 = vshrl.u32 %v2326, 7
      %v2328 = vsub.s32 2, %v2327
      %v2329 = vrot.slane %v2175, %v2328
      %2334 = vrot.lane.b32.xlu0 %v2317, 64
      %v2335 = vpop.permute.xlu0 %2334
      %2336 = vrot.lane.b32.xlu0 %v2321, 64
      %v2337 = vpop.permute.xlu0 %2336
      %2338 = vrot.lane.b32.xlu0 %v2325, 64
      %v2339 = vpop.permute.xlu0 %2338
      %2340 = vrot.lane.b32.xlu0 %v2329, 64
      %v2341 = vpop.permute.xlu0 %2340
      %vm2342 = vcmask 523264
      %v2343 = vsel %vm2342, %v2335, %v2337
      %v2344 = vsel %vm2342, %v2337, %v2339
      %v2345 = vsel %vm2342, %v2339, %v2341
      %v2351 = vmul.f32 %v1859, %v2335
      %v2352 = vmul.f32 %v1861, %v2343
      %v2353 = vmul.f32 %v2012, %v2344
      %v2354 = vmul.f32 %v2014, %v2345
      %v2355 = vmul.f32 %v2159, %v2341
      %v2356 = vmul.f32 %v1863, %v2335
      %v2357 = vmul.f32 %v1865, %v2343
      %v2358 = vmul.f32 %v2016, %v2344
      %v2359 = vmul.f32 %v2018, %v2345
      %v2360 = vmul.f32 %v2162, %v2341
      %2371 = vrot.lane.b32.xlu0 %v2351, 64
      %v2372 = vpop.permute.xlu0 %2371
      %2373 = vrot.lane.b32.xlu0 %v2352, 64
      %v2374 = vpop.permute.xlu0 %2373
      %2375 = vrot.lane.b32.xlu0 %v2353, 64
      %v2376 = vpop.permute.xlu0 %2375
      %2377 = vrot.lane.b32.xlu0 %v2354, 64
      %v2378 = vpop.permute.xlu0 %2377
      %2379 = vrot.lane.b32.xlu0 %v2355, 64
      %v2380 = vpop.permute.xlu0 %2379
      %2381 = vrot.lane.b32.xlu0 %v2356, 64
      %v2382 = vpop.permute.xlu0 %2381
      %2383 = vrot.lane.b32.xlu0 %v2357, 64
      %v2384 = vpop.permute.xlu0 %2383
      %2385 = vrot.lane.b32.xlu0 %v2358, 64
      %v2386 = vpop.permute.xlu0 %2385
      %2387 = vrot.lane.b32.xlu0 %v2359, 64
      %v2388 = vpop.permute.xlu0 %2387
      %2389 = vrot.lane.b32.xlu0 %v2360, 64
      %v2390 = vpop.permute.xlu0 %2389
      %v2391 = vsel %vm2342, %v2372, %v2374
      %v2392 = vsel %vm2342, %v2374, %v2376
      %v2393 = vsel %vm2342, %v2376, %v2378
      %v2394 = vsel %vm2342, %v2378, %v2380
      %v2395 = vsel %vm2342, %v2382, %v2384
      %v2396 = vsel %vm2342, %v2384, %v2386
      %v2397 = vsel %vm2342, %v2386, %v2388
      %v2398 = vsel %vm2342, %v2388, %v2390
      %v2407 = vadd.f32 %v2306, %v2391
      %v2408 = vadd.f32 %v2307, %v2392
      %v2409 = vadd.f32 %v2308, %v2393
      %v2410 = vadd.f32 %v2309, %v2394
      %v2411 = vadd.f32 %v2310, %v2395
      %v2412 = vadd.f32 %v2311, %v2396
      %v2413 = vadd.f32 %v2312, %v2397
      %v2414 = vadd.f32 %v2313, %v2398
      %v2415 = vlaneseq
      %v2416 = vshrl.u32 %v2415, 7
      %v2417 = vsub.s32 3, %v2416
      %v2418 = vrot.slane %v2172, %v2417
      %v2419 = vlaneseq
      %v2420 = vshrl.u32 %v2419, 7
      %v2421 = vsub.s32 3, %v2420
      %v2422 = vrot.slane %v2173, %v2421
      %v2423 = vlaneseq
      %v2424 = vshrl.u32 %v2423, 7
      %v2425 = vsub.s32 3, %v2424
      %v2426 = vrot.slane %v2174, %v2425
      %v2427 = vlaneseq
      %v2428 = vshrl.u32 %v2427, 7
      %v2429 = vsub.s32 3, %v2428
      %v2430 = vrot.slane %v2175, %v2429
      %2435 = vrot.lane.b32.xlu0 %v2418, 96
      %v2436 = vpop.permute.xlu0 %2435
      %2437 = vrot.lane.b32.xlu0 %v2422, 96
      %v2438 = vpop.permute.xlu0 %2437
      %2439 = vrot.lane.b32.xlu0 %v2426, 96
      %v2440 = vpop.permute.xlu0 %2439
      %2441 = vrot.lane.b32.xlu0 %v2430, 96
      %v2442 = vpop.permute.xlu0 %2441
      %v2443 = vsel %vm2289, %v2436, %v2438
      %v2444 = vsel %vm2289, %v2438, %v2440
      %v2445 = vsel %vm2289, %v2440, %v2442
      %v2451 = vmul.f32 %v1859, %v2436
      %v2452 = vmul.f32 %v1861, %v2443
      %v2453 = vmul.f32 %v2012, %v2444
      %v2454 = vmul.f32 %v2014, %v2445
      %v2455 = vmul.f32 %v2159, %v2442
      %v2456 = vmul.f32 %v1863, %v2436
      %v2457 = vmul.f32 %v1865, %v2443
      %v2458 = vmul.f32 %v2016, %v2444
      %v2459 = vmul.f32 %v2018, %v2445
      %v2460 = vmul.f32 %v2162, %v2442
      %2471 = vrot.lane.b32.xlu0 %v2451, 32
      %v2472 = vpop.permute.xlu0 %2471
      %2473 = vrot.lane.b32.xlu0 %v2452, 32
      %v2474 = vpop.permute.xlu0 %2473
      %2475 = vrot.lane.b32.xlu0 %v2453, 32
      %v2476 = vpop.permute.xlu0 %2475
      %2477 = vrot.lane.b32.xlu0 %v2454, 32
      %v2478 = vpop.permute.xlu0 %2477
      %2479 = vrot.lane.b32.xlu0 %v2455, 32
      %v2480 = vpop.permute.xlu0 %2479
      %2481 = vrot.lane.b32.xlu0 %v2456, 32
      %v2482 = vpop.permute.xlu0 %2481
      %2483 = vrot.lane.b32.xlu0 %v2457, 32
      %v2484 = vpop.permute.xlu0 %2483
      %2485 = vrot.lane.b32.xlu0 %v2458, 32
      %v2486 = vpop.permute.xlu0 %2485
      %2487 = vrot.lane.b32.xlu0 %v2459, 32
      %v2488 = vpop.permute.xlu0 %2487
      %2489 = vrot.lane.b32.xlu0 %v2460, 32
      %v2490 = vpop.permute.xlu0 %2489
      %v2491 = vsel %vm2240, %v2472, %v2474
      %v2492 = vsel %vm2240, %v2474, %v2476
      %v2493 = vsel %vm2240, %v2476, %v2478
      %v2494 = vsel %vm2240, %v2478, %v2480
      %v2495 = vsel %vm2240, %v2482, %v2484
      %v2496 = vsel %vm2240, %v2484, %v2486
      %v2497 = vsel %vm2240, %v2486, %v2488
      %v2498 = vsel %vm2240, %v2488, %v2490
      %v2507 = vadd.f32 %v2407, %v2491
      %v2508 = vadd.f32 %v2408, %v2492
      %v2509 = vadd.f32 %v2409, %v2493
      %v2510 = vadd.f32 %v2410, %v2494
      %v2511 = vadd.f32 %v2411, %v2495
      %v2512 = vadd.f32 %v2412, %v2496
      %v2513 = vadd.f32 %v2413, %v2497
      %v2514 = vadd.f32 %v2414, %v2498
      %v2515 = vlaneseq
      %v2516 = vshrl.u32 %v2515, 7
      %v2517 = vsub.s32 4, %v2516
      %v2518 = vrot.slane %v2172, %v2517
      %v2519 = vlaneseq
      %v2520 = vshrl.u32 %v2519, 7
      %v2521 = vsub.s32 4, %v2520
      %v2522 = vrot.slane %v2173, %v2521
      %v2523 = vlaneseq
      %v2524 = vshrl.u32 %v2523, 7
      %v2525 = vsub.s32 4, %v2524
      %v2526 = vrot.slane %v2174, %v2525
      %v2527 = vlaneseq
      %v2528 = vshrl.u32 %v2527, 7
      %v2529 = vsub.s32 4, %v2528
      %v2530 = vrot.slane %v2175, %v2529
      %v2531 = vmul.f32 %v1861, %v2518
      %v2532 = vmul.f32 %v2012, %v2522
      %v2533 = vmul.f32 %v2014, %v2526
      %v2534 = vmul.f32 %v2159, %v2530
      %v2535 = vmul.f32 %v1865, %v2518
      %v2536 = vmul.f32 %v2016, %v2522
      %v2537 = vmul.f32 %v2018, %v2526
      %v2538 = vmul.f32 %v2162, %v2530
      %v2539 = vadd.f32 %v2507, %v2531
      %v2540 = vadd.f32 %v2508, %v2532
      %v2541 = vadd.f32 %v2509, %v2533
      %v2542 = vadd.f32 %v2510, %v2534
      %v2543 = vadd.f32 %v2511, %v2535
      %v2544 = vadd.f32 %v2512, %v2536
      %v2545 = vadd.f32 %v2513, %v2537
      %v2546 = vadd.f32 %v2514, %v2538
      %v2547 = vlaneseq
      %v2548 = vshrl.u32 %v2547, 7
      %v2549 = vsub.s32 5, %v2548
      %v2550 = vrot.slane %v2172, %v2549
      %v2551 = vlaneseq
      %v2552 = vshrl.u32 %v2551, 7
      %v2553 = vsub.s32 5, %v2552
      %v2554 = vrot.slane %v2173, %v2553
      %v2555 = vlaneseq
      %v2556 = vshrl.u32 %v2555, 7
      %v2557 = vsub.s32 5, %v2556
      %v2558 = vrot.slane %v2174, %v2557
      %v2559 = vlaneseq
      %v2560 = vshrl.u32 %v2559, 7
      %v2561 = vsub.s32 5, %v2560
      %v2562 = vrot.slane %v2175, %v2561
      %v2563 = vmul.f32 %v1859, %v2550
      %v2564 = vmul.f32 %v1861, %v2554
      %v2565 = vmul.f32 %v2012, %v2558
      %v2566 = vmul.f32 %v2014, %v2562
      %v2567 = vmul.f32 %v1863, %v2550
      %v2568 = vmul.f32 %v1865, %v2554
      %v2569 = vmul.f32 %v2016, %v2558
      %v2570 = vmul.f32 %v2018, %v2562
      %v2571 = vmul.f32 %v1869, %v2550
      %v2572 = vmul.f32 %v1871, %v2554
      %v2573 = vmul.f32 %v2022, %v2558
      %v2574 = vmul.f32 %v2024, %v2562
      %vm2587 = vcmask 1046528
      %v2588 = vrot.slane %v2563, 1
      %v2589 = vrot.slane %v2567, 1
      %v2590 = vsel %vm2587, %v2588, %v2589
      %v2591 = vrot.slane %v2564, 1
      %v2592 = vrot.slane %v2568, 1
      %v2593 = vsel %vm2587, %v2591, %v2592
      %v2594 = vrot.slane %v2565, 1
      %v2595 = vrot.slane %v2569, 1
      %v2596 = vsel %vm2587, %v2594, %v2595
      %v2597 = vrot.slane %v2566, 1
      %v2598 = vrot.slane %v2570, 1
      %v2599 = vsel %vm2587, %v2597, %v2598
      %v2600 = vrot.slane %v2571, 1
      %v2601 = vsel %vm2587, %v2589, %v2600
      %v2602 = vrot.slane %v2572, 1
      %v2603 = vsel %vm2587, %v2592, %v2602
      %v2604 = vrot.slane %v2573, 1
      %v2605 = vsel %vm2587, %v2595, %v2604
      %v2606 = vrot.slane %v2574, 1
      %v2607 = vsel %vm2587, %v2598, %v2606
      %v2616 = vadd.f32 %v2539, %v2590
      %v2617 = vadd.f32 %v2540, %v2593
      %v2618 = vadd.f32 %v2541, %v2596
      %v2619 = vadd.f32 %v2542, %v2599
      %v2620 = vadd.f32 %v2543, %v2601
      %v2621 = vadd.f32 %v2544, %v2603
      %v2622 = vadd.f32 %v2545, %v2605
      %v2623 = vadd.f32 %v2546, %v2607
      %v2624 = vlaneseq
      %v2625 = vshrl.u32 %v2624, 7
      %v2626 = vsub.s32 6, %v2625
      %v2627 = vrot.slane %v2172, %v2626
      %v2628 = vlaneseq
      %v2629 = vshrl.u32 %v2628, 7
      %v2630 = vsub.s32 6, %v2629
      %v2631 = vrot.slane %v2173, %v2630
      %v2632 = vlaneseq
      %v2633 = vshrl.u32 %v2632, 7
      %v2634 = vsub.s32 6, %v2633
      %v2635 = vrot.slane %v2174, %v2634
      %v2636 = vlaneseq
      %v2637 = vshrl.u32 %v2636, 7
      %v2638 = vsub.s32 6, %v2637
      %v2639 = vrot.slane %v2175, %v2638
      %2644 = vrot.lane.b32.xlu0 %v2627, 32
      %v2645 = vpop.permute.xlu0 %2644
      %2646 = vrot.lane.b32.xlu0 %v2631, 32
      %v2647 = vpop.permute.xlu0 %2646
      %2648 = vrot.lane.b32.xlu0 %v2635, 32
      %v2649 = vpop.permute.xlu0 %2648
      %2650 = vrot.lane.b32.xlu0 %v2639, 32
      %v2651 = vpop.permute.xlu0 %2650
      %v2652 = vsel %vm2240, %v2645, %v2647
      %v2653 = vsel %vm2240, %v2647, %v2649
      %v2654 = vsel %vm2240, %v2649, %v2651
      %v2660 = vmul.f32 %v1859, %v2645
      %v2661 = vmul.f32 %v1861, %v2652
      %v2662 = vmul.f32 %v2012, %v2653
      %v2663 = vmul.f32 %v2014, %v2654
      %v2664 = vmul.f32 %v2159, %v2651
      %v2665 = vmul.f32 %v1863, %v2645
      %v2666 = vmul.f32 %v1865, %v2652
      %v2667 = vmul.f32 %v2016, %v2653
      %v2668 = vmul.f32 %v2018, %v2654
      %v2669 = vmul.f32 %v2162, %v2651
      %v2670 = vmul.f32 %v1869, %v2645
      %v2671 = vmul.f32 %v1871, %v2652
      %v2672 = vmul.f32 %v2022, %v2653
      %v2673 = vmul.f32 %v2024, %v2654
      %v2674 = vmul.f32 %v2167, %v2651
      %v2690 = vrot.slane %v2660, 1
      %v2691 = vrot.slane %v2665, 1
      %v2692 = vsel %vm2587, %v2690, %v2691
      %v2693 = vrot.slane %v2661, 1
      %v2694 = vrot.slane %v2666, 1
      %v2695 = vsel %vm2587, %v2693, %v2694
      %v2696 = vrot.slane %v2662, 1
      %v2697 = vrot.slane %v2667, 1
      %v2698 = vsel %vm2587, %v2696, %v2697
      %v2699 = vrot.slane %v2663, 1
      %v2700 = vrot.slane %v2668, 1
      %v2701 = vsel %vm2587, %v2699, %v2700
      %v2702 = vrot.slane %v2664, 1
      %v2703 = vrot.slane %v2669, 1
      %v2704 = vsel %vm2587, %v2702, %v2703
      %v2705 = vrot.slane %v2670, 1
      %v2706 = vsel %vm2587, %v2691, %v2705
      %v2707 = vrot.slane %v2671, 1
      %v2708 = vsel %vm2587, %v2694, %v2707
      %v2709 = vrot.slane %v2672, 1
      %v2710 = vsel %vm2587, %v2697, %v2709
      %v2711 = vrot.slane %v2673, 1
      %v2712 = vsel %vm2587, %v2700, %v2711
      %v2713 = vrot.slane %v2674, 1
      %v2714 = vsel %vm2587, %v2703, %v2713
      %2715 = vrot.lane.b32.xlu0 %v2692, 96
      %v2716 = vpop.permute.xlu0 %2715
      %2717 = vrot.lane.b32.xlu0 %v2695, 96
      %v2718 = vpop.permute.xlu0 %2717
      %2719 = vrot.lane.b32.xlu0 %v2698, 96
      %v2720 = vpop.permute.xlu0 %2719
      %2721 = vrot.lane.b32.xlu0 %v2701, 96
      %v2722 = vpop.permute.xlu0 %2721
      %2723 = vrot.lane.b32.xlu0 %v2704, 96
      %v2724 = vpop.permute.xlu0 %2723
      %2725 = vrot.lane.b32.xlu0 %v2706, 96
      %v2726 = vpop.permute.xlu0 %2725
      %2727 = vrot.lane.b32.xlu0 %v2708, 96
      %v2728 = vpop.permute.xlu0 %2727
      %2729 = vrot.lane.b32.xlu0 %v2710, 96
      %v2730 = vpop.permute.xlu0 %2729
      %2731 = vrot.lane.b32.xlu0 %v2712, 96
      %v2732 = vpop.permute.xlu0 %2731
      %2733 = vrot.lane.b32.xlu0 %v2714, 96
      %v2734 = vpop.permute.xlu0 %2733
      %v2735 = vsel %vm2289, %v2716, %v2718
      %v2736 = vsel %vm2289, %v2718, %v2720
      %v2737 = vsel %vm2289, %v2720, %v2722
      %v2738 = vsel %vm2289, %v2722, %v2724
      %v2739 = vsel %vm2289, %v2726, %v2728
      %v2740 = vsel %vm2289, %v2728, %v2730
      %v2741 = vsel %vm2289, %v2730, %v2732
      %v2742 = vsel %vm2289, %v2732, %v2734
      %v2751 = vadd.f32 %v2616, %v2735
      %v2752 = vadd.f32 %v2617, %v2736
      %v2753 = vadd.f32 %v2618, %v2737
      %v2754 = vadd.f32 %v2619, %v2738
      %v2755 = vadd.f32 %v2620, %v2739
      %v2756 = vadd.f32 %v2621, %v2740
      %v2757 = vadd.f32 %v2622, %v2741
      %v2758 = vadd.f32 %v2623, %v2742
      %v2759 = vlaneseq
      %v2760 = vshrl.u32 %v2759, 7
      %v2761 = vsub.s32 7, %v2760
      %v2762 = vrot.slane %v2172, %v2761
      %v2763 = vlaneseq
      %v2764 = vshrl.u32 %v2763, 7
      %v2765 = vsub.s32 7, %v2764
      %v2766 = vrot.slane %v2173, %v2765
      %v2767 = vlaneseq
      %v2768 = vshrl.u32 %v2767, 7
      %v2769 = vsub.s32 7, %v2768
      %v2770 = vrot.slane %v2174, %v2769
      %v2771 = vlaneseq
      %v2772 = vshrl.u32 %v2771, 7
      %v2773 = vsub.s32 7, %v2772
      %v2774 = vrot.slane %v2175, %v2773
      %2779 = vrot.lane.b32.xlu0 %v2762, 64
      %v2780 = vpop.permute.xlu0 %2779
      %2781 = vrot.lane.b32.xlu0 %v2766, 64
      %v2782 = vpop.permute.xlu0 %2781
      %2783 = vrot.lane.b32.xlu0 %v2770, 64
      %v2784 = vpop.permute.xlu0 %2783
      %2785 = vrot.lane.b32.xlu0 %v2774, 64
      %v2786 = vpop.permute.xlu0 %2785
      %v2787 = vsel %vm2342, %v2780, %v2782
      %v2788 = vsel %vm2342, %v2782, %v2784
      %v2789 = vsel %vm2342, %v2784, %v2786
      %v2795 = vmul.f32 %v1859, %v2780
      %v2796 = vmul.f32 %v1861, %v2787
      %v2797 = vmul.f32 %v2012, %v2788
      %v2798 = vmul.f32 %v2014, %v2789
      %v2799 = vmul.f32 %v2159, %v2786
      %v2800 = vmul.f32 %v1863, %v2780
      %v2801 = vmul.f32 %v1865, %v2787
      %v2802 = vmul.f32 %v2016, %v2788
      %v2803 = vmul.f32 %v2018, %v2789
      %v2804 = vmul.f32 %v2162, %v2786
      %v2805 = vmul.f32 %v1869, %v2780
      %v2806 = vmul.f32 %v1871, %v2787
      %v2807 = vmul.f32 %v2022, %v2788
      %v2808 = vmul.f32 %v2024, %v2789
      %v2809 = vmul.f32 %v2167, %v2786
      %v2825 = vrot.slane %v2795, 1
      %v2826 = vrot.slane %v2800, 1
      %v2827 = vsel %vm2587, %v2825, %v2826
      %v2828 = vrot.slane %v2796, 1
      %v2829 = vrot.slane %v2801, 1
      %v2830 = vsel %vm2587, %v2828, %v2829
      %v2831 = vrot.slane %v2797, 1
      %v2832 = vrot.slane %v2802, 1
      %v2833 = vsel %vm2587, %v2831, %v2832
      %v2834 = vrot.slane %v2798, 1
      %v2835 = vrot.slane %v2803, 1
      %v2836 = vsel %vm2587, %v2834, %v2835
      %v2837 = vrot.slane %v2799, 1
      %v2838 = vrot.slane %v2804, 1
      %v2839 = vsel %vm2587, %v2837, %v2838
      %v2840 = vrot.slane %v2805, 1
      %v2841 = vsel %vm2587, %v2826, %v2840
      %v2842 = vrot.slane %v2806, 1
      %v2843 = vsel %vm2587, %v2829, %v2842
      %v2844 = vrot.slane %v2807, 1
      %v2845 = vsel %vm2587, %v2832, %v2844
      %v2846 = vrot.slane %v2808, 1
      %v2847 = vsel %vm2587, %v2835, %v2846
      %v2848 = vrot.slane %v2809, 1
      %v2849 = vsel %vm2587, %v2838, %v2848
      %2850 = vrot.lane.b32.xlu0 %v2827, 64
      %v2851 = vpop.permute.xlu0 %2850
      %2852 = vrot.lane.b32.xlu0 %v2830, 64
      %v2853 = vpop.permute.xlu0 %2852
      %2854 = vrot.lane.b32.xlu0 %v2833, 64
      %v2855 = vpop.permute.xlu0 %2854
      %2856 = vrot.lane.b32.xlu0 %v2836, 64
      %v2857 = vpop.permute.xlu0 %2856
      %2858 = vrot.lane.b32.xlu0 %v2839, 64
      %v2859 = vpop.permute.xlu0 %2858
      %2860 = vrot.lane.b32.xlu0 %v2841, 64
      %v2861 = vpop.permute.xlu0 %2860
      %2862 = vrot.lane.b32.xlu0 %v2843, 64
      %v2863 = vpop.permute.xlu0 %2862
      %2864 = vrot.lane.b32.xlu0 %v2845, 64
      %v2865 = vpop.permute.xlu0 %2864
      %2866 = vrot.lane.b32.xlu0 %v2847, 64
      %v2867 = vpop.permute.xlu0 %2866
      %2868 = vrot.lane.b32.xlu0 %v2849, 64
      %v2869 = vpop.permute.xlu0 %2868
      %v2870 = vsel %vm2342, %v2851, %v2853
      %v2871 = vsel %vm2342, %v2853, %v2855
      %v2872 = vsel %vm2342, %v2855, %v2857
      %v2873 = vsel %vm2342, %v2857, %v2859
      %v2874 = vsel %vm2342, %v2861, %v2863
      %v2875 = vsel %vm2342, %v2863, %v2865
      %v2876 = vsel %vm2342, %v2865, %v2867
      %v2877 = vsel %vm2342, %v2867, %v2869
      %v2886 = vadd.f32 %v2751, %v2870
      %v2887 = vadd.f32 %v2752, %v2871
      %v2888 = vadd.f32 %v2753, %v2872
      %v2889 = vadd.f32 %v2754, %v2873
      %v2890 = vadd.f32 %v2755, %v2874
      %v2891 = vadd.f32 %v2756, %v2875
      %v2892 = vadd.f32 %v2757, %v2876
      %v2893 = vadd.f32 %v2758, %v2877
      %v2894 = vlaneseq
      %v2895 = vshrl.u32 %v2894, 7
      %v2896 = vsub.s32 0, %v2895
      %v2897 = vrot.slane %v2176, %v2896
      %v2898 = vlaneseq
      %v2899 = vshrl.u32 %v2898, 7
      %v2900 = vsub.s32 0, %v2899
      %v2901 = vrot.slane %v2177, %v2900
      %v2902 = vlaneseq
      %v2903 = vshrl.u32 %v2902, 7
      %v2904 = vsub.s32 0, %v2903
      %v2905 = vrot.slane %v2178, %v2904
      %v2906 = vlaneseq
      %v2907 = vshrl.u32 %v2906, 7
      %v2908 = vsub.s32 0, %v2907
      %v2909 = vrot.slane %v2179, %v2908
      %2914 = vrot.lane.b32.xlu0 %v2897, 96
      %v2915 = vpop.permute.xlu0 %2914
      %2916 = vrot.lane.b32.xlu0 %v2901, 96
      %v2917 = vpop.permute.xlu0 %2916
      %2918 = vrot.lane.b32.xlu0 %v2905, 96
      %v2919 = vpop.permute.xlu0 %2918
      %2920 = vrot.lane.b32.xlu0 %v2909, 96
      %v2921 = vpop.permute.xlu0 %2920
      %v2922 = vsel %vm2289, %v2915, %v2917
      %v2923 = vsel %vm2289, %v2917, %v2919
      %v2924 = vsel %vm2289, %v2919, %v2921
      %v2930 = vmul.f32 %v1859, %v2915
      %v2931 = vmul.f32 %v1861, %v2922
      %v2932 = vmul.f32 %v2012, %v2923
      %v2933 = vmul.f32 %v2014, %v2924
      %v2934 = vmul.f32 %v2159, %v2921
      %v2935 = vmul.f32 %v1863, %v2915
      %v2936 = vmul.f32 %v1865, %v2922
      %v2937 = vmul.f32 %v2016, %v2923
      %v2938 = vmul.f32 %v2018, %v2924
      %v2939 = vmul.f32 %v2162, %v2921
      %v2940 = vmul.f32 %v1869, %v2915
      %v2941 = vmul.f32 %v1871, %v2922
      %v2942 = vmul.f32 %v2022, %v2923
      %v2943 = vmul.f32 %v2024, %v2924
      %v2944 = vmul.f32 %v2167, %v2921
      %v2960 = vrot.slane %v2930, 1
      %v2961 = vrot.slane %v2935, 1
      %v2962 = vsel %vm2587, %v2960, %v2961
      %v2963 = vrot.slane %v2931, 1
      %v2964 = vrot.slane %v2936, 1
      %v2965 = vsel %vm2587, %v2963, %v2964
      %v2966 = vrot.slane %v2932, 1
      %v2967 = vrot.slane %v2937, 1
      %v2968 = vsel %vm2587, %v2966, %v2967
      %v2969 = vrot.slane %v2933, 1
      %v2970 = vrot.slane %v2938, 1
      %v2971 = vsel %vm2587, %v2969, %v2970
      %v2972 = vrot.slane %v2934, 1
      %v2973 = vrot.slane %v2939, 1
      %v2974 = vsel %vm2587, %v2972, %v2973
      %v2975 = vrot.slane %v2940, 1
      %v2976 = vsel %vm2587, %v2961, %v2975
      %v2977 = vrot.slane %v2941, 1
      %v2978 = vsel %vm2587, %v2964, %v2977
      %v2979 = vrot.slane %v2942, 1
      %v2980 = vsel %vm2587, %v2967, %v2979
      %v2981 = vrot.slane %v2943, 1
      %v2982 = vsel %vm2587, %v2970, %v2981
      %v2983 = vrot.slane %v2944, 1
      %v2984 = vsel %vm2587, %v2973, %v2983
      %2985 = vrot.lane.b32.xlu0 %v2962, 32
      %v2986 = vpop.permute.xlu0 %2985
      %2987 = vrot.lane.b32.xlu0 %v2965, 32
      %v2988 = vpop.permute.xlu0 %2987
      %2989 = vrot.lane.b32.xlu0 %v2968, 32
      %v2990 = vpop.permute.xlu0 %2989
      %2991 = vrot.lane.b32.xlu0 %v2971, 32
      %v2992 = vpop.permute.xlu0 %2991
      %2993 = vrot.lane.b32.xlu0 %v2974, 32
      %v2994 = vpop.permute.xlu0 %2993
      %2995 = vrot.lane.b32.xlu0 %v2976, 32
      %v2996 = vpop.permute.xlu0 %2995
      %2997 = vrot.lane.b32.xlu0 %v2978, 32
      %v2998 = vpop.permute.xlu0 %2997
      %2999 = vrot.lane.b32.xlu0 %v2980, 32
      %v3000 = vpop.permute.xlu0 %2999
      %3001 = vrot.lane.b32.xlu0 %v2982, 32
      %v3002 = vpop.permute.xlu0 %3001
      %3003 = vrot.lane.b32.xlu0 %v2984, 32
      %v3004 = vpop.permute.xlu0 %3003
      %v3005 = vsel %vm2240, %v2986, %v2988
      %v3006 = vsel %vm2240, %v2988, %v2990
      %v3007 = vsel %vm2240, %v2990, %v2992
      %v3008 = vsel %vm2240, %v2992, %v2994
      %v3009 = vsel %vm2240, %v2996, %v2998
      %v3010 = vsel %vm2240, %v2998, %v3000
      %v3011 = vsel %vm2240, %v3000, %v3002
      %v3012 = vsel %vm2240, %v3002, %v3004
      %v3021 = vadd.f32 %v2886, %v3005
      %v3022 = vadd.f32 %v2887, %v3006
      %v3023 = vadd.f32 %v2888, %v3007
      %v3024 = vadd.f32 %v2889, %v3008
      %v3025 = vadd.f32 %v2890, %v3009
      %v3026 = vadd.f32 %v2891, %v3010
      %v3027 = vadd.f32 %v2892, %v3011
      %v3028 = vadd.f32 %v2893, %v3012
      %v3029 = vlaneseq
      %v3030 = vshrl.u32 %v3029, 7
      %v3031 = vsub.s32 1, %v3030
      %v3032 = vrot.slane %v2176, %v3031
      %v3033 = vlaneseq
      %v3034 = vshrl.u32 %v3033, 7
      %v3035 = vsub.s32 1, %v3034
      %v3036 = vrot.slane %v2177, %v3035
      %v3037 = vlaneseq
      %v3038 = vshrl.u32 %v3037, 7
      %v3039 = vsub.s32 1, %v3038
      %v3040 = vrot.slane %v2178, %v3039
      %v3041 = vlaneseq
      %v3042 = vshrl.u32 %v3041, 7
      %v3043 = vsub.s32 1, %v3042
      %v3044 = vrot.slane %v2179, %v3043
      %v3045 = vmul.f32 %v1861, %v3032
      %v3046 = vmul.f32 %v2012, %v3036
      %v3047 = vmul.f32 %v2014, %v3040
      %v3048 = vmul.f32 %v2159, %v3044
      %v3049 = vmul.f32 %v1865, %v3032
      %v3050 = vmul.f32 %v2016, %v3036
      %v3051 = vmul.f32 %v2018, %v3040
      %v3052 = vmul.f32 %v2162, %v3044
      %v3053 = vmul.f32 %v1871, %v3032
      %v3054 = vmul.f32 %v2022, %v3036
      %v3055 = vmul.f32 %v2024, %v3040
      %v3056 = vmul.f32 %v2167, %v3044
      %v3069 = vrot.slane %v3045, 1
      %v3070 = vrot.slane %v3049, 1
      %v3071 = vsel %vm2587, %v3069, %v3070
      %v3072 = vrot.slane %v3046, 1
      %v3073 = vrot.slane %v3050, 1
      %v3074 = vsel %vm2587, %v3072, %v3073
      %v3075 = vrot.slane %v3047, 1
      %v3076 = vrot.slane %v3051, 1
      %v3077 = vsel %vm2587, %v3075, %v3076
      %v3078 = vrot.slane %v3048, 1
      %v3079 = vrot.slane %v3052, 1
      %v3080 = vsel %vm2587, %v3078, %v3079
      %v3081 = vrot.slane %v3053, 1
      %v3082 = vsel %vm2587, %v3070, %v3081
      %v3083 = vrot.slane %v3054, 1
      %v3084 = vsel %vm2587, %v3073, %v3083
      %v3085 = vrot.slane %v3055, 1
      %v3086 = vsel %vm2587, %v3076, %v3085
      %v3087 = vrot.slane %v3056, 1
      %v3088 = vsel %vm2587, %v3079, %v3087
      %v3097 = vadd.f32 %v3021, %v3071
      %v3098 = vadd.f32 %v3022, %v3074
      %v3099 = vadd.f32 %v3023, %v3077
      %v3100 = vadd.f32 %v3024, %v3080
      %v3101 = vadd.f32 %v3025, %v3082
      %v3102 = vadd.f32 %v3026, %v3084
      %v3103 = vadd.f32 %v3027, %v3086
      %v3104 = vadd.f32 %v3028, %v3088
      %v3105 = vlaneseq
      %v3106 = vshrl.u32 %v3105, 7
      %v3107 = vsub.s32 2, %v3106
      %v3108 = vrot.slane %v2176, %v3107
      %v3109 = vlaneseq
      %v3110 = vshrl.u32 %v3109, 7
      %v3111 = vsub.s32 2, %v3110
      %v3112 = vrot.slane %v2177, %v3111
      %v3113 = vlaneseq
      %v3114 = vshrl.u32 %v3113, 7
      %v3115 = vsub.s32 2, %v3114
      %v3116 = vrot.slane %v2178, %v3115
      %v3117 = vlaneseq
      %v3118 = vshrl.u32 %v3117, 7
      %v3119 = vsub.s32 2, %v3118
      %v3120 = vrot.slane %v2179, %v3119
      %v3121 = vmul.f32 %v1859, %v3108
      %v3122 = vmul.f32 %v1861, %v3112
      %v3123 = vmul.f32 %v2012, %v3116
      %v3124 = vmul.f32 %v2014, %v3120
      %v3125 = vmul.f32 %v1863, %v3108
      %v3126 = vmul.f32 %v1865, %v3112
      %v3127 = vmul.f32 %v2016, %v3116
      %v3128 = vmul.f32 %v2018, %v3120
      %v3129 = vmul.f32 %v1869, %v3108
      %v3130 = vmul.f32 %v1871, %v3112
      %v3131 = vmul.f32 %v2022, %v3116
      %v3132 = vmul.f32 %v2024, %v3120
      %vm3145 = vcmask 1045504
      %v3146 = vrot.slane %v3121, 2
      %v3147 = vrot.slane %v3125, 2
      %v3148 = vsel %vm3145, %v3146, %v3147
      %v3149 = vrot.slane %v3122, 2
      %v3150 = vrot.slane %v3126, 2
      %v3151 = vsel %vm3145, %v3149, %v3150
      %v3152 = vrot.slane %v3123, 2
      %v3153 = vrot.slane %v3127, 2
      %v3154 = vsel %vm3145, %v3152, %v3153
      %v3155 = vrot.slane %v3124, 2
      %v3156 = vrot.slane %v3128, 2
      %v3157 = vsel %vm3145, %v3155, %v3156
      %v3158 = vrot.slane %v3129, 2
      %v3159 = vsel %vm3145, %v3147, %v3158
      %v3160 = vrot.slane %v3130, 2
      %v3161 = vsel %vm3145, %v3150, %v3160
      %v3162 = vrot.slane %v3131, 2
      %v3163 = vsel %vm3145, %v3153, %v3162
      %v3164 = vrot.slane %v3132, 2
      %v3165 = vsel %vm3145, %v3156, %v3164
      %v3174 = vadd.f32 %v3097, %v3148
      %v3175 = vadd.f32 %v3098, %v3151
      %v3176 = vadd.f32 %v3099, %v3154
      %v3177 = vadd.f32 %v3100, %v3157
      %v3178 = vadd.f32 %v3101, %v3159
      %v3179 = vadd.f32 %v3102, %v3161
      %v3180 = vadd.f32 %v3103, %v3163
      %v3181 = vadd.f32 %v3104, %v3165
      %v3182 = vlaneseq
      %v3183 = vshrl.u32 %v3182, 7
      %v3184 = vsub.s32 3, %v3183
      %v3185 = vrot.slane %v2176, %v3184
      %v3186 = vlaneseq
      %v3187 = vshrl.u32 %v3186, 7
      %v3188 = vsub.s32 3, %v3187
      %v3189 = vrot.slane %v2177, %v3188
      %v3190 = vlaneseq
      %v3191 = vshrl.u32 %v3190, 7
      %v3192 = vsub.s32 3, %v3191
      %v3193 = vrot.slane %v2178, %v3192
      %v3194 = vlaneseq
      %v3195 = vshrl.u32 %v3194, 7
      %v3196 = vsub.s32 3, %v3195
      %v3197 = vrot.slane %v2179, %v3196
      %3202 = vrot.lane.b32.xlu0 %v3185, 32
      %v3203 = vpop.permute.xlu0 %3202
      %3204 = vrot.lane.b32.xlu0 %v3189, 32
      %v3205 = vpop.permute.xlu0 %3204
      %3206 = vrot.lane.b32.xlu0 %v3193, 32
      %v3207 = vpop.permute.xlu0 %3206
      %3208 = vrot.lane.b32.xlu0 %v3197, 32
      %v3209 = vpop.permute.xlu0 %3208
      %v3210 = vsel %vm2240, %v3203, %v3205
      %v3211 = vsel %vm2240, %v3205, %v3207
      %v3212 = vsel %vm2240, %v3207, %v3209
      %v3218 = vmul.f32 %v1859, %v3203
      %v3219 = vmul.f32 %v1861, %v3210
      %v3220 = vmul.f32 %v2012, %v3211
      %v3221 = vmul.f32 %v2014, %v3212
      %v3222 = vmul.f32 %v2159, %v3209
      %v3223 = vmul.f32 %v1863, %v3203
      %v3224 = vmul.f32 %v1865, %v3210
      %v3225 = vmul.f32 %v2016, %v3211
      %v3226 = vmul.f32 %v2018, %v3212
      %v3227 = vmul.f32 %v2162, %v3209
      %v3228 = vmul.f32 %v1869, %v3203
      %v3229 = vmul.f32 %v1871, %v3210
      %v3230 = vmul.f32 %v2022, %v3211
      %v3231 = vmul.f32 %v2024, %v3212
      %v3232 = vmul.f32 %v2167, %v3209
      %v3248 = vrot.slane %v3218, 2
      %v3249 = vrot.slane %v3223, 2
      %v3250 = vsel %vm3145, %v3248, %v3249
      %v3251 = vrot.slane %v3219, 2
      %v3252 = vrot.slane %v3224, 2
      %v3253 = vsel %vm3145, %v3251, %v3252
      %v3254 = vrot.slane %v3220, 2
      %v3255 = vrot.slane %v3225, 2
      %v3256 = vsel %vm3145, %v3254, %v3255
      %v3257 = vrot.slane %v3221, 2
      %v3258 = vrot.slane %v3226, 2
      %v3259 = vsel %vm3145, %v3257, %v3258
      %v3260 = vrot.slane %v3222, 2
      %v3261 = vrot.slane %v3227, 2
      %v3262 = vsel %vm3145, %v3260, %v3261
      %v3263 = vrot.slane %v3228, 2
      %v3264 = vsel %vm3145, %v3249, %v3263
      %v3265 = vrot.slane %v3229, 2
      %v3266 = vsel %vm3145, %v3252, %v3265
      %v3267 = vrot.slane %v3230, 2
      %v3268 = vsel %vm3145, %v3255, %v3267
      %v3269 = vrot.slane %v3231, 2
      %v3270 = vsel %vm3145, %v3258, %v3269
      %v3271 = vrot.slane %v3232, 2
      %v3272 = vsel %vm3145, %v3261, %v3271
      %3273 = vrot.lane.b32.xlu0 %v3250, 96
      %v3274 = vpop.permute.xlu0 %3273
      %3275 = vrot.lane.b32.xlu0 %v3253, 96
      %v3276 = vpop.permute.xlu0 %3275
      %3277 = vrot.lane.b32.xlu0 %v3256, 96
      %v3278 = vpop.permute.xlu0 %3277
      %3279 = vrot.lane.b32.xlu0 %v3259, 96
      %v3280 = vpop.permute.xlu0 %3279
      %3281 = vrot.lane.b32.xlu0 %v3262, 96
      %v3282 = vpop.permute.xlu0 %3281
      %3283 = vrot.lane.b32.xlu0 %v3264, 96
      %v3284 = vpop.permute.xlu0 %3283
      %3285 = vrot.lane.b32.xlu0 %v3266, 96
      %v3286 = vpop.permute.xlu0 %3285
      %3287 = vrot.lane.b32.xlu0 %v3268, 96
      %v3288 = vpop.permute.xlu0 %3287
      %3289 = vrot.lane.b32.xlu0 %v3270, 96
      %v3290 = vpop.permute.xlu0 %3289
      %3291 = vrot.lane.b32.xlu0 %v3272, 96
      %v3292 = vpop.permute.xlu0 %3291
      %v3293 = vsel %vm2289, %v3274, %v3276
      %v3294 = vsel %vm2289, %v3276, %v3278
      %v3295 = vsel %vm2289, %v3278, %v3280
      %v3296 = vsel %vm2289, %v3280, %v3282
      %v3297 = vsel %vm2289, %v3284, %v3286
      %v3298 = vsel %vm2289, %v3286, %v3288
      %v3299 = vsel %vm2289, %v3288, %v3290
      %v3300 = vsel %vm2289, %v3290, %v3292
      %v3309 = vadd.f32 %v3174, %v3293
      %v3310 = vadd.f32 %v3175, %v3294
      %v3311 = vadd.f32 %v3176, %v3295
      %v3312 = vadd.f32 %v3177, %v3296
      %v3313 = vadd.f32 %v3178, %v3297
      %v3314 = vadd.f32 %v3179, %v3298
      %v3315 = vadd.f32 %v3180, %v3299
      %v3316 = vadd.f32 %v3181, %v3300
      %v3317 = vlaneseq
      %v3318 = vshrl.u32 %v3317, 7
      %v3319 = vsub.s32 4, %v3318
      %v3320 = vrot.slane %v2176, %v3319
      %v3321 = vlaneseq
      %v3322 = vshrl.u32 %v3321, 7
      %v3323 = vsub.s32 4, %v3322
      %v3324 = vrot.slane %v2177, %v3323
      %v3325 = vlaneseq
      %v3326 = vshrl.u32 %v3325, 7
      %v3327 = vsub.s32 4, %v3326
      %v3328 = vrot.slane %v2178, %v3327
      %v3329 = vlaneseq
      %v3330 = vshrl.u32 %v3329, 7
      %v3331 = vsub.s32 4, %v3330
      %v3332 = vrot.slane %v2179, %v3331
      %3337 = vrot.lane.b32.xlu0 %v3320, 64
      %v3338 = vpop.permute.xlu0 %3337
      %3339 = vrot.lane.b32.xlu0 %v3324, 64
      %v3340 = vpop.permute.xlu0 %3339
      %3341 = vrot.lane.b32.xlu0 %v3328, 64
      %v3342 = vpop.permute.xlu0 %3341
      %3343 = vrot.lane.b32.xlu0 %v3332, 64
      %v3344 = vpop.permute.xlu0 %3343
      %v3345 = vsel %vm2342, %v3338, %v3340
      %v3346 = vsel %vm2342, %v3340, %v3342
      %v3347 = vsel %vm2342, %v3342, %v3344
      %v3353 = vmul.f32 %v1859, %v3338
      %v3354 = vmul.f32 %v1861, %v3345
      %v3355 = vmul.f32 %v2012, %v3346
      %v3356 = vmul.f32 %v2014, %v3347
      %v3357 = vmul.f32 %v2159, %v3344
      %v3358 = vmul.f32 %v1863, %v3338
      %v3359 = vmul.f32 %v1865, %v3345
      %v3360 = vmul.f32 %v2016, %v3346
      %v3361 = vmul.f32 %v2018, %v3347
      %v3362 = vmul.f32 %v2162, %v3344
      %v3363 = vmul.f32 %v1869, %v3338
      %v3364 = vmul.f32 %v1871, %v3345
      %v3365 = vmul.f32 %v2022, %v3346
      %v3366 = vmul.f32 %v2024, %v3347
      %v3367 = vmul.f32 %v2167, %v3344
      %v3383 = vrot.slane %v3353, 2
      %v3384 = vrot.slane %v3358, 2
      %v3385 = vsel %vm3145, %v3383, %v3384
      %v3386 = vrot.slane %v3354, 2
      %v3387 = vrot.slane %v3359, 2
      %v3388 = vsel %vm3145, %v3386, %v3387
      %v3389 = vrot.slane %v3355, 2
      %v3390 = vrot.slane %v3360, 2
      %v3391 = vsel %vm3145, %v3389, %v3390
      %v3392 = vrot.slane %v3356, 2
      %v3393 = vrot.slane %v3361, 2
      %v3394 = vsel %vm3145, %v3392, %v3393
      %v3395 = vrot.slane %v3357, 2
      %v3396 = vrot.slane %v3362, 2
      %v3397 = vsel %vm3145, %v3395, %v3396
      %v3398 = vrot.slane %v3363, 2
      %v3399 = vsel %vm3145, %v3384, %v3398
      %v3400 = vrot.slane %v3364, 2
      %v3401 = vsel %vm3145, %v3387, %v3400
      %v3402 = vrot.slane %v3365, 2
      %v3403 = vsel %vm3145, %v3390, %v3402
      %v3404 = vrot.slane %v3366, 2
      %v3405 = vsel %vm3145, %v3393, %v3404
      %v3406 = vrot.slane %v3367, 2
      %v3407 = vsel %vm3145, %v3396, %v3406
      %3408 = vrot.lane.b32.xlu0 %v3385, 64
      %v3409 = vpop.permute.xlu0 %3408
      %3410 = vrot.lane.b32.xlu0 %v3388, 64
      %v3411 = vpop.permute.xlu0 %3410
      %3412 = vrot.lane.b32.xlu0 %v3391, 64
      %v3413 = vpop.permute.xlu0 %3412
      %3414 = vrot.lane.b32.xlu0 %v3394, 64
      %v3415 = vpop.permute.xlu0 %3414
      %3416 = vrot.lane.b32.xlu0 %v3397, 64
      %v3417 = vpop.permute.xlu0 %3416
      %3418 = vrot.lane.b32.xlu0 %v3399, 64
      %v3419 = vpop.permute.xlu0 %3418
      %3420 = vrot.lane.b32.xlu0 %v3401, 64
      %v3421 = vpop.permute.xlu0 %3420
      %3422 = vrot.lane.b32.xlu0 %v3403, 64
      %v3423 = vpop.permute.xlu0 %3422
      %3424 = vrot.lane.b32.xlu0 %v3405, 64
      %v3425 = vpop.permute.xlu0 %3424
      %3426 = vrot.lane.b32.xlu0 %v3407, 64
      %v3427 = vpop.permute.xlu0 %3426
      %v3428 = vsel %vm2342, %v3409, %v3411
      %v3429 = vsel %vm2342, %v3411, %v3413
      %v3430 = vsel %vm2342, %v3413, %v3415
      %v3431 = vsel %vm2342, %v3415, %v3417
      %v3432 = vsel %vm2342, %v3419, %v3421
      %v3433 = vsel %vm2342, %v3421, %v3423
      %v3434 = vsel %vm2342, %v3423, %v3425
      %v3435 = vsel %vm2342, %v3425, %v3427
      %v3444 = vadd.f32 %v3309, %v3428
      %v3445 = vadd.f32 %v3310, %v3429
      %v3446 = vadd.f32 %v3311, %v3430
      %v3447 = vadd.f32 %v3312, %v3431
      %v3448 = vadd.f32 %v3313, %v3432
      %v3449 = vadd.f32 %v3314, %v3433
      %v3450 = vadd.f32 %v3315, %v3434
      %v3451 = vadd.f32 %v3316, %v3435
      %v3452 = vlaneseq
      %v3453 = vshrl.u32 %v3452, 7
      %v3454 = vsub.s32 5, %v3453
      %v3455 = vrot.slane %v2176, %v3454
      %v3456 = vlaneseq
      %v3457 = vshrl.u32 %v3456, 7
      %v3458 = vsub.s32 5, %v3457
      %v3459 = vrot.slane %v2177, %v3458
      %v3460 = vlaneseq
      %v3461 = vshrl.u32 %v3460, 7
      %v3462 = vsub.s32 5, %v3461
      %v3463 = vrot.slane %v2178, %v3462
      %v3464 = vlaneseq
      %v3465 = vshrl.u32 %v3464, 7
      %v3466 = vsub.s32 5, %v3465
      %v3467 = vrot.slane %v2179, %v3466
      %3472 = vrot.lane.b32.xlu0 %v3455, 96
      %v3473 = vpop.permute.xlu0 %3472
      %3474 = vrot.lane.b32.xlu0 %v3459, 96
      %v3475 = vpop.permute.xlu0 %3474
      %3476 = vrot.lane.b32.xlu0 %v3463, 96
      %v3477 = vpop.permute.xlu0 %3476
      %3478 = vrot.lane.b32.xlu0 %v3467, 96
      %v3479 = vpop.permute.xlu0 %3478
      %v3480 = vsel %vm2289, %v3473, %v3475
      %v3481 = vsel %vm2289, %v3475, %v3477
      %v3482 = vsel %vm2289, %v3477, %v3479
      %v3488 = vmul.f32 %v1859, %v3473
      %v3489 = vmul.f32 %v1861, %v3480
      %v3490 = vmul.f32 %v2012, %v3481
      %v3491 = vmul.f32 %v2014, %v3482
      %v3492 = vmul.f32 %v2159, %v3479
      %v3493 = vmul.f32 %v1863, %v3473
      %v3494 = vmul.f32 %v1865, %v3480
      %v3495 = vmul.f32 %v2016, %v3481
      %v3496 = vmul.f32 %v2018, %v3482
      %v3497 = vmul.f32 %v2162, %v3479
      %v3498 = vmul.f32 %v1869, %v3473
      %v3499 = vmul.f32 %v1871, %v3480
      %v3500 = vmul.f32 %v2022, %v3481
      %v3501 = vmul.f32 %v2024, %v3482
      %v3502 = vmul.f32 %v2167, %v3479
      %v3518 = vrot.slane %v3488, 2
      %v3519 = vrot.slane %v3493, 2
      %v3520 = vsel %vm3145, %v3518, %v3519
      %v3521 = vrot.slane %v3489, 2
      %v3522 = vrot.slane %v3494, 2
      %v3523 = vsel %vm3145, %v3521, %v3522
      %v3524 = vrot.slane %v3490, 2
      %v3525 = vrot.slane %v3495, 2
      %v3526 = vsel %vm3145, %v3524, %v3525
      %v3527 = vrot.slane %v3491, 2
      %v3528 = vrot.slane %v3496, 2
      %v3529 = vsel %vm3145, %v3527, %v3528
      %v3530 = vrot.slane %v3492, 2
      %v3531 = vrot.slane %v3497, 2
      %v3532 = vsel %vm3145, %v3530, %v3531
      %v3533 = vrot.slane %v3498, 2
      %v3534 = vsel %vm3145, %v3519, %v3533
      %v3535 = vrot.slane %v3499, 2
      %v3536 = vsel %vm3145, %v3522, %v3535
      %v3537 = vrot.slane %v3500, 2
      %v3538 = vsel %vm3145, %v3525, %v3537
      %v3539 = vrot.slane %v3501, 2
      %v3540 = vsel %vm3145, %v3528, %v3539
      %v3541 = vrot.slane %v3502, 2
      %v3542 = vsel %vm3145, %v3531, %v3541
      %3543 = vrot.lane.b32.xlu0 %v3520, 32
      %v3544 = vpop.permute.xlu0 %3543
      %3545 = vrot.lane.b32.xlu0 %v3523, 32
      %v3546 = vpop.permute.xlu0 %3545
      %3547 = vrot.lane.b32.xlu0 %v3526, 32
      %v3548 = vpop.permute.xlu0 %3547
      %3549 = vrot.lane.b32.xlu0 %v3529, 32
      %v3550 = vpop.permute.xlu0 %3549
      %3551 = vrot.lane.b32.xlu0 %v3532, 32
      %v3552 = vpop.permute.xlu0 %3551
      %3553 = vrot.lane.b32.xlu0 %v3534, 32
      %v3554 = vpop.permute.xlu0 %3553
      %3555 = vrot.lane.b32.xlu0 %v3536, 32
      %v3556 = vpop.permute.xlu0 %3555
      %3557 = vrot.lane.b32.xlu0 %v3538, 32
      %v3558 = vpop.permute.xlu0 %3557
      %3559 = vrot.lane.b32.xlu0 %v3540, 32
      %v3560 = vpop.permute.xlu0 %3559
      %3561 = vrot.lane.b32.xlu0 %v3542, 32
      %v3562 = vpop.permute.xlu0 %3561
      %v3563 = vsel %vm2240, %v3544, %v3546
      %v3564 = vsel %vm2240, %v3546, %v3548
      %v3565 = vsel %vm2240, %v3548, %v3550
      %v3566 = vsel %vm2240, %v3550, %v3552
      %v3567 = vsel %vm2240, %v3554, %v3556
      %v3568 = vsel %vm2240, %v3556, %v3558
      %v3569 = vsel %vm2240, %v3558, %v3560
      %v3570 = vsel %vm2240, %v3560, %v3562
      %v3579 = vadd.f32 %v3444, %v3563
      %v3580 = vadd.f32 %v3445, %v3564
      %v3581 = vadd.f32 %v3446, %v3565
      %v3582 = vadd.f32 %v3447, %v3566
      %v3583 = vadd.f32 %v3448, %v3567
      %v3584 = vadd.f32 %v3449, %v3568
      %v3585 = vadd.f32 %v3450, %v3569
      %v3586 = vadd.f32 %v3451, %v3570
      %v3587 = vlaneseq
      %v3588 = vshrl.u32 %v3587, 7
      %v3589 = vsub.s32 6, %v3588
      %v3590 = vrot.slane %v2176, %v3589
      %v3591 = vlaneseq
      %v3592 = vshrl.u32 %v3591, 7
      %v3593 = vsub.s32 6, %v3592
      %v3594 = vrot.slane %v2177, %v3593
      %v3595 = vlaneseq
      %v3596 = vshrl.u32 %v3595, 7
      %v3597 = vsub.s32 6, %v3596
      %v3598 = vrot.slane %v2178, %v3597
      %v3599 = vlaneseq
      %v3600 = vshrl.u32 %v3599, 7
      %v3601 = vsub.s32 6, %v3600
      %v3602 = vrot.slane %v2179, %v3601
      %v3603 = vmul.f32 %v1861, %v3590
      %v3604 = vmul.f32 %v2012, %v3594
      %v3605 = vmul.f32 %v2014, %v3598
      %v3606 = vmul.f32 %v2159, %v3602
      %v3607 = vmul.f32 %v1865, %v3590
      %v3608 = vmul.f32 %v2016, %v3594
      %v3609 = vmul.f32 %v2018, %v3598
      %v3610 = vmul.f32 %v2162, %v3602
      %v3611 = vmul.f32 %v1871, %v3590
      %v3612 = vmul.f32 %v2022, %v3594
      %v3613 = vmul.f32 %v2024, %v3598
      %v3614 = vmul.f32 %v2167, %v3602
      %v3627 = vrot.slane %v3603, 2
      %v3628 = vrot.slane %v3607, 2
      %v3629 = vsel %vm3145, %v3627, %v3628
      %v3630 = vrot.slane %v3604, 2
      %v3631 = vrot.slane %v3608, 2
      %v3632 = vsel %vm3145, %v3630, %v3631
      %v3633 = vrot.slane %v3605, 2
      %v3634 = vrot.slane %v3609, 2
      %v3635 = vsel %vm3145, %v3633, %v3634
      %v3636 = vrot.slane %v3606, 2
      %v3637 = vrot.slane %v3610, 2
      %v3638 = vsel %vm3145, %v3636, %v3637
      %v3639 = vrot.slane %v3611, 2
      %v3640 = vsel %vm3145, %v3628, %v3639
      %v3641 = vrot.slane %v3612, 2
      %v3642 = vsel %vm3145, %v3631, %v3641
      %v3643 = vrot.slane %v3613, 2
      %v3644 = vsel %vm3145, %v3634, %v3643
      %v3645 = vrot.slane %v3614, 2
      %v3646 = vsel %vm3145, %v3637, %v3645
      %v3655 = vadd.f32 %v3579, %v3629
      %v3656 = vadd.f32 %v3580, %v3632
      %v3657 = vadd.f32 %v3581, %v3635
      %v3658 = vadd.f32 %v3582, %v3638
      %v3659 = vadd.f32 %v3583, %v3640
      %v3660 = vadd.f32 %v3584, %v3642
      %v3661 = vadd.f32 %v3585, %v3644
      %v3662 = vadd.f32 %v3586, %v3646
      %v3663 = vlaneseq
      %v3664 = vshrl.u32 %v3663, 7
      %v3665 = vsub.s32 7, %v3664
      %v3666 = vrot.slane %v2176, %v3665
      %v3667 = vlaneseq
      %v3668 = vshrl.u32 %v3667, 7
      %v3669 = vsub.s32 7, %v3668
      %v3670 = vrot.slane %v2177, %v3669
      %v3671 = vlaneseq
      %v3672 = vshrl.u32 %v3671, 7
      %v3673 = vsub.s32 7, %v3672
      %v3674 = vrot.slane %v2178, %v3673
      %v3675 = vlaneseq
      %v3676 = vshrl.u32 %v3675, 7
      %v3677 = vsub.s32 7, %v3676
      %v3678 = vrot.slane %v2179, %v3677
      %v3679 = vmul.f32 %v1859, %v3666
      %v3680 = vmul.f32 %v1861, %v3670
      %v3681 = vmul.f32 %v2012, %v3674
      %v3682 = vmul.f32 %v2014, %v3678
      %v3683 = vmul.f32 %v1863, %v3666
      %v3684 = vmul.f32 %v1865, %v3670
      %v3685 = vmul.f32 %v2016, %v3674
      %v3686 = vmul.f32 %v2018, %v3678
      %v3687 = vmul.f32 %v1869, %v3666
      %v3688 = vmul.f32 %v1871, %v3670
      %v3689 = vmul.f32 %v2022, %v3674
      %v3690 = vmul.f32 %v2024, %v3678
      %vm3703 = vcmask 1044480
      %v3704 = vrot.slane %v3679, 3
      %v3705 = vrot.slane %v3683, 3
      %v3706 = vsel %vm3703, %v3704, %v3705
      %v3707 = vrot.slane %v3680, 3
      %v3708 = vrot.slane %v3684, 3
      %v3709 = vsel %vm3703, %v3707, %v3708
      %v3710 = vrot.slane %v3681, 3
      %v3711 = vrot.slane %v3685, 3
      %v3712 = vsel %vm3703, %v3710, %v3711
      %v3713 = vrot.slane %v3682, 3
      %v3714 = vrot.slane %v3686, 3
      %v3715 = vsel %vm3703, %v3713, %v3714
      %v3716 = vrot.slane %v3687, 3
      %v3717 = vsel %vm3703, %v3705, %v3716
      %v3718 = vrot.slane %v3688, 3
      %v3719 = vsel %vm3703, %v3708, %v3718
      %v3720 = vrot.slane %v3689, 3
      %v3721 = vsel %vm3703, %v3711, %v3720
      %v3722 = vrot.slane %v3690, 3
      %v3723 = vsel %vm3703, %v3714, %v3722
      %v3732 = vadd.f32 %v3655, %v3706
      %v3733 = vadd.f32 %v3656, %v3709
      %v3734 = vadd.f32 %v3657, %v3712
      %v3735 = vadd.f32 %v3658, %v3715
      %v3736 = vadd.f32 %v3659, %v3717
      %v3737 = vadd.f32 %v3660, %v3719
      %v3738 = vadd.f32 %v3661, %v3721
      %v3739 = vadd.f32 %v3662, %v3723
      %v3740 = vlaneseq
      %v3741 = vshrl.u32 %v3740, 7
      %v3742 = vsub.s32 0, %v3741
      %v3743 = vrot.slane %v2180, %v3742
      %v3744 = vlaneseq
      %v3745 = vshrl.u32 %v3744, 7
      %v3746 = vsub.s32 0, %v3745
      %v3747 = vrot.slane %v2181, %v3746
      %v3748 = vlaneseq
      %v3749 = vshrl.u32 %v3748, 7
      %v3750 = vsub.s32 0, %v3749
      %v3751 = vrot.slane %v2182, %v3750
      %v3752 = vlaneseq
      %v3753 = vshrl.u32 %v3752, 7
      %v3754 = vsub.s32 0, %v3753
      %v3755 = vrot.slane %v2183, %v3754
      %3760 = vrot.lane.b32.xlu0 %v3743, 32
      %v3761 = vpop.permute.xlu0 %3760
      %3762 = vrot.lane.b32.xlu0 %v3747, 32
      %v3763 = vpop.permute.xlu0 %3762
      %3764 = vrot.lane.b32.xlu0 %v3751, 32
      %v3765 = vpop.permute.xlu0 %3764
      %3766 = vrot.lane.b32.xlu0 %v3755, 32
      %v3767 = vpop.permute.xlu0 %3766
      %v3768 = vsel %vm2240, %v3761, %v3763
      %v3769 = vsel %vm2240, %v3763, %v3765
      %v3770 = vsel %vm2240, %v3765, %v3767
      %v3776 = vmul.f32 %v1859, %v3761
      %v3777 = vmul.f32 %v1861, %v3768
      %v3778 = vmul.f32 %v2012, %v3769
      %v3779 = vmul.f32 %v2014, %v3770
      %v3780 = vmul.f32 %v2159, %v3767
      %v3781 = vmul.f32 %v1863, %v3761
      %v3782 = vmul.f32 %v1865, %v3768
      %v3783 = vmul.f32 %v2016, %v3769
      %v3784 = vmul.f32 %v2018, %v3770
      %v3785 = vmul.f32 %v2162, %v3767
      %v3786 = vmul.f32 %v1869, %v3761
      %v3787 = vmul.f32 %v1871, %v3768
      %v3788 = vmul.f32 %v2022, %v3769
      %v3789 = vmul.f32 %v2024, %v3770
      %v3790 = vmul.f32 %v2167, %v3767
      %v3806 = vrot.slane %v3776, 3
      %v3807 = vrot.slane %v3781, 3
      %v3808 = vsel %vm3703, %v3806, %v3807
      %v3809 = vrot.slane %v3777, 3
      %v3810 = vrot.slane %v3782, 3
      %v3811 = vsel %vm3703, %v3809, %v3810
      %v3812 = vrot.slane %v3778, 3
      %v3813 = vrot.slane %v3783, 3
      %v3814 = vsel %vm3703, %v3812, %v3813
      %v3815 = vrot.slane %v3779, 3
      %v3816 = vrot.slane %v3784, 3
      %v3817 = vsel %vm3703, %v3815, %v3816
      %v3818 = vrot.slane %v3780, 3
      %v3819 = vrot.slane %v3785, 3
      %v3820 = vsel %vm3703, %v3818, %v3819
      %v3821 = vrot.slane %v3786, 3
      %v3822 = vsel %vm3703, %v3807, %v3821
      %v3823 = vrot.slane %v3787, 3
      %v3824 = vsel %vm3703, %v3810, %v3823
      %v3825 = vrot.slane %v3788, 3
      %v3826 = vsel %vm3703, %v3813, %v3825
      %v3827 = vrot.slane %v3789, 3
      %v3828 = vsel %vm3703, %v3816, %v3827
      %v3829 = vrot.slane %v3790, 3
      %v3830 = vsel %vm3703, %v3819, %v3829
      %3831 = vrot.lane.b32.xlu0 %v3808, 96
      %v3832 = vpop.permute.xlu0 %3831
      %3833 = vrot.lane.b32.xlu0 %v3811, 96
      %v3834 = vpop.permute.xlu0 %3833
      %3835 = vrot.lane.b32.xlu0 %v3814, 96
      %v3836 = vpop.permute.xlu0 %3835
      %3837 = vrot.lane.b32.xlu0 %v3817, 96
      %v3838 = vpop.permute.xlu0 %3837
      %3839 = vrot.lane.b32.xlu0 %v3820, 96
      %v3840 = vpop.permute.xlu0 %3839
      %3841 = vrot.lane.b32.xlu0 %v3822, 96
      %v3842 = vpop.permute.xlu0 %3841
      %3843 = vrot.lane.b32.xlu0 %v3824, 96
      %v3844 = vpop.permute.xlu0 %3843
      %3845 = vrot.lane.b32.xlu0 %v3826, 96
      %v3846 = vpop.permute.xlu0 %3845
      %3847 = vrot.lane.b32.xlu0 %v3828, 96
      %v3848 = vpop.permute.xlu0 %3847
      %3849 = vrot.lane.b32.xlu0 %v3830, 96
      %v3850 = vpop.permute.xlu0 %3849
      %v3851 = vsel %vm2289, %v3832, %v3834
      %v3852 = vsel %vm2289, %v3834, %v3836
      %v3853 = vsel %vm2289, %v3836, %v3838
      %v3854 = vsel %vm2289, %v3838, %v3840
      %v3855 = vsel %vm2289, %v3842, %v3844
      %v3856 = vsel %vm2289, %v3844, %v3846
      %v3857 = vsel %vm2289, %v3846, %v3848
      %v3858 = vsel %vm2289, %v3848, %v3850
      %v3867 = vadd.f32 %v3732, %v3851
      %v3868 = vadd.f32 %v3733, %v3852
      %v3869 = vadd.f32 %v3734, %v3853
      %v3870 = vadd.f32 %v3735, %v3854
      %v3871 = vadd.f32 %v3736, %v3855
      %v3872 = vadd.f32 %v3737, %v3856
      %v3873 = vadd.f32 %v3738, %v3857
      %v3874 = vadd.f32 %v3739, %v3858
      %v3875 = vlaneseq
      %v3876 = vshrl.u32 %v3875, 7
      %v3877 = vsub.s32 1, %v3876
      %v3878 = vrot.slane %v2180, %v3877
      %v3879 = vlaneseq
      %v3880 = vshrl.u32 %v3879, 7
      %v3881 = vsub.s32 1, %v3880
      %v3882 = vrot.slane %v2181, %v3881
      %v3883 = vlaneseq
      %v3884 = vshrl.u32 %v3883, 7
      %v3885 = vsub.s32 1, %v3884
      %v3886 = vrot.slane %v2182, %v3885
      %v3887 = vlaneseq
      %v3888 = vshrl.u32 %v3887, 7
      %v3889 = vsub.s32 1, %v3888
      %v3890 = vrot.slane %v2183, %v3889
      %3895 = vrot.lane.b32.xlu0 %v3878, 64
      %v3896 = vpop.permute.xlu0 %3895
      %3897 = vrot.lane.b32.xlu0 %v3882, 64
      %v3898 = vpop.permute.xlu0 %3897
      %3899 = vrot.lane.b32.xlu0 %v3886, 64
      %v3900 = vpop.permute.xlu0 %3899
      %3901 = vrot.lane.b32.xlu0 %v3890, 64
      %v3902 = vpop.permute.xlu0 %3901
      %v3903 = vsel %vm2342, %v3896, %v3898
      %v3904 = vsel %vm2342, %v3898, %v3900
      %v3905 = vsel %vm2342, %v3900, %v3902
      %v3911 = vmul.f32 %v1859, %v3896
      %v3912 = vmul.f32 %v1861, %v3903
      %v3913 = vmul.f32 %v2012, %v3904
      %v3914 = vmul.f32 %v2014, %v3905
      %v3915 = vmul.f32 %v2159, %v3902
      %v3916 = vmul.f32 %v1863, %v3896
      %v3917 = vmul.f32 %v1865, %v3903
      %v3918 = vmul.f32 %v2016, %v3904
      %v3919 = vmul.f32 %v2018, %v3905
      %v3920 = vmul.f32 %v2162, %v3902
      %v3921 = vmul.f32 %v1869, %v3896
      %v3922 = vmul.f32 %v1871, %v3903
      %v3923 = vmul.f32 %v2022, %v3904
      %v3924 = vmul.f32 %v2024, %v3905
      %v3925 = vmul.f32 %v2167, %v3902
      %v3941 = vrot.slane %v3911, 3
      %v3942 = vrot.slane %v3916, 3
      %v3943 = vsel %vm3703, %v3941, %v3942
      %v3944 = vrot.slane %v3912, 3
      %v3945 = vrot.slane %v3917, 3
      %v3946 = vsel %vm3703, %v3944, %v3945
      %v3947 = vrot.slane %v3913, 3
      %v3948 = vrot.slane %v3918, 3
      %v3949 = vsel %vm3703, %v3947, %v3948
      %v3950 = vrot.slane %v3914, 3
      %v3951 = vrot.slane %v3919, 3
      %v3952 = vsel %vm3703, %v3950, %v3951
      %v3953 = vrot.slane %v3915, 3
      %v3954 = vrot.slane %v3920, 3
      %v3955 = vsel %vm3703, %v3953, %v3954
      %v3956 = vrot.slane %v3921, 3
      %v3957 = vsel %vm3703, %v3942, %v3956
      %v3958 = vrot.slane %v3922, 3
      %v3959 = vsel %vm3703, %v3945, %v3958
      %v3960 = vrot.slane %v3923, 3
      %v3961 = vsel %vm3703, %v3948, %v3960
      %v3962 = vrot.slane %v3924, 3
      %v3963 = vsel %vm3703, %v3951, %v3962
      %v3964 = vrot.slane %v3925, 3
      %v3965 = vsel %vm3703, %v3954, %v3964
      %3966 = vrot.lane.b32.xlu0 %v3943, 64
      %v3967 = vpop.permute.xlu0 %3966
      %3968 = vrot.lane.b32.xlu0 %v3946, 64
      %v3969 = vpop.permute.xlu0 %3968
      %3970 = vrot.lane.b32.xlu0 %v3949, 64
      %v3971 = vpop.permute.xlu0 %3970
      %3972 = vrot.lane.b32.xlu0 %v3952, 64
      %v3973 = vpop.permute.xlu0 %3972
      %3974 = vrot.lane.b32.xlu0 %v3955, 64
      %v3975 = vpop.permute.xlu0 %3974
      %3976 = vrot.lane.b32.xlu0 %v3957, 64
      %v3977 = vpop.permute.xlu0 %3976
      %3978 = vrot.lane.b32.xlu0 %v3959, 64
      %v3979 = vpop.permute.xlu0 %3978
      %3980 = vrot.lane.b32.xlu0 %v3961, 64
      %v3981 = vpop.permute.xlu0 %3980
      %3982 = vrot.lane.b32.xlu0 %v3963, 64
      %v3983 = vpop.permute.xlu0 %3982
      %3984 = vrot.lane.b32.xlu0 %v3965, 64
      %v3985 = vpop.permute.xlu0 %3984
      %v3986 = vsel %vm2342, %v3967, %v3969
      %v3987 = vsel %vm2342, %v3969, %v3971
      %v3988 = vsel %vm2342, %v3971, %v3973
      %v3989 = vsel %vm2342, %v3973, %v3975
      %v3990 = vsel %vm2342, %v3977, %v3979
      %v3991 = vsel %vm2342, %v3979, %v3981
      %v3992 = vsel %vm2342, %v3981, %v3983
      %v3993 = vsel %vm2342, %v3983, %v3985
      %v4002 = vadd.f32 %v3867, %v3986
      %v4003 = vadd.f32 %v3868, %v3987
      %v4004 = vadd.f32 %v3869, %v3988
      %v4005 = vadd.f32 %v3870, %v3989
      %v4006 = vadd.f32 %v3871, %v3990
      %v4007 = vadd.f32 %v3872, %v3991
      %v4008 = vadd.f32 %v3873, %v3992
      %v4009 = vadd.f32 %v3874, %v3993
      %v4010 = vlaneseq
      %v4011 = vshrl.u32 %v4010, 7
      %v4012 = vsub.s32 2, %v4011
      %v4013 = vrot.slane %v2180, %v4012
      %v4014 = vlaneseq
      %v4015 = vshrl.u32 %v4014, 7
      %v4016 = vsub.s32 2, %v4015
      %v4017 = vrot.slane %v2181, %v4016
      %v4018 = vlaneseq
      %v4019 = vshrl.u32 %v4018, 7
      %v4020 = vsub.s32 2, %v4019
      %v4021 = vrot.slane %v2182, %v4020
      %v4022 = vlaneseq
      %v4023 = vshrl.u32 %v4022, 7
      %v4024 = vsub.s32 2, %v4023
      %v4025 = vrot.slane %v2183, %v4024
      %4030 = vrot.lane.b32.xlu0 %v4013, 96
      %v4031 = vpop.permute.xlu0 %4030
      %4032 = vrot.lane.b32.xlu0 %v4017, 96
      %v4033 = vpop.permute.xlu0 %4032
      %4034 = vrot.lane.b32.xlu0 %v4021, 96
      %v4035 = vpop.permute.xlu0 %4034
      %4036 = vrot.lane.b32.xlu0 %v4025, 96
      %v4037 = vpop.permute.xlu0 %4036
      %v4038 = vsel %vm2289, %v4031, %v4033
      %v4039 = vsel %vm2289, %v4033, %v4035
      %v4040 = vsel %vm2289, %v4035, %v4037
      %v4046 = vmul.f32 %v1859, %v4031
      %v4047 = vmul.f32 %v1861, %v4038
      %v4048 = vmul.f32 %v2012, %v4039
      %v4049 = vmul.f32 %v2014, %v4040
      %v4050 = vmul.f32 %v2159, %v4037
      %v4051 = vmul.f32 %v1863, %v4031
      %v4052 = vmul.f32 %v1865, %v4038
      %v4053 = vmul.f32 %v2016, %v4039
      %v4054 = vmul.f32 %v2018, %v4040
      %v4055 = vmul.f32 %v2162, %v4037
      %v4056 = vmul.f32 %v1869, %v4031
      %v4057 = vmul.f32 %v1871, %v4038
      %v4058 = vmul.f32 %v2022, %v4039
      %v4059 = vmul.f32 %v2024, %v4040
      %v4060 = vmul.f32 %v2167, %v4037
      %v4076 = vrot.slane %v4046, 3
      %v4077 = vrot.slane %v4051, 3
      %v4078 = vsel %vm3703, %v4076, %v4077
      %v4079 = vrot.slane %v4047, 3
      %v4080 = vrot.slane %v4052, 3
      %v4081 = vsel %vm3703, %v4079, %v4080
      %v4082 = vrot.slane %v4048, 3
      %v4083 = vrot.slane %v4053, 3
      %v4084 = vsel %vm3703, %v4082, %v4083
      %v4085 = vrot.slane %v4049, 3
      %v4086 = vrot.slane %v4054, 3
      %v4087 = vsel %vm3703, %v4085, %v4086
      %v4088 = vrot.slane %v4050, 3
      %v4089 = vrot.slane %v4055, 3
      %v4090 = vsel %vm3703, %v4088, %v4089
      %v4091 = vrot.slane %v4056, 3
      %v4092 = vsel %vm3703, %v4077, %v4091
      %v4093 = vrot.slane %v4057, 3
      %v4094 = vsel %vm3703, %v4080, %v4093
      %v4095 = vrot.slane %v4058, 3
      %v4096 = vsel %vm3703, %v4083, %v4095
      %v4097 = vrot.slane %v4059, 3
      %v4098 = vsel %vm3703, %v4086, %v4097
      %v4099 = vrot.slane %v4060, 3
      %v4100 = vsel %vm3703, %v4089, %v4099
      %4101 = vrot.lane.b32.xlu0 %v4078, 32
      %v4102 = vpop.permute.xlu0 %4101
      %4103 = vrot.lane.b32.xlu0 %v4081, 32
      %v4104 = vpop.permute.xlu0 %4103
      %4105 = vrot.lane.b32.xlu0 %v4084, 32
      %v4106 = vpop.permute.xlu0 %4105
      %4107 = vrot.lane.b32.xlu0 %v4087, 32
      %v4108 = vpop.permute.xlu0 %4107
      %4109 = vrot.lane.b32.xlu0 %v4090, 32
      %v4110 = vpop.permute.xlu0 %4109
      %4111 = vrot.lane.b32.xlu0 %v4092, 32
      %v4112 = vpop.permute.xlu0 %4111
      %4113 = vrot.lane.b32.xlu0 %v4094, 32
      %v4114 = vpop.permute.xlu0 %4113
      %4115 = vrot.lane.b32.xlu0 %v4096, 32
      %v4116 = vpop.permute.xlu0 %4115
      %4117 = vrot.lane.b32.xlu0 %v4098, 32
      %v4118 = vpop.permute.xlu0 %4117
      %4119 = vrot.lane.b32.xlu0 %v4100, 32
      %v4120 = vpop.permute.xlu0 %4119
      %v4121 = vsel %vm2240, %v4102, %v4104
      %v4122 = vsel %vm2240, %v4104, %v4106
      %v4123 = vsel %vm2240, %v4106, %v4108
      %v4124 = vsel %vm2240, %v4108, %v4110
      %v4125 = vsel %vm2240, %v4112, %v4114
      %v4126 = vsel %vm2240, %v4114, %v4116
      %v4127 = vsel %vm2240, %v4116, %v4118
      %v4128 = vsel %vm2240, %v4118, %v4120
      %v4137 = vadd.f32 %v4002, %v4121
      %v4138 = vadd.f32 %v4003, %v4122
      %v4139 = vadd.f32 %v4004, %v4123
      %v4140 = vadd.f32 %v4005, %v4124
      %v4141 = vadd.f32 %v4006, %v4125
      %v4142 = vadd.f32 %v4007, %v4126
      %v4143 = vadd.f32 %v4008, %v4127
      %v4144 = vadd.f32 %v4009, %v4128
      %v4145 = vlaneseq
      %v4146 = vshrl.u32 %v4145, 7
      %v4147 = vsub.s32 3, %v4146
      %v4148 = vrot.slane %v2180, %v4147
      %v4149 = vlaneseq
      %v4150 = vshrl.u32 %v4149, 7
      %v4151 = vsub.s32 3, %v4150
      %v4152 = vrot.slane %v2181, %v4151
      %v4153 = vlaneseq
      %v4154 = vshrl.u32 %v4153, 7
      %v4155 = vsub.s32 3, %v4154
      %v4156 = vrot.slane %v2182, %v4155
      %v4157 = vlaneseq
      %v4158 = vshrl.u32 %v4157, 7
      %v4159 = vsub.s32 3, %v4158
      %v4160 = vrot.slane %v2183, %v4159
      %v4161 = vmul.f32 %v1861, %v4148
      %v4162 = vmul.f32 %v2012, %v4152
      %v4163 = vmul.f32 %v2014, %v4156
      %v4164 = vmul.f32 %v2159, %v4160
      %v4165 = vmul.f32 %v1865, %v4148
      %v4166 = vmul.f32 %v2016, %v4152
      %v4167 = vmul.f32 %v2018, %v4156
      %v4168 = vmul.f32 %v2162, %v4160
      %v4169 = vmul.f32 %v1871, %v4148
      %v4170 = vmul.f32 %v2022, %v4152
      %v4171 = vmul.f32 %v2024, %v4156
      %v4172 = vmul.f32 %v2167, %v4160
      %v4185 = vrot.slane %v4161, 3
      %v4186 = vrot.slane %v4165, 3
      %v4187 = vsel %vm3703, %v4185, %v4186
      %v4188 = vrot.slane %v4162, 3
      %v4189 = vrot.slane %v4166, 3
      %v4190 = vsel %vm3703, %v4188, %v4189
      %v4191 = vrot.slane %v4163, 3
      %v4192 = vrot.slane %v4167, 3
      %v4193 = vsel %vm3703, %v4191, %v4192
      %v4194 = vrot.slane %v4164, 3
      %v4195 = vrot.slane %v4168, 3
      %v4196 = vsel %vm3703, %v4194, %v4195
      %v4197 = vrot.slane %v4169, 3
      %v4198 = vsel %vm3703, %v4186, %v4197
      %v4199 = vrot.slane %v4170, 3
      %v4200 = vsel %vm3703, %v4189, %v4199
      %v4201 = vrot.slane %v4171, 3
      %v4202 = vsel %vm3703, %v4192, %v4201
      %v4203 = vrot.slane %v4172, 3
      %v4204 = vsel %vm3703, %v4195, %v4203
      %v4213 = vadd.f32 %v4137, %v4187
      %v4214 = vadd.f32 %v4138, %v4190
      %v4215 = vadd.f32 %v4139, %v4193
      %v4216 = vadd.f32 %v4140, %v4196
      %v4217 = vadd.f32 %v4141, %v4198
      %v4218 = vadd.f32 %v4142, %v4200
      %v4219 = vadd.f32 %v4143, %v4202
      %v4220 = vadd.f32 %v4144, %v4204
      %v4221 = vlaneseq
      %v4222 = vshrl.u32 %v4221, 7
      %v4223 = vsub.s32 4, %v4222
      %v4224 = vrot.slane %v2180, %v4223
      %v4225 = vlaneseq
      %v4226 = vshrl.u32 %v4225, 7
      %v4227 = vsub.s32 4, %v4226
      %v4228 = vrot.slane %v2181, %v4227
      %v4229 = vlaneseq
      %v4230 = vshrl.u32 %v4229, 7
      %v4231 = vsub.s32 4, %v4230
      %v4232 = vrot.slane %v2182, %v4231
      %v4233 = vlaneseq
      %v4234 = vshrl.u32 %v4233, 7
      %v4235 = vsub.s32 4, %v4234
      %v4236 = vrot.slane %v2183, %v4235
      %v4237 = vmul.f32 %v1859, %v4224
      %v4238 = vmul.f32 %v1861, %v4228
      %v4239 = vmul.f32 %v2012, %v4232
      %v4240 = vmul.f32 %v2014, %v4236
      %v4241 = vmul.f32 %v1863, %v4224
      %v4242 = vmul.f32 %v1865, %v4228
      %v4243 = vmul.f32 %v2016, %v4232
      %v4244 = vmul.f32 %v2018, %v4236
      %v4245 = vmul.f32 %v1869, %v4224
      %v4246 = vmul.f32 %v1871, %v4228
      %v4247 = vmul.f32 %v2022, %v4232
      %v4248 = vmul.f32 %v2024, %v4236
      %vm4261 = vcmask 1043456
      %v4262 = vrot.slane %v4237, 4
      %v4263 = vrot.slane %v4241, 4
      %v4264 = vsel %vm4261, %v4262, %v4263
      %v4265 = vrot.slane %v4238, 4
      %v4266 = vrot.slane %v4242, 4
      %v4267 = vsel %vm4261, %v4265, %v4266
      %v4268 = vrot.slane %v4239, 4
      %v4269 = vrot.slane %v4243, 4
      %v4270 = vsel %vm4261, %v4268, %v4269
      %v4271 = vrot.slane %v4240, 4
      %v4272 = vrot.slane %v4244, 4
      %v4273 = vsel %vm4261, %v4271, %v4272
      %v4274 = vrot.slane %v4245, 4
      %v4275 = vsel %vm4261, %v4263, %v4274
      %v4276 = vrot.slane %v4246, 4
      %v4277 = vsel %vm4261, %v4266, %v4276
      %v4278 = vrot.slane %v4247, 4
      %v4279 = vsel %vm4261, %v4269, %v4278
      %v4280 = vrot.slane %v4248, 4
      %v4281 = vsel %vm4261, %v4272, %v4280
      %v4290 = vadd.f32 %v4213, %v4264
      %v4291 = vadd.f32 %v4214, %v4267
      %v4292 = vadd.f32 %v4215, %v4270
      %v4293 = vadd.f32 %v4216, %v4273
      %v4294 = vadd.f32 %v4217, %v4275
      %v4295 = vadd.f32 %v4218, %v4277
      %v4296 = vadd.f32 %v4219, %v4279
      %v4297 = vadd.f32 %v4220, %v4281
      %v4298 = vlaneseq
      %v4299 = vshrl.u32 %v4298, 7
      %v4300 = vsub.s32 5, %v4299
      %v4301 = vrot.slane %v2180, %v4300
      %v4302 = vlaneseq
      %v4303 = vshrl.u32 %v4302, 7
      %v4304 = vsub.s32 5, %v4303
      %v4305 = vrot.slane %v2181, %v4304
      %v4306 = vlaneseq
      %v4307 = vshrl.u32 %v4306, 7
      %v4308 = vsub.s32 5, %v4307
      %v4309 = vrot.slane %v2182, %v4308
      %v4310 = vlaneseq
      %v4311 = vshrl.u32 %v4310, 7
      %v4312 = vsub.s32 5, %v4311
      %v4313 = vrot.slane %v2183, %v4312
      %4318 = vrot.lane.b32.xlu0 %v4301, 32
      %v4319 = vpop.permute.xlu0 %4318
      %4320 = vrot.lane.b32.xlu0 %v4305, 32
      %v4321 = vpop.permute.xlu0 %4320
      %4322 = vrot.lane.b32.xlu0 %v4309, 32
      %v4323 = vpop.permute.xlu0 %4322
      %4324 = vrot.lane.b32.xlu0 %v4313, 32
      %v4325 = vpop.permute.xlu0 %4324
      %v4326 = vsel %vm2240, %v4319, %v4321
      %v4327 = vsel %vm2240, %v4321, %v4323
      %v4328 = vsel %vm2240, %v4323, %v4325
      %v4334 = vmul.f32 %v1859, %v4319
      %v4335 = vmul.f32 %v1861, %v4326
      %v4336 = vmul.f32 %v2012, %v4327
      %v4337 = vmul.f32 %v2014, %v4328
      %v4338 = vmul.f32 %v2159, %v4325
      %v4339 = vmul.f32 %v1863, %v4319
      %v4340 = vmul.f32 %v1865, %v4326
      %v4341 = vmul.f32 %v2016, %v4327
      %v4342 = vmul.f32 %v2018, %v4328
      %v4343 = vmul.f32 %v2162, %v4325
      %v4344 = vmul.f32 %v1869, %v4319
      %v4345 = vmul.f32 %v1871, %v4326
      %v4346 = vmul.f32 %v2022, %v4327
      %v4347 = vmul.f32 %v2024, %v4328
      %v4348 = vmul.f32 %v2167, %v4325
      %v4364 = vrot.slane %v4334, 4
      %v4365 = vrot.slane %v4339, 4
      %v4366 = vsel %vm4261, %v4364, %v4365
      %v4367 = vrot.slane %v4335, 4
      %v4368 = vrot.slane %v4340, 4
      %v4369 = vsel %vm4261, %v4367, %v4368
      %v4370 = vrot.slane %v4336, 4
      %v4371 = vrot.slane %v4341, 4
      %v4372 = vsel %vm4261, %v4370, %v4371
      %v4373 = vrot.slane %v4337, 4
      %v4374 = vrot.slane %v4342, 4
      %v4375 = vsel %vm4261, %v4373, %v4374
      %v4376 = vrot.slane %v4338, 4
      %v4377 = vrot.slane %v4343, 4
      %v4378 = vsel %vm4261, %v4376, %v4377
      %v4379 = vrot.slane %v4344, 4
      %v4380 = vsel %vm4261, %v4365, %v4379
      %v4381 = vrot.slane %v4345, 4
      %v4382 = vsel %vm4261, %v4368, %v4381
      %v4383 = vrot.slane %v4346, 4
      %v4384 = vsel %vm4261, %v4371, %v4383
      %v4385 = vrot.slane %v4347, 4
      %v4386 = vsel %vm4261, %v4374, %v4385
      %v4387 = vrot.slane %v4348, 4
      %v4388 = vsel %vm4261, %v4377, %v4387
      %4389 = vrot.lane.b32.xlu0 %v4366, 96
      %v4390 = vpop.permute.xlu0 %4389
      %4391 = vrot.lane.b32.xlu0 %v4369, 96
      %v4392 = vpop.permute.xlu0 %4391
      %4393 = vrot.lane.b32.xlu0 %v4372, 96
      %v4394 = vpop.permute.xlu0 %4393
      %4395 = vrot.lane.b32.xlu0 %v4375, 96
      %v4396 = vpop.permute.xlu0 %4395
      %4397 = vrot.lane.b32.xlu0 %v4378, 96
      %v4398 = vpop.permute.xlu0 %4397
      %4399 = vrot.lane.b32.xlu0 %v4380, 96
      %v4400 = vpop.permute.xlu0 %4399
      %4401 = vrot.lane.b32.xlu0 %v4382, 96
      %v4402 = vpop.permute.xlu0 %4401
      %4403 = vrot.lane.b32.xlu0 %v4384, 96
      %v4404 = vpop.permute.xlu0 %4403
      %4405 = vrot.lane.b32.xlu0 %v4386, 96
      %v4406 = vpop.permute.xlu0 %4405
      %4407 = vrot.lane.b32.xlu0 %v4388, 96
      %v4408 = vpop.permute.xlu0 %4407
      %v4409 = vsel %vm2289, %v4390, %v4392
      %v4410 = vsel %vm2289, %v4392, %v4394
      %v4411 = vsel %vm2289, %v4394, %v4396
      %v4412 = vsel %vm2289, %v4396, %v4398
      %v4413 = vsel %vm2289, %v4400, %v4402
      %v4414 = vsel %vm2289, %v4402, %v4404
      %v4415 = vsel %vm2289, %v4404, %v4406
      %v4416 = vsel %vm2289, %v4406, %v4408
      %v4425 = vadd.f32 %v4290, %v4409
      %v4426 = vadd.f32 %v4291, %v4410
      %v4427 = vadd.f32 %v4292, %v4411
      %v4428 = vadd.f32 %v4293, %v4412
      %v4429 = vadd.f32 %v4294, %v4413
      %v4430 = vadd.f32 %v4295, %v4414
      %v4431 = vadd.f32 %v4296, %v4415
      %v4432 = vadd.f32 %v4297, %v4416
      %v4433 = vlaneseq
      %v4434 = vshrl.u32 %v4433, 7
      %v4435 = vsub.s32 6, %v4434
      %v4436 = vrot.slane %v2180, %v4435
      %v4437 = vlaneseq
      %v4438 = vshrl.u32 %v4437, 7
      %v4439 = vsub.s32 6, %v4438
      %v4440 = vrot.slane %v2181, %v4439
      %v4441 = vlaneseq
      %v4442 = vshrl.u32 %v4441, 7
      %v4443 = vsub.s32 6, %v4442
      %v4444 = vrot.slane %v2182, %v4443
      %v4445 = vlaneseq
      %v4446 = vshrl.u32 %v4445, 7
      %v4447 = vsub.s32 6, %v4446
      %v4448 = vrot.slane %v2183, %v4447
      %4453 = vrot.lane.b32.xlu0 %v4436, 64
      %v4454 = vpop.permute.xlu0 %4453
      %4455 = vrot.lane.b32.xlu0 %v4440, 64
      %v4456 = vpop.permute.xlu0 %4455
      %4457 = vrot.lane.b32.xlu0 %v4444, 64
      %v4458 = vpop.permute.xlu0 %4457
      %4459 = vrot.lane.b32.xlu0 %v4448, 64
      %v4460 = vpop.permute.xlu0 %4459
      %v4461 = vsel %vm2342, %v4454, %v4456
      %v4462 = vsel %vm2342, %v4456, %v4458
      %v4463 = vsel %vm2342, %v4458, %v4460
      %v4469 = vmul.f32 %v1859, %v4454
      %v4470 = vmul.f32 %v1861, %v4461
      %v4471 = vmul.f32 %v2012, %v4462
      %v4472 = vmul.f32 %v2014, %v4463
      %v4473 = vmul.f32 %v2159, %v4460
      %v4474 = vmul.f32 %v1863, %v4454
      %v4475 = vmul.f32 %v1865, %v4461
      %v4476 = vmul.f32 %v2016, %v4462
      %v4477 = vmul.f32 %v2018, %v4463
      %v4478 = vmul.f32 %v2162, %v4460
      %v4479 = vmul.f32 %v1869, %v4454
      %v4480 = vmul.f32 %v1871, %v4461
      %v4481 = vmul.f32 %v2022, %v4462
      %v4482 = vmul.f32 %v2024, %v4463
      %v4483 = vmul.f32 %v2167, %v4460
      %v4499 = vrot.slane %v4469, 4
      %v4500 = vrot.slane %v4474, 4
      %v4501 = vsel %vm4261, %v4499, %v4500
      %v4502 = vrot.slane %v4470, 4
      %v4503 = vrot.slane %v4475, 4
      %v4504 = vsel %vm4261, %v4502, %v4503
      %v4505 = vrot.slane %v4471, 4
      %v4506 = vrot.slane %v4476, 4
      %v4507 = vsel %vm4261, %v4505, %v4506
      %v4508 = vrot.slane %v4472, 4
      %v4509 = vrot.slane %v4477, 4
      %v4510 = vsel %vm4261, %v4508, %v4509
      %v4511 = vrot.slane %v4473, 4
      %v4512 = vrot.slane %v4478, 4
      %v4513 = vsel %vm4261, %v4511, %v4512
      %v4514 = vrot.slane %v4479, 4
      %v4515 = vsel %vm4261, %v4500, %v4514
      %v4516 = vrot.slane %v4480, 4
      %v4517 = vsel %vm4261, %v4503, %v4516
      %v4518 = vrot.slane %v4481, 4
      %v4519 = vsel %vm4261, %v4506, %v4518
      %v4520 = vrot.slane %v4482, 4
      %v4521 = vsel %vm4261, %v4509, %v4520
      %v4522 = vrot.slane %v4483, 4
      %v4523 = vsel %vm4261, %v4512, %v4522
      %4524 = vrot.lane.b32.xlu0 %v4501, 64
      %v4525 = vpop.permute.xlu0 %4524
      %4526 = vrot.lane.b32.xlu0 %v4504, 64
      %v4527 = vpop.permute.xlu0 %4526
      %4528 = vrot.lane.b32.xlu0 %v4507, 64
      %v4529 = vpop.permute.xlu0 %4528
      %4530 = vrot.lane.b32.xlu0 %v4510, 64
      %v4531 = vpop.permute.xlu0 %4530
      %4532 = vrot.lane.b32.xlu0 %v4513, 64
      %v4533 = vpop.permute.xlu0 %4532
      %4534 = vrot.lane.b32.xlu0 %v4515, 64
      %v4535 = vpop.permute.xlu0 %4534
      %4536 = vrot.lane.b32.xlu0 %v4517, 64
      %v4537 = vpop.permute.xlu0 %4536
      %4538 = vrot.lane.b32.xlu0 %v4519, 64
      %v4539 = vpop.permute.xlu0 %4538
      %4540 = vrot.lane.b32.xlu0 %v4521, 64
      %v4541 = vpop.permute.xlu0 %4540
      %4542 = vrot.lane.b32.xlu0 %v4523, 64
      %v4543 = vpop.permute.xlu0 %4542
      %v4544 = vsel %vm2342, %v4525, %v4527
      %v4545 = vsel %vm2342, %v4527, %v4529
      %v4546 = vsel %vm2342, %v4529, %v4531
      %v4547 = vsel %vm2342, %v4531, %v4533
      %v4548 = vsel %vm2342, %v4535, %v4537
      %v4549 = vsel %vm2342, %v4537, %v4539
      %v4550 = vsel %vm2342, %v4539, %v4541
      %v4551 = vsel %vm2342, %v4541, %v4543
      %v4560 = vadd.f32 %v4425, %v4544
      %v4561 = vadd.f32 %v4426, %v4545
      %v4562 = vadd.f32 %v4427, %v4546
      %v4563 = vadd.f32 %v4428, %v4547
      %v4564 = vadd.f32 %v4429, %v4548
      %v4565 = vadd.f32 %v4430, %v4549
      %v4566 = vadd.f32 %v4431, %v4550
      %v4567 = vadd.f32 %v4432, %v4551
      %v4568 = vlaneseq
      %v4569 = vshrl.u32 %v4568, 7
      %v4570 = vsub.s32 7, %v4569
      %v4571 = vrot.slane %v2180, %v4570
      %v4572 = vlaneseq
      %v4573 = vshrl.u32 %v4572, 7
      %v4574 = vsub.s32 7, %v4573
      %v4575 = vrot.slane %v2181, %v4574
      %v4576 = vlaneseq
      %v4577 = vshrl.u32 %v4576, 7
      %v4578 = vsub.s32 7, %v4577
      %v4579 = vrot.slane %v2182, %v4578
      %v4580 = vlaneseq
      %v4581 = vshrl.u32 %v4580, 7
      %v4582 = vsub.s32 7, %v4581
      %v4583 = vrot.slane %v2183, %v4582
      %4588 = vrot.lane.b32.xlu0 %v4571, 96
      %v4589 = vpop.permute.xlu0 %4588
      %4590 = vrot.lane.b32.xlu0 %v4575, 96
      %v4591 = vpop.permute.xlu0 %4590
      %4592 = vrot.lane.b32.xlu0 %v4579, 96
      %v4593 = vpop.permute.xlu0 %4592
      %4594 = vrot.lane.b32.xlu0 %v4583, 96
      %v4595 = vpop.permute.xlu0 %4594
      %v4596 = vsel %vm2289, %v4589, %v4591
      %v4597 = vsel %vm2289, %v4591, %v4593
      %v4598 = vsel %vm2289, %v4593, %v4595
      %v4604 = vmul.f32 %v1859, %v4589
      %v4605 = vmul.f32 %v1861, %v4596
      %v4606 = vmul.f32 %v2012, %v4597
      %v4607 = vmul.f32 %v2014, %v4598
      %v4608 = vmul.f32 %v2159, %v4595
      %v4609 = vmul.f32 %v1863, %v4589
      %v4610 = vmul.f32 %v1865, %v4596
      %v4611 = vmul.f32 %v2016, %v4597
      %v4612 = vmul.f32 %v2018, %v4598
      %v4613 = vmul.f32 %v2162, %v4595
      %v4614 = vmul.f32 %v1869, %v4589
      %v4615 = vmul.f32 %v1871, %v4596
      %v4616 = vmul.f32 %v2022, %v4597
      %v4617 = vmul.f32 %v2024, %v4598
      %v4618 = vmul.f32 %v2167, %v4595
      %v4634 = vrot.slane %v4604, 4
      %v4635 = vrot.slane %v4609, 4
      %v4636 = vsel %vm4261, %v4634, %v4635
      %v4637 = vrot.slane %v4605, 4
      %v4638 = vrot.slane %v4610, 4
      %v4639 = vsel %vm4261, %v4637, %v4638
      %v4640 = vrot.slane %v4606, 4
      %v4641 = vrot.slane %v4611, 4
      %v4642 = vsel %vm4261, %v4640, %v4641
      %v4643 = vrot.slane %v4607, 4
      %v4644 = vrot.slane %v4612, 4
      %v4645 = vsel %vm4261, %v4643, %v4644
      %v4646 = vrot.slane %v4608, 4
      %v4647 = vrot.slane %v4613, 4
      %v4648 = vsel %vm4261, %v4646, %v4647
      %v4649 = vrot.slane %v4614, 4
      %v4650 = vsel %vm4261, %v4635, %v4649
      %v4651 = vrot.slane %v4615, 4
      %v4652 = vsel %vm4261, %v4638, %v4651
      %v4653 = vrot.slane %v4616, 4
      %v4654 = vsel %vm4261, %v4641, %v4653
      %v4655 = vrot.slane %v4617, 4
      %v4656 = vsel %vm4261, %v4644, %v4655
      %v4657 = vrot.slane %v4618, 4
      %v4658 = vsel %vm4261, %v4647, %v4657
      %4659 = vrot.lane.b32.xlu0 %v4636, 32
      %v4660 = vpop.permute.xlu0 %4659
      %4661 = vrot.lane.b32.xlu0 %v4639, 32
      %v4662 = vpop.permute.xlu0 %4661
      %4663 = vrot.lane.b32.xlu0 %v4642, 32
      %v4664 = vpop.permute.xlu0 %4663
      %4665 = vrot.lane.b32.xlu0 %v4645, 32
      %v4666 = vpop.permute.xlu0 %4665
      %4667 = vrot.lane.b32.xlu0 %v4648, 32
      %v4668 = vpop.permute.xlu0 %4667
      %4669 = vrot.lane.b32.xlu0 %v4650, 32
      %v4670 = vpop.permute.xlu0 %4669
      %4671 = vrot.lane.b32.xlu0 %v4652, 32
      %v4672 = vpop.permute.xlu0 %4671
      %4673 = vrot.lane.b32.xlu0 %v4654, 32
      %v4674 = vpop.permute.xlu0 %4673
      %4675 = vrot.lane.b32.xlu0 %v4656, 32
      %v4676 = vpop.permute.xlu0 %4675
      %4677 = vrot.lane.b32.xlu0 %v4658, 32
      %v4678 = vpop.permute.xlu0 %4677
      %v4679 = vsel %vm2240, %v4660, %v4662
      %v4680 = vsel %vm2240, %v4662, %v4664
      %v4681 = vsel %vm2240, %v4664, %v4666
      %v4682 = vsel %vm2240, %v4666, %v4668
      %v4683 = vsel %vm2240, %v4670, %v4672
      %v4684 = vsel %vm2240, %v4672, %v4674
      %v4685 = vsel %vm2240, %v4674, %v4676
      %v4686 = vsel %vm2240, %v4676, %v4678
      %v4695 = vadd.f32 %v4560, %v4679
      %v4696 = vadd.f32 %v4561, %v4680
      %v4697 = vadd.f32 %v4562, %v4681
      %v4698 = vadd.f32 %v4563, %v4682
      %v4699 = vadd.f32 %v4564, %v4683
      %v4700 = vadd.f32 %v4565, %v4684
      %v4701 = vadd.f32 %v4566, %v4685
      %v4702 = vadd.f32 %v4567, %v4686
      %v4703 = vlaneseq
      %v4704 = vshrl.u32 %v4703, 7
      %v4705 = vsub.s32 0, %v4704
      %v4706 = vrot.slane %v2184, %v4705
      %v4707 = vlaneseq
      %v4708 = vshrl.u32 %v4707, 7
      %v4709 = vsub.s32 0, %v4708
      %v4710 = vrot.slane %v2185, %v4709
      %v4711 = vlaneseq
      %v4712 = vshrl.u32 %v4711, 7
      %v4713 = vsub.s32 0, %v4712
      %v4714 = vrot.slane %v2186, %v4713
      %v4715 = vlaneseq
      %v4716 = vshrl.u32 %v4715, 7
      %v4717 = vsub.s32 0, %v4716
      %v4718 = vrot.slane %v2187, %v4717
      %v4719 = vmul.f32 %v1861, %v4706
      %v4720 = vmul.f32 %v2012, %v4710
      %v4721 = vmul.f32 %v2014, %v4714
      %v4722 = vmul.f32 %v2159, %v4718
      %v4723 = vmul.f32 %v1865, %v4706
      %v4724 = vmul.f32 %v2016, %v4710
      %v4725 = vmul.f32 %v2018, %v4714
      %v4726 = vmul.f32 %v2162, %v4718
      %v4727 = vmul.f32 %v1871, %v4706
      %v4728 = vmul.f32 %v2022, %v4710
      %v4729 = vmul.f32 %v2024, %v4714
      %v4730 = vmul.f32 %v2167, %v4718
      %v4743 = vrot.slane %v4719, 4
      %v4744 = vrot.slane %v4723, 4
      %v4745 = vsel %vm4261, %v4743, %v4744
      %v4746 = vrot.slane %v4720, 4
      %v4747 = vrot.slane %v4724, 4
      %v4748 = vsel %vm4261, %v4746, %v4747
      %v4749 = vrot.slane %v4721, 4
      %v4750 = vrot.slane %v4725, 4
      %v4751 = vsel %vm4261, %v4749, %v4750
      %v4752 = vrot.slane %v4722, 4
      %v4753 = vrot.slane %v4726, 4
      %v4754 = vsel %vm4261, %v4752, %v4753
      %v4755 = vrot.slane %v4727, 4
      %v4756 = vsel %vm4261, %v4744, %v4755
      %v4757 = vrot.slane %v4728, 4
      %v4758 = vsel %vm4261, %v4747, %v4757
      %v4759 = vrot.slane %v4729, 4
      %v4760 = vsel %vm4261, %v4750, %v4759
      %v4761 = vrot.slane %v4730, 4
      %v4762 = vsel %vm4261, %v4753, %v4761
      %v4771 = vadd.f32 %v4695, %v4745
      %v4772 = vadd.f32 %v4696, %v4748
      %v4773 = vadd.f32 %v4697, %v4751
      %v4774 = vadd.f32 %v4698, %v4754
      %v4775 = vadd.f32 %v4699, %v4756
      %v4776 = vadd.f32 %v4700, %v4758
      %v4777 = vadd.f32 %v4701, %v4760
      %v4778 = vadd.f32 %v4702, %v4762
      %v4779 = vld [vmem:[%s379] sm:$0xf]
      %v4781 = vlaneseq
      %v4782 = vshrl.u32 %v4781, 7
      %v4783 = vsub.s32 0, %v4782
      %v4784 = vrot.slane %v4779, %v4783
      %v4785 = vlaneseq
      %v4786 = vshrl.u32 %v4785, 7
      %v4787 = vsub.s32 1, %v4786
      %v4788 = vrot.slane %v4779, %v4787
      %v4789 = vlaneseq
      %v4790 = vshrl.u32 %v4789, 7
      %v4791 = vsub.s32 2, %v4790
      %v4792 = vrot.slane %v4779, %v4791
      %v4793 = vlaneseq
      %v4794 = vshrl.u32 %v4793, 7
      %v4795 = vsub.s32 3, %v4794
      %v4796 = vrot.slane %v4779, %v4795
      %v4801 = vadd.f32 %v4771, %v4784
      %v4802 = vadd.f32 %v4772, %v4788
      %v4803 = vadd.f32 %v4773, %v4792
      %v4804 = vadd.f32 %v4774, %v4796
      %v4805 = vadd.f32 %v4775, %v4784
      %v4806 = vadd.f32 %v4776, %v4788
      %v4807 = vadd.f32 %v4777, %v4792
      %v4808 = vadd.f32 %v4778, %v4796
      %v4809 = vpack.c.bf16 %v4805, %v4801
      %v4810 = vpack.c.bf16 %v4806, %v4802
      %v4811 = vpack.c.bf16 %v4807, %v4803
      %v4812 = vpack.c.bf16 %v4808, %v4804
      %v4813 = vld [vmem:[%s5] sm:$0xff]
      %v4814 = vld [vmem:[%s5 + $0x8] sm:$0xff]
      %v4815 = vld [vmem:[%s5 + $0x10] sm:$0xff]
      %v4816 = vld [vmem:[%s5 + $0x18] sm:$0xff]
      %v4817 = vld [vmem:[%s5 + $0x20] sm:$0xff]
      %v4818 = vld [vmem:[%s5 + $0x28] sm:$0xff]
      %v4819 = vld [vmem:[%s5 + $0x30] sm:$0xff]
      %v4820 = vld [vmem:[%s5 + $0x38] sm:$0xff]
      %v4821 = vld [vmem:[%s5 + $0x40] sm:$0xff]
      %v4822 = vld [vmem:[%s5 + $0x48] sm:$0xff]
      %v4823 = vld [vmem:[%s5 + $0x50] sm:$0xff]
      %v4824 = vld [vmem:[%s5 + $0x58] sm:$0xff]
      %v4825 = vld [vmem:[%s5 + $0x60] sm:$0xff]
      %v4826 = vld [vmem:[%s5 + $0x68] sm:$0xff]
      %v4827 = vld [vmem:[%s5 + $0x70] sm:$0xff]
      %v4828 = vld [vmem:[%s5 + $0x78] sm:$0xff]
      %v4829 = vld [vmem:[%s5 + $0x80] sm:$0xff]
      %v4830 = vld [vmem:[%s5 + $0x88] sm:$0xff]
      %v4831 = vld [vmem:[%s5 + $0x90] sm:$0xff]
      %v4832 = vld [vmem:[%s5 + $0x98] sm:$0xff]
      %v4833 = vld [vmem:[%s5 + $0xa0] sm:$0xff]
      %v4834 = vld [vmem:[%s5 + $0xa8] sm:$0xff]
      %v4835 = vld [vmem:[%s5 + $0xb0] sm:$0xff]
      %v4836 = vld [vmem:[%s5 + $0xb8] sm:$0xff]
      %v4837 = vld [vmem:[%s5 + $0xc0] sm:$0xff]
      %v4838 = vld [vmem:[%s5 + $0xc8] sm:$0xff]
      %v4839 = vld [vmem:[%s5 + $0xd0] sm:$0xff]
      %v4840 = vld [vmem:[%s5 + $0xd8] sm:$0xff]
      %v4841 = vld [vmem:[%s5 + $0xe0] sm:$0xff]
      %v4842 = vld [vmem:[%s5 + $0xe8] sm:$0xff]
      %v4843 = vld [vmem:[%s5 + $0xf0] sm:$0xff]
      %v4844 = vld [vmem:[%s5 + $0xf8] sm:$0xff]
      %v4845 = vld [vmem:[%s5 + $0x100] sm:$0xff]
      %v4846 = vld [vmem:[%s5 + $0x108] sm:$0xff]
      %v4847 = vld [vmem:[%s5 + $0x110] sm:$0xff]
      %v4848 = vld [vmem:[%s5 + $0x118] sm:$0xff]
      %v4849 = vld [vmem:[%s5 + $0x120] sm:$0xff]
      %v4850 = vld [vmem:[%s5 + $0x128] sm:$0xff]
      %v4851 = vld [vmem:[%s5 + $0x130] sm:$0xff]
      %v4852 = vld [vmem:[%s5 + $0x138] sm:$0xff]
      %v4853 = vld [vmem:[%s5 + $0x140] sm:$0xff]
      %v4854 = vld [vmem:[%s5 + $0x148] sm:$0xff]
      %v4855 = vld [vmem:[%s5 + $0x150] sm:$0xff]
      %v4856 = vld [vmem:[%s5 + $0x158] sm:$0xff]
      %v4857 = vld [vmem:[%s5 + $0x160] sm:$0xff]
      %v4858 = vld [vmem:[%s5 + $0x168] sm:$0xff]
      %v4859 = vld [vmem:[%s5 + $0x170] sm:$0xff]
      %v4860 = vld [vmem:[%s5 + $0x178] sm:$0xff]
      %v4861 = vld [vmem:[%s5 + $0x180] sm:$0xff]
      %v4862 = vld [vmem:[%s5 + $0x188] sm:$0xff]
      %v4863 = vld [vmem:[%s5 + $0x190] sm:$0xff]
      %v4864 = vld [vmem:[%s5 + $0x198] sm:$0xff]
      %v4865 = vld [vmem:[%s5 + $0x1a0] sm:$0xff]
      %v4866 = vld [vmem:[%s5 + $0x1a8] sm:$0xff]
      %v4867 = vld [vmem:[%s5 + $0x1b0] sm:$0xff]
      %v4868 = vld [vmem:[%s5 + $0x1b8] sm:$0xff]
      %v4869 = vld [vmem:[%s5 + $0x1c0] sm:$0xff]
      %v4870 = vld [vmem:[%s5 + $0x1c8] sm:$0xff]
      %v4871 = vld [vmem:[%s5 + $0x1d0] sm:$0xff]
      %v4872 = vld [vmem:[%s5 + $0x1d8] sm:$0xff]
      %v4873 = vld [vmem:[%s5 + $0x1e0] sm:$0xff]
      %v4874 = vld [vmem:[%s5 + $0x1e8] sm:$0xff]
      %v4875 = vld [vmem:[%s5 + $0x1f0] sm:$0xff]
      %v4876 = vld [vmem:[%s5 + $0x1f8] sm:$0xff]
      %v4877 = vld [vmem:[%s5 + $0x200] sm:$0xff]
      %v4878 = vld [vmem:[%s5 + $0x208] sm:$0xff]
      %v4879 = vld [vmem:[%s5 + $0x210] sm:$0xff]
      %v4880 = vld [vmem:[%s5 + $0x218] sm:$0xff]
      %v4881 = vld [vmem:[%s5 + $0x220] sm:$0xff]
      %v4882 = vld [vmem:[%s5 + $0x228] sm:$0xff]
      %v4883 = vld [vmem:[%s5 + $0x230] sm:$0xff]
      %v4884 = vld [vmem:[%s5 + $0x238] sm:$0xff]
      %v4885 = vld [vmem:[%s5 + $0x240] sm:$0xff]
      %v4886 = vld [vmem:[%s5 + $0x248] sm:$0xff]
      %v4887 = vld [vmem:[%s5 + $0x250] sm:$0xff]
      %v4888 = vld [vmem:[%s5 + $0x258] sm:$0xff]
      %v4889 = vld [vmem:[%s5 + $0x260] sm:$0xff]
      %v4890 = vld [vmem:[%s5 + $0x268] sm:$0xff]
      %v4891 = vld [vmem:[%s5 + $0x270] sm:$0xff]
      %v4892 = vld [vmem:[%s5 + $0x278] sm:$0xff]
      %v4893 = vld [vmem:[%s5 + $0x280] sm:$0xff]
      %v4894 = vld [vmem:[%s5 + $0x288] sm:$0xff]
      %v4895 = vld [vmem:[%s5 + $0x290] sm:$0xff]
      %v4896 = vld [vmem:[%s5 + $0x298] sm:$0xff]
      %v4897 = vld [vmem:[%s5 + $0x2a0] sm:$0xff]
      %v4898 = vld [vmem:[%s5 + $0x2a8] sm:$0xff]
      %v4899 = vld [vmem:[%s5 + $0x2b0] sm:$0xff]
      %v4900 = vld [vmem:[%s5 + $0x2b8] sm:$0xff]
      %v4901 = vld [vmem:[%s5 + $0x2c0] sm:$0xff]
      %v4902 = vld [vmem:[%s5 + $0x2c8] sm:$0xff]
      %v4903 = vld [vmem:[%s5 + $0x2d0] sm:$0xff]
      %v4904 = vld [vmem:[%s5 + $0x2d8] sm:$0xff]
      %v4905 = vld [vmem:[%s5 + $0x2e0] sm:$0xff]
      %v4906 = vld [vmem:[%s5 + $0x2e8] sm:$0xff]
      %v4907 = vld [vmem:[%s5 + $0x2f0] sm:$0xff]
      %v4908 = vld [vmem:[%s5 + $0x2f8] sm:$0xff]
      %v4909 = vld [vmem:[%s5 + $0x300] sm:$0xff]
      %v4910 = vld [vmem:[%s5 + $0x308] sm:$0xff]
      %v4911 = vld [vmem:[%s5 + $0x310] sm:$0xff]
      %v4912 = vld [vmem:[%s5 + $0x318] sm:$0xff]
      %v4913 = vld [vmem:[%s5 + $0x320] sm:$0xff]
      %v4914 = vld [vmem:[%s5 + $0x328] sm:$0xff]
      %v4915 = vld [vmem:[%s5 + $0x330] sm:$0xff]
      %v4916 = vld [vmem:[%s5 + $0x338] sm:$0xff]
      %v4917 = vld [vmem:[%s5 + $0x340] sm:$0xff]
      %v4918 = vld [vmem:[%s5 + $0x348] sm:$0xff]
      %v4919 = vld [vmem:[%s5 + $0x350] sm:$0xff]
      %v4920 = vld [vmem:[%s5 + $0x358] sm:$0xff]
      %v4921 = vld [vmem:[%s5 + $0x360] sm:$0xff]
      %v4922 = vld [vmem:[%s5 + $0x368] sm:$0xff]
      %v4923 = vld [vmem:[%s5 + $0x370] sm:$0xff]
      %v4924 = vld [vmem:[%s5 + $0x378] sm:$0xff]
      %v4925 = vld [vmem:[%s5 + $0x380] sm:$0xff]
      %v4926 = vld [vmem:[%s5 + $0x388] sm:$0xff]
      %v4927 = vld [vmem:[%s5 + $0x390] sm:$0xff]
      %v4928 = vld [vmem:[%s5 + $0x398] sm:$0xff]
      %v4929 = vld [vmem:[%s5 + $0x3a0] sm:$0xff]
      %v4930 = vld [vmem:[%s5 + $0x3a8] sm:$0xff]
      %v4931 = vld [vmem:[%s5 + $0x3b0] sm:$0xff]
      %v4932 = vld [vmem:[%s5 + $0x3b8] sm:$0xff]
      %v4933 = vld [vmem:[%s5 + $0x3c0] sm:$0xff]
      %v4934 = vld [vmem:[%s5 + $0x3c8] sm:$0xff]
      %v4935 = vld [vmem:[%s5 + $0x3d0] sm:$0xff]
      %v4936 = vld [vmem:[%s5 + $0x3d8] sm:$0xff]
      %v4937 = vld [vmem:[%s5 + $0x3e0] sm:$0xff]
      %v4938 = vld [vmem:[%s5 + $0x3e8] sm:$0xff]
      %v4939 = vld [vmem:[%s5 + $0x3f0] sm:$0xff]
      %v4940 = vld [vmem:[%s5 + $0x3f8] sm:$0xff]
      %v4941 = vld [vmem:[%s6] sm:$0xf]
      %v4943 = vlaneseq
      %v4944 = vshrl.u32 %v4943, 7
      %v4945 = vsub.s32 0, %v4944
      %v4946 = vrot.slane %v4941, %v4945
      %v4947 = vlaneseq
      %v4948 = vshrl.u32 %v4947, 7
      %v4949 = vsub.s32 1, %v4948
      %v4950 = vrot.slane %v4941, %v4949
      %v4951 = vlaneseq
      %v4952 = vshrl.u32 %v4951, 7
      %v4953 = vsub.s32 2, %v4952
      %v4954 = vrot.slane %v4941, %v4953
      %v4955 = vlaneseq
      %v4956 = vshrl.u32 %v4955, 7
      %v4957 = vsub.s32 3, %v4956
      %v4958 = vrot.slane %v4941, %v4957
      %v5091 = vunpack.c.l.b16 %v4813
      %v5092 = vunpack.c.h.b16 %v4813
      %v5093 = vunpack.c.l.b16 %v4814
      %v5094 = vunpack.c.h.b16 %v4814
      %v5095 = vunpack.c.l.b16 %v4815
      %v5096 = vunpack.c.h.b16 %v4815
      %v5097 = vunpack.c.l.b16 %v4816
      %v5098 = vunpack.c.h.b16 %v4816
      %v5099 = vunpack.c.l.b16 %v4817
      %v5100 = vunpack.c.h.b16 %v4817
      %v5101 = vunpack.c.l.b16 %v4818
      %v5102 = vunpack.c.h.b16 %v4818
      %v5103 = vunpack.c.l.b16 %v4819
      %v5104 = vunpack.c.h.b16 %v4819
      %v5105 = vunpack.c.l.b16 %v4820
      %v5106 = vunpack.c.h.b16 %v4820
      %v5107 = vunpack.c.l.b16 %v4821
      %v5108 = vunpack.c.h.b16 %v4821
      %v5109 = vunpack.c.l.b16 %v4822
      %v5110 = vunpack.c.h.b16 %v4822
      %v5111 = vunpack.c.l.b16 %v4823
      %v5112 = vunpack.c.h.b16 %v4823
      %v5113 = vunpack.c.l.b16 %v4824
      %v5114 = vunpack.c.h.b16 %v4824
      %v5115 = vunpack.c.l.b16 %v4825
      %v5116 = vunpack.c.h.b16 %v4825
      %v5117 = vunpack.c.l.b16 %v4826
      %v5118 = vunpack.c.h.b16 %v4826
      %v5119 = vunpack.c.l.b16 %v4827
      %v5120 = vunpack.c.h.b16 %v4827
      %v5121 = vunpack.c.l.b16 %v4828
      %v5122 = vunpack.c.h.b16 %v4828
      %v5123 = vunpack.c.l.b16 %v4829
      %v5124 = vunpack.c.h.b16 %v4829
      %v5125 = vunpack.c.l.b16 %v4830
      %v5126 = vunpack.c.h.b16 %v4830
      %v5127 = vunpack.c.l.b16 %v4831
      %v5128 = vunpack.c.h.b16 %v4831
      %v5129 = vunpack.c.l.b16 %v4832
      %v5130 = vunpack.c.h.b16 %v4832
      %v5131 = vunpack.c.l.b16 %v4833
      %v5132 = vunpack.c.h.b16 %v4833
      %v5133 = vunpack.c.l.b16 %v4834
      %v5134 = vunpack.c.h.b16 %v4834
      %v5135 = vunpack.c.l.b16 %v4835
      %v5136 = vunpack.c.h.b16 %v4835
      %v5137 = vunpack.c.l.b16 %v4836
      %v5138 = vunpack.c.h.b16 %v4836
      %v5139 = vunpack.c.l.b16 %v4837
      %v5140 = vunpack.c.h.b16 %v4837
      %v5141 = vunpack.c.l.b16 %v4838
      %v5142 = vunpack.c.h.b16 %v4838
      %v5143 = vunpack.c.l.b16 %v4839
      %v5144 = vunpack.c.h.b16 %v4839
      %v5145 = vunpack.c.l.b16 %v4840
      %v5146 = vunpack.c.h.b16 %v4840
      %v5147 = vunpack.c.l.b16 %v4841
      %v5148 = vunpack.c.h.b16 %v4841
      %v5149 = vunpack.c.l.b16 %v4842
      %v5150 = vunpack.c.h.b16 %v4842
      %v5151 = vunpack.c.l.b16 %v4843
      %v5152 = vunpack.c.h.b16 %v4843
      %v5153 = vunpack.c.l.b16 %v4844
      %v5154 = vunpack.c.h.b16 %v4844
      %v5155 = vunpack.c.l.b16 %v4845
      %v5156 = vunpack.c.h.b16 %v4845
      %v5157 = vunpack.c.l.b16 %v4846
      %v5158 = vunpack.c.h.b16 %v4846
      %v5159 = vunpack.c.l.b16 %v4847
      %v5160 = vunpack.c.h.b16 %v4847
      %v5161 = vunpack.c.l.b16 %v4848
      %v5162 = vunpack.c.h.b16 %v4848
      %v5163 = vunpack.c.l.b16 %v4849
      %v5164 = vunpack.c.h.b16 %v4849
      %v5165 = vunpack.c.l.b16 %v4850
      %v5166 = vunpack.c.h.b16 %v4850
      %v5167 = vunpack.c.l.b16 %v4851
      %v5168 = vunpack.c.h.b16 %v4851
      %v5169 = vunpack.c.l.b16 %v4852
      %v5170 = vunpack.c.h.b16 %v4852
      %v5171 = vunpack.c.l.b16 %v4853
      %v5172 = vunpack.c.h.b16 %v4853
      %v5173 = vunpack.c.l.b16 %v4854
      %v5174 = vunpack.c.h.b16 %v4854
      %v5175 = vunpack.c.l.b16 %v4855
      %v5176 = vunpack.c.h.b16 %v4855
      %v5177 = vunpack.c.l.b16 %v4856
      %v5178 = vunpack.c.h.b16 %v4856
      %v5179 = vunpack.c.l.b16 %v4857
      %v5180 = vunpack.c.h.b16 %v4857
      %v5181 = vunpack.c.l.b16 %v4858
      %v5182 = vunpack.c.h.b16 %v4858
      %v5183 = vunpack.c.l.b16 %v4859
      %v5184 = vunpack.c.h.b16 %v4859
      %v5185 = vunpack.c.l.b16 %v4860
      %v5186 = vunpack.c.h.b16 %v4860
      %v5187 = vunpack.c.l.b16 %v4861
      %v5188 = vunpack.c.h.b16 %v4861
      %v5189 = vunpack.c.l.b16 %v4862
      %v5190 = vunpack.c.h.b16 %v4862
      %v5191 = vunpack.c.l.b16 %v4863
      %v5192 = vunpack.c.h.b16 %v4863
      %v5193 = vunpack.c.l.b16 %v4864
      %v5194 = vunpack.c.h.b16 %v4864
      %v5195 = vunpack.c.l.b16 %v4865
      %v5196 = vunpack.c.h.b16 %v4865
      %v5197 = vunpack.c.l.b16 %v4866
      %v5198 = vunpack.c.h.b16 %v4866
      %v5199 = vunpack.c.l.b16 %v4867
      %v5200 = vunpack.c.h.b16 %v4867
      %v5201 = vunpack.c.l.b16 %v4868
      %v5202 = vunpack.c.h.b16 %v4868
      %v5203 = vunpack.c.l.b16 %v4869
      %v5204 = vunpack.c.h.b16 %v4869
      %v5205 = vunpack.c.l.b16 %v4870
      %v5206 = vunpack.c.h.b16 %v4870
      %v5207 = vunpack.c.l.b16 %v4871
      %v5208 = vunpack.c.h.b16 %v4871
      %v5209 = vunpack.c.l.b16 %v4872
      %v5210 = vunpack.c.h.b16 %v4872
      %v5211 = vunpack.c.l.b16 %v4873
      %v5212 = vunpack.c.h.b16 %v4873
      %v5213 = vunpack.c.l.b16 %v4874
      %v5214 = vunpack.c.h.b16 %v4874
      %v5215 = vunpack.c.l.b16 %v4875
      %v5216 = vunpack.c.h.b16 %v4875
      %v5217 = vunpack.c.l.b16 %v4876
      %v5218 = vunpack.c.h.b16 %v4876
      %v5219 = vunpack.c.l.b16 %v4877
      %v5220 = vunpack.c.h.b16 %v4877
      %v5221 = vunpack.c.l.b16 %v4878
      %v5222 = vunpack.c.h.b16 %v4878
      %v5223 = vunpack.c.l.b16 %v4879
      %v5224 = vunpack.c.h.b16 %v4879
      %v5225 = vunpack.c.l.b16 %v4880
      %v5226 = vunpack.c.h.b16 %v4880
      %v5227 = vunpack.c.l.b16 %v4881
      %v5228 = vunpack.c.h.b16 %v4881
      %v5229 = vunpack.c.l.b16 %v4882
      %v5230 = vunpack.c.h.b16 %v4882
      %v5231 = vunpack.c.l.b16 %v4883
      %v5232 = vunpack.c.h.b16 %v4883
      %v5233 = vunpack.c.l.b16 %v4884
      %v5234 = vunpack.c.h.b16 %v4884
      %v5235 = vunpack.c.l.b16 %v4885
      %v5236 = vunpack.c.h.b16 %v4885
      %v5237 = vunpack.c.l.b16 %v4886
      %v5238 = vunpack.c.h.b16 %v4886
      %v5239 = vunpack.c.l.b16 %v4887
      %v5240 = vunpack.c.h.b16 %v4887
      %v5241 = vunpack.c.l.b16 %v4888
      %v5242 = vunpack.c.h.b16 %v4888
      %v5243 = vunpack.c.l.b16 %v4889
      %v5244 = vunpack.c.h.b16 %v4889
      %v5245 = vunpack.c.l.b16 %v4890
      %v5246 = vunpack.c.h.b16 %v4890
      %v5247 = vunpack.c.l.b16 %v4891
      %v5248 = vunpack.c.h.b16 %v4891
      %v5249 = vunpack.c.l.b16 %v4892
      %v5250 = vunpack.c.h.b16 %v4892
      %v5251 = vunpack.c.l.b16 %v4893
      %v5252 = vunpack.c.h.b16 %v4893
      %v5253 = vunpack.c.l.b16 %v4894
      %v5254 = vunpack.c.h.b16 %v4894
      %v5255 = vunpack.c.l.b16 %v4895
      %v5256 = vunpack.c.h.b16 %v4895
      %v5257 = vunpack.c.l.b16 %v4896
      %v5258 = vunpack.c.h.b16 %v4896
      %v5259 = vunpack.c.l.b16 %v4897
      %v5260 = vunpack.c.h.b16 %v4897
      %v5261 = vunpack.c.l.b16 %v4898
      %v5262 = vunpack.c.h.b16 %v4898
      %v5263 = vunpack.c.l.b16 %v4899
      %v5264 = vunpack.c.h.b16 %v4899
      %v5265 = vunpack.c.l.b16 %v4900
      %v5266 = vunpack.c.h.b16 %v4900
      %v5267 = vunpack.c.l.b16 %v4901
      %v5268 = vunpack.c.h.b16 %v4901
      %v5269 = vunpack.c.l.b16 %v4902
      %v5270 = vunpack.c.h.b16 %v4902
      %v5271 = vunpack.c.l.b16 %v4903
      %v5272 = vunpack.c.h.b16 %v4903
      %v5273 = vunpack.c.l.b16 %v4904
      %v5274 = vunpack.c.h.b16 %v4904
      %v5275 = vunpack.c.l.b16 %v4905
      %v5276 = vunpack.c.h.b16 %v4905
      %v5277 = vunpack.c.l.b16 %v4906
      %v5278 = vunpack.c.h.b16 %v4906
      %v5279 = vunpack.c.l.b16 %v4907
      %v5280 = vunpack.c.h.b16 %v4907
      %v5281 = vunpack.c.l.b16 %v4908
      %v5282 = vunpack.c.h.b16 %v4908
      %v5283 = vunpack.c.l.b16 %v4909
      %v5284 = vunpack.c.h.b16 %v4909
      %v5285 = vunpack.c.l.b16 %v4910
      %v5286 = vunpack.c.h.b16 %v4910
      %v5287 = vunpack.c.l.b16 %v4911
      %v5288 = vunpack.c.h.b16 %v4911
      %v5289 = vunpack.c.l.b16 %v4912
      %v5290 = vunpack.c.h.b16 %v4912
      %v5291 = vunpack.c.l.b16 %v4913
      %v5292 = vunpack.c.h.b16 %v4913
      %v5293 = vunpack.c.l.b16 %v4914
      %v5294 = vunpack.c.h.b16 %v4914
      %v5295 = vunpack.c.l.b16 %v4915
      %v5296 = vunpack.c.h.b16 %v4915
      %v5297 = vunpack.c.l.b16 %v4916
      %v5298 = vunpack.c.h.b16 %v4916
      %v5299 = vunpack.c.l.b16 %v4917
      %v5300 = vunpack.c.h.b16 %v4917
      %v5301 = vunpack.c.l.b16 %v4918
      %v5302 = vunpack.c.h.b16 %v4918
      %v5303 = vunpack.c.l.b16 %v4919
      %v5304 = vunpack.c.h.b16 %v4919
      %v5305 = vunpack.c.l.b16 %v4920
      %v5306 = vunpack.c.h.b16 %v4920
      %v5307 = vunpack.c.l.b16 %v4921
      %v5308 = vunpack.c.h.b16 %v4921
      %v5309 = vunpack.c.l.b16 %v4922
      %v5310 = vunpack.c.h.b16 %v4922
      %v5311 = vunpack.c.l.b16 %v4923
      %v5312 = vunpack.c.h.b16 %v4923
      %v5313 = vunpack.c.l.b16 %v4924
      %v5314 = vunpack.c.h.b16 %v4924
      %v5315 = vunpack.c.l.b16 %v4925
      %v5316 = vunpack.c.h.b16 %v4925
      %v5317 = vunpack.c.l.b16 %v4926
      %v5318 = vunpack.c.h.b16 %v4926
      %v5319 = vunpack.c.l.b16 %v4927
      %v5320 = vunpack.c.h.b16 %v4927
      %v5321 = vunpack.c.l.b16 %v4928
      %v5322 = vunpack.c.h.b16 %v4928
      %v5323 = vunpack.c.l.b16 %v4929
      %v5324 = vunpack.c.h.b16 %v4929
      %v5325 = vunpack.c.l.b16 %v4930
      %v5326 = vunpack.c.h.b16 %v4930
      %v5327 = vunpack.c.l.b16 %v4931
      %v5328 = vunpack.c.h.b16 %v4931
      %v5329 = vunpack.c.l.b16 %v4932
      %v5330 = vunpack.c.h.b16 %v4932
      %v5331 = vunpack.c.l.b16 %v4933
      %v5332 = vunpack.c.h.b16 %v4933
      %v5333 = vunpack.c.l.b16 %v4934
      %v5334 = vunpack.c.h.b16 %v4934
      %v5335 = vunpack.c.l.b16 %v4935
      %v5336 = vunpack.c.h.b16 %v4935
      %v5337 = vunpack.c.l.b16 %v4936
      %v5338 = vunpack.c.h.b16 %v4936
      %v5339 = vunpack.c.l.b16 %v4937
      %v5340 = vunpack.c.h.b16 %v4937
      %v5341 = vunpack.c.l.b16 %v4938
      %v5342 = vunpack.c.h.b16 %v4938
      %v5343 = vunpack.c.l.b16 %v4939
      %v5344 = vunpack.c.h.b16 %v4939
      %v5345 = vunpack.c.l.b16 %v4940
      %v5346 = vunpack.c.h.b16 %v4940
      %v5347 = vpack.c.b16 %v5095, %v5091
      %v5348 = vpack.c.b16 %v5096, %v5092
      %v5349 = vpack.c.b16 %v5097, %v5093
      %v5350 = vpack.c.b16 %v5098, %v5094
      %v5351 = vpack.c.b16 %v5103, %v5099
      %v5352 = vpack.c.b16 %v5104, %v5100
      %v5353 = vpack.c.b16 %v5105, %v5101
      %v5354 = vpack.c.b16 %v5106, %v5102
      %v5355 = vpack.c.b16 %v5111, %v5107
      %v5356 = vpack.c.b16 %v5112, %v5108
      %v5357 = vpack.c.b16 %v5113, %v5109
      %v5358 = vpack.c.b16 %v5114, %v5110
      %v5359 = vpack.c.b16 %v5119, %v5115
      %v5360 = vpack.c.b16 %v5120, %v5116
      %v5361 = vpack.c.b16 %v5121, %v5117
      %v5362 = vpack.c.b16 %v5122, %v5118
      %v5363 = vpack.c.b16 %v5127, %v5123
      %v5364 = vpack.c.b16 %v5128, %v5124
      %v5365 = vpack.c.b16 %v5129, %v5125
      %v5366 = vpack.c.b16 %v5130, %v5126
      %v5367 = vpack.c.b16 %v5135, %v5131
      %v5368 = vpack.c.b16 %v5136, %v5132
      %v5369 = vpack.c.b16 %v5137, %v5133
      %v5370 = vpack.c.b16 %v5138, %v5134
      %v5371 = vpack.c.b16 %v5143, %v5139
      %v5372 = vpack.c.b16 %v5144, %v5140
      %v5373 = vpack.c.b16 %v5145, %v5141
      %v5374 = vpack.c.b16 %v5146, %v5142
      %v5375 = vpack.c.b16 %v5151, %v5147
      %v5376 = vpack.c.b16 %v5152, %v5148
      %v5377 = vpack.c.b16 %v5153, %v5149
      %v5378 = vpack.c.b16 %v5154, %v5150
      %v5379 = vpack.c.b16 %v5159, %v5155
      %v5380 = vpack.c.b16 %v5160, %v5156
      %v5381 = vpack.c.b16 %v5161, %v5157
      %v5382 = vpack.c.b16 %v5162, %v5158
      %v5383 = vpack.c.b16 %v5167, %v5163
      %v5384 = vpack.c.b16 %v5168, %v5164
      %v5385 = vpack.c.b16 %v5169, %v5165
      %v5386 = vpack.c.b16 %v5170, %v5166
      %v5387 = vpack.c.b16 %v5175, %v5171
      %v5388 = vpack.c.b16 %v5176, %v5172
      %v5389 = vpack.c.b16 %v5177, %v5173
      %v5390 = vpack.c.b16 %v5178, %v5174
      %v5391 = vpack.c.b16 %v5183, %v5179
      %v5392 = vpack.c.b16 %v5184, %v5180
      %v5393 = vpack.c.b16 %v5185, %v5181
      %v5394 = vpack.c.b16 %v5186, %v5182
      %v5395 = vpack.c.b16 %v5191, %v5187
      %v5396 = vpack.c.b16 %v5192, %v5188
      %v5397 = vpack.c.b16 %v5193, %v5189
      %v5398 = vpack.c.b16 %v5194, %v5190
      %v5399 = vpack.c.b16 %v5199, %v5195
      %v5400 = vpack.c.b16 %v5200, %v5196
      %v5401 = vpack.c.b16 %v5201, %v5197
      %v5402 = vpack.c.b16 %v5202, %v5198
      %v5403 = vpack.c.b16 %v5207, %v5203
      %v5404 = vpack.c.b16 %v5208, %v5204
      %v5405 = vpack.c.b16 %v5209, %v5205
      %v5406 = vpack.c.b16 %v5210, %v5206
      %v5407 = vpack.c.b16 %v5215, %v5211
      %v5408 = vpack.c.b16 %v5216, %v5212
      %v5409 = vpack.c.b16 %v5217, %v5213
      %v5410 = vpack.c.b16 %v5218, %v5214
      %v5411 = vpack.c.b16 %v5223, %v5219
      %v5412 = vpack.c.b16 %v5224, %v5220
      %v5413 = vpack.c.b16 %v5225, %v5221
      %v5414 = vpack.c.b16 %v5226, %v5222
      %v5415 = vpack.c.b16 %v5231, %v5227
      %v5416 = vpack.c.b16 %v5232, %v5228
      %v5417 = vpack.c.b16 %v5233, %v5229
      %v5418 = vpack.c.b16 %v5234, %v5230
      %v5419 = vpack.c.b16 %v5239, %v5235
      %v5420 = vpack.c.b16 %v5240, %v5236
      %v5421 = vpack.c.b16 %v5241, %v5237
      %v5422 = vpack.c.b16 %v5242, %v5238
      %v5423 = vpack.c.b16 %v5247, %v5243
      %v5424 = vpack.c.b16 %v5248, %v5244
      %v5425 = vpack.c.b16 %v5249, %v5245
      %v5426 = vpack.c.b16 %v5250, %v5246
      %v5427 = vpack.c.b16 %v5255, %v5251
      %v5428 = vpack.c.b16 %v5256, %v5252
      %v5429 = vpack.c.b16 %v5257, %v5253
      %v5430 = vpack.c.b16 %v5258, %v5254
      %v5431 = vpack.c.b16 %v5263, %v5259
      %v5432 = vpack.c.b16 %v5264, %v5260
      %v5433 = vpack.c.b16 %v5265, %v5261
      %v5434 = vpack.c.b16 %v5266, %v5262
      %v5435 = vpack.c.b16 %v5271, %v5267
      %v5436 = vpack.c.b16 %v5272, %v5268
      %v5437 = vpack.c.b16 %v5273, %v5269
      %v5438 = vpack.c.b16 %v5274, %v5270
      %v5439 = vpack.c.b16 %v5279, %v5275
      %v5440 = vpack.c.b16 %v5280, %v5276
      %v5441 = vpack.c.b16 %v5281, %v5277
      %v5442 = vpack.c.b16 %v5282, %v5278
      %v5443 = vpack.c.b16 %v5287, %v5283
      %v5444 = vpack.c.b16 %v5288, %v5284
      %v5445 = vpack.c.b16 %v5289, %v5285
      %v5446 = vpack.c.b16 %v5290, %v5286
      %v5447 = vpack.c.b16 %v5295, %v5291
      %v5448 = vpack.c.b16 %v5296, %v5292
      %v5449 = vpack.c.b16 %v5297, %v5293
      %v5450 = vpack.c.b16 %v5298, %v5294
      %v5451 = vpack.c.b16 %v5303, %v5299
      %v5452 = vpack.c.b16 %v5304, %v5300
      %v5453 = vpack.c.b16 %v5305, %v5301
      %v5454 = vpack.c.b16 %v5306, %v5302
      %v5455 = vpack.c.b16 %v5311, %v5307
      %v5456 = vpack.c.b16 %v5312, %v5308
      %v5457 = vpack.c.b16 %v5313, %v5309
      %v5458 = vpack.c.b16 %v5314, %v5310
      %v5459 = vpack.c.b16 %v5319, %v5315
      %v5460 = vpack.c.b16 %v5320, %v5316
      %v5461 = vpack.c.b16 %v5321, %v5317
      %v5462 = vpack.c.b16 %v5322, %v5318
      %v5463 = vpack.c.b16 %v5327, %v5323
      %v5464 = vpack.c.b16 %v5328, %v5324
      %v5465 = vpack.c.b16 %v5329, %v5325
      %v5466 = vpack.c.b16 %v5330, %v5326
      %v5467 = vpack.c.b16 %v5335, %v5331
      %v5468 = vpack.c.b16 %v5336, %v5332
      %v5469 = vpack.c.b16 %v5337, %v5333
      %v5470 = vpack.c.b16 %v5338, %v5334
      %v5471 = vpack.c.b16 %v5343, %v5339
      %v5472 = vpack.c.b16 %v5344, %v5340
      %v5473 = vpack.c.b16 %v5345, %v5341
      %v5474 = vpack.c.b16 %v5346, %v5342
      %5603 = vmatprep.subr.bf16.mxu0 %v5348
      %5604 = vmatpush1.bf16.msra.mxu0 %v5347
      %5605 = vmatprep.subr.bf16.mxu0 %v5352
      %5606 = vmatpush1.bf16.msra.mxu0 %v5351
      %5607 = vmatprep.subr.bf16.mxu0 %v5356
      %5608 = vmatpush1.bf16.msra.mxu0 %v5355
      %5609 = vmatprep.subr.bf16.mxu0 %v5360
      %5610 = vmatpush1.bf16.msra.mxu0 %v5359
      %5611 = vmatprep.subr.bf16.mxu0 %v5364
      %5612 = vmatpush1.bf16.msra.mxu0 %v5363
      %5613 = vmatprep.subr.bf16.mxu0 %v5368
      %5614 = vmatpush1.bf16.msra.mxu0 %v5367
      %5615 = vmatprep.subr.bf16.mxu0 %v5372
      %5616 = vmatpush1.bf16.msra.mxu0 %v5371
      %5617 = vmatprep.subr.bf16.mxu0 %v5376
      %5618 = vmatpush1.bf16.msra.mxu0 %v5375
      %5619 = vmatprep.subr.bf16.mxu0 %v5380
      %5620 = vmatpush1.bf16.msra.mxu0 %v5379
      %5621 = vmatprep.subr.bf16.mxu0 %v5384
      %5622 = vmatpush1.bf16.msra.mxu0 %v5383
      %5623 = vmatprep.subr.bf16.mxu0 %v5388
      %5624 = vmatpush1.bf16.msra.mxu0 %v5387
      %5625 = vmatprep.subr.bf16.mxu0 %v5392
      %5626 = vmatpush1.bf16.msra.mxu0 %v5391
      %5627 = vmatprep.subr.bf16.mxu0 %v5396
      %5628 = vmatpush1.bf16.msra.mxu0 %v5395
      %5629 = vmatprep.subr.bf16.mxu0 %v5400
      %5630 = vmatpush1.bf16.msra.mxu0 %v5399
      %5631 = vmatprep.subr.bf16.mxu0 %v5404
      %5632 = vmatpush1.bf16.msra.mxu0 %v5403
      %5633 = vmatprep.subr.bf16.mxu0 %v5408
      %5634 = vmatpush1.bf16.msra.mxu0 %v5407
      %5635 = vmatprep.mubr.bf16.mxu0 %v4810
      %5636 = vmatmul.mubr.bf16.gmra.mrb[0].mxu0 %v4809
      %v5637 = vpop.f32.mrb[0].mxu0
      %v5638 = vadd.f32 %v4946, %v5637
      %v5639 = vpop.f32.mrb[0].mxu0
      %v5640 = vadd.f32 %v4950, %v5639
      %v5641 = vpop.f32.mrb[0].mxu0
      %v5642 = vadd.f32 %v4946, %v5641
      %v5643 = vpop.f32.mrb[0].mxu0
      %v5644 = vadd.f32 %v4950, %v5643
      %5645 = vdwg.mxu0
      %5646 = vmatprep.subr.bf16.mxu0 %v5412
      %5647 = vmatpush1.bf16.msra.mxu0 %v5411
      %5648 = vmatprep.subr.bf16.mxu0 %v5416
      %5649 = vmatpush1.bf16.msra.mxu0 %v5415
      %5650 = vmatprep.subr.bf16.mxu0 %v5420
      %5651 = vmatpush1.bf16.msra.mxu0 %v5419
      %5652 = vmatprep.subr.bf16.mxu0 %v5424
      %5653 = vmatpush1.bf16.msra.mxu0 %v5423
      %5654 = vmatprep.subr.bf16.mxu0 %v5428
      %5655 = vmatpush1.bf16.msra.mxu0 %v5427
      %5656 = vmatprep.subr.bf16.mxu0 %v5432
      %5657 = vmatpush1.bf16.msra.mxu0 %v5431
      %5658 = vmatprep.subr.bf16.mxu0 %v5436
      %5659 = vmatpush1.bf16.msra.mxu0 %v5435
      %5660 = vmatprep.subr.bf16.mxu0 %v5440
      %5661 = vmatpush1.bf16.msra.mxu0 %v5439
      %5662 = vmatprep.subr.bf16.mxu0 %v5444
      %5663 = vmatpush1.bf16.msra.mxu0 %v5443
      %5664 = vmatprep.subr.bf16.mxu0 %v5448
      %5665 = vmatpush1.bf16.msra.mxu0 %v5447
      %5666 = vmatprep.subr.bf16.mxu0 %v5452
      %5667 = vmatpush1.bf16.msra.mxu0 %v5451
      %5668 = vmatprep.subr.bf16.mxu0 %v5456
      %5669 = vmatpush1.bf16.msra.mxu0 %v5455
      %5670 = vmatprep.subr.bf16.mxu0 %v5460
      %5671 = vmatpush1.bf16.msra.mxu0 %v5459
      %5672 = vmatprep.subr.bf16.mxu0 %v5464
      %5673 = vmatpush1.bf16.msra.mxu0 %v5463
      %5674 = vmatprep.subr.bf16.mxu0 %v5468
      %5675 = vmatpush1.bf16.msra.mxu0 %v5467
      %5676 = vmatprep.subr.bf16.mxu0 %v5472
      %5677 = vmatpush1.bf16.msra.mxu0 %v5471
      %5678 = vmatprep.mubr.bf16.mxu0 %v4812
      %5679 = vmatmul.mubr.bf16.gmra.mrb[0].mxu0 %v4811
      %v5680 = vpop.f32.mrb[0].mxu0
      %v5681 = vadd.f32 %v5638, %v5680
      %v5682 = vpop.f32.mrb[0].mxu0
      %v5683 = vadd.f32 %v5640, %v5682
      %v5684 = vpop.f32.mrb[0].mxu0
      %v5685 = vadd.f32 %v5642, %v5684
      %v5686 = vpop.f32.mrb[0].mxu0
      %v5687 = vadd.f32 %v5644, %v5686
      %5688 = vdwg.mxu0
      %5689 = vmatprep.subr.bf16.mxu0 %v5350
      %5690 = vmatpush1.bf16.msra.mxu0 %v5349
      %5691 = vmatprep.subr.bf16.mxu0 %v5354
      %5692 = vmatpush1.bf16.msra.mxu0 %v5353
      %5693 = vmatprep.subr.bf16.mxu0 %v5358
      %5694 = vmatpush1.bf16.msra.mxu0 %v5357
      %5695 = vmatprep.subr.bf16.mxu0 %v5362
      %5696 = vmatpush1.bf16.msra.mxu0 %v5361
      %5697 = vmatprep.subr.bf16.mxu0 %v5366
      %5698 = vmatpush1.bf16.msra.mxu0 %v5365
      %5699 = vmatprep.subr.bf16.mxu0 %v5370
      %5700 = vmatpush1.bf16.msra.mxu0 %v5369
      %5701 = vmatprep.subr.bf16.mxu0 %v5374
      %5702 = vmatpush1.bf16.msra.mxu0 %v5373
      %5703 = vmatprep.subr.bf16.mxu0 %v5378
      %5704 = vmatpush1.bf16.msra.mxu0 %v5377
      %5705 = vmatprep.subr.bf16.mxu0 %v5382
      %5706 = vmatpush1.bf16.msra.mxu0 %v5381
      %5707 = vmatprep.subr.bf16.mxu0 %v5386
      %5708 = vmatpush1.bf16.msra.mxu0 %v5385
      %5709 = vmatprep.subr.bf16.mxu0 %v5390
      %5710 = vmatpush1.bf16.msra.mxu0 %v5389
      %5711 = vmatprep.subr.bf16.mxu0 %v5394
      %5712 = vmatpush1.bf16.msra.mxu0 %v5393
      %5713 = vmatprep.subr.bf16.mxu0 %v5398
      %5714 = vmatpush1.bf16.msra.mxu0 %v5397
      %5715 = vmatprep.subr.bf16.mxu0 %v5402
      %5716 = vmatpush1.bf16.msra.mxu0 %v5401
      %5717 = vmatprep.subr.bf16.mxu0 %v5406
      %5718 = vmatpush1.bf16.msra.mxu0 %v5405
      %5719 = vmatprep.subr.bf16.mxu0 %v5410
      %5720 = vmatpush1.bf16.msra.mxu0 %v5409
      %5721 = vmatprep.mubr.bf16.mxu0 %v4810
      %5722 = vmatmul.mubr.bf16.gmra.mrb[0].mxu0 %v4809
      %v5723 = vpop.f32.mrb[0].mxu0
      %v5724 = vadd.f32 %v4954, %v5723
      %v5725 = vpop.f32.mrb[0].mxu0
      %v5726 = vadd.f32 %v4958, %v5725
      %v5727 = vpop.f32.mrb[0].mxu0
      %v5728 = vadd.f32 %v4954, %v5727
      %v5729 = vpop.f32.mrb[0].mxu0
      %v5730 = vadd.f32 %v4958, %v5729
      %5731 = vdwg.mxu0
      %5732 = vmatprep.subr.bf16.mxu0 %v5414
      %5733 = vmatpush1.bf16.msra.mxu0 %v5413
      %5734 = vmatprep.subr.bf16.mxu0 %v5418
      %5735 = vmatpush1.bf16.msra.mxu0 %v5417
      %5736 = vmatprep.subr.bf16.mxu0 %v5422
      %5737 = vmatpush1.bf16.msra.mxu0 %v5421
      %5738 = vmatprep.subr.bf16.mxu0 %v5426
      %5739 = vmatpush1.bf16.msra.mxu0 %v5425
      %5740 = vmatprep.subr.bf16.mxu0 %v5430
      %5741 = vmatpush1.bf16.msra.mxu0 %v5429
      %5742 = vmatprep.subr.bf16.mxu0 %v5434
      %5743 = vmatpush1.bf16.msra.mxu0 %v5433
      %5744 = vmatprep.subr.bf16.mxu0 %v5438
      %5745 = vmatpush1.bf16.msra.mxu0 %v5437
      %5746 = vmatprep.subr.bf16.mxu0 %v5442
      %5747 = vmatpush1.bf16.msra.mxu0 %v5441
      %5748 = vmatprep.subr.bf16.mxu0 %v5446
      %5749 = vmatpush1.bf16.msra.mxu0 %v5445
      %5750 = vmatprep.subr.bf16.mxu0 %v5450
      %5751 = vmatpush1.bf16.msra.mxu0 %v5449
      %5752 = vmatprep.subr.bf16.mxu0 %v5454
      %5753 = vmatpush1.bf16.msra.mxu0 %v5453
      %5754 = vmatprep.subr.bf16.mxu0 %v5458
      %5755 = vmatpush1.bf16.msra.mxu0 %v5457
      %5756 = vmatprep.subr.bf16.mxu0 %v5462
      %5757 = vmatpush1.bf16.msra.mxu0 %v5461
      %5758 = vmatprep.subr.bf16.mxu0 %v5466
      %5759 = vmatpush1.bf16.msra.mxu0 %v5465
      %5760 = vmatprep.subr.bf16.mxu0 %v5470
      %5761 = vmatpush1.bf16.msra.mxu0 %v5469
      %5762 = vmatprep.subr.bf16.mxu0 %v5474
      %5763 = vmatpush1.bf16.msra.mxu0 %v5473
      %5764 = vmatprep.mubr.bf16.mxu0 %v4812
      %5765 = vmatmul.mubr.bf16.gmra.mrb[0].mxu0 %v4811
      %v5766 = vpop.f32.mrb[0].mxu0
      %v5767 = vadd.f32 %v5724, %v5766
      %v5768 = vpop.f32.mrb[0].mxu0
      %v5769 = vadd.f32 %v5726, %v5768
      %v5770 = vpop.f32.mrb[0].mxu0
      %v5771 = vadd.f32 %v5728, %v5770
      %v5772 = vpop.f32.mrb[0].mxu0
      %v5773 = vadd.f32 %v5730, %v5772
      %5774 = vdwg.mxu0
      %5775 = vst [vmem:[%s388] sm:$0xff] %v5681
      %5776 = vst [vmem:[%s388 + $0x8] sm:$0xff] %v5683
      %5777 = vst [vmem:[%s388 + $0x10] sm:$0xff] %v5767
      %5778 = vst [vmem:[%s388 + $0x18] sm:$0xff] %v5769
      %5779 = vst [vmem:[%s388 + $0x20] sm:$0xff] %v5685
      %5780 = vst [vmem:[%s388 + $0x28] sm:$0xff] %v5687
      %5781 = vst [vmem:[%s388 + $0x30] sm:$0xff] %v5771
      %5782 = vst [vmem:[%s388 + $0x38] sm:$0xff] %v5773
      %p5783 = scmp.lt.s32.totalorder %s22, 1
      %s5784 = scalar_select %p5783, %s22, 1
      %p5785 = scmp.lt.s32.totalorder %s23, 1
      %s5786 = scalar_select %p5785, %s23, 1
      %s5787 = smul.addr %s5786, 8
      %s5788 = smul.addr %s5784, 16
      %s5789 = sadd.s32 %s5787, %s5788
      %s5790 = smul.addr %s5789, 8
      %s5791 = scalar_lea.vmem %s7, %s5790
      // Predicated region
      $region49: #{cross_attention_forward.1} parent=47 // pred_check
        %p5792 = pneg %p224
      $region50: #{cross_attention_forward.1} parent=47 // pred_check_branch
        %5794 = sbr.rel (%p5792) target = $region52
      $region51: #{cross_attention_forward.1} parent=47 // pred_region
        _
      $region52: #{cross_attention_forward.1} parent=47 // pred_fallthru
        _
    $region48: #{cross_attention_forward.1} parent=5 // pred_fallthru
      _
    %p5795 = scmp.le.s32.totalorder 2, %s13
    // Predicated region
    $region53: #{cross_attention_forward.1} parent=5 // pred_check
      %p5796 = pneg %p5795
    $region54: #{cross_attention_forward.1} parent=5 // pred_check_branch
      %5798 = sbr.rel (%p5796) target = $region56
    $region55: #{cross_attention_forward.1} parent=5 // pred_region
      %s5799 = ssub.s32 %s13, 2
      // Predicated region
      $region57: #{cross_attention_forward.1} parent=55 // pred_check
        %p5800 = pneg %p230
      $region58: #{cross_attention_forward.1} parent=55 // pred_check_branch
        %5802 = sbr.rel (%p5800) target = $region60
      $region59: #{cross_attention_forward.1} parent=55 // pred_region
        %p5803 = scmp.lt.s32.totalorder %s24, 1
        %s5804 = scalar_select %p5803, %s24, 1
        %p5805 = scmp.lt.s32.totalorder %s25, 1
        %s5806 = scalar_select %p5805, %s25, 1
        %s5807 = smul.addr %s5806, 8
        %s5808 = smul.addr %s5804, 16
        %s5809 = sadd.s32 %s5807, %s5808
        %s5810 = smul.addr %s5809, 8
        %s5811 = scalar_lea.vmem %s7, %s5810
      $region60: #{cross_attention_forward.1} parent=55 // pred_fallthru
        _
    $region56: #{cross_attention_forward.1} parent=5 // pred_fallthru
      _
  $region6: #{cross_attention_forward.1} parent=0 // loop_footer
    %s17 = sadd.s32 1, %s13
  $region7: #{cross_attention_forward.1} parent=0 // loop_footer_branch
    %12 = sbr.rel target = $region3
  $region8: #{cross_attention_forward.1} parent=0 // loop_exit
    _

</llo_original>
